<compile_context>
chip_gen: v7x
topology: tpu7x:2x2x1
jax: 0.10.0
libtpu: 0.0.40
codegen_flags: <defaults>
</compile_context>

<pallas_src>
import math

import jax
import jax.numpy as jnp
from jax.experimental import pallas as pl
from jax.experimental.pallas import tpu as pltpu

EPS = 1e-5  # nn.LayerNorm default


# ----------------------------- small math helpers ----------------------------- #
def _layernorm(x, g, b):
    mu = jnp.mean(x, axis=-1, keepdims=True)
    var = jnp.mean((x - mu) ** 2, axis=-1, keepdims=True)
    return (x - mu) * jax.lax.rsqrt(var + EPS) * g + b


def _erf_poly(z):
    # Abramowitz & Stegun 7.1.26, max abs err ~1.5e-7 (exact-GELU semantics at fp32;
    # Mosaic may not lower lax.erf directly).
    a1, a2, a3, a4, a5 = 0.254829592, -0.284496736, 1.421413741, -1.453152027, 1.061405429
    p = 0.3275911
    az = jnp.abs(z)
    t = 1.0 / (1.0 + p * az)
    poly = ((((a5 * t + a4) * t + a3) * t + a2) * t + a1) * t
    y = 1.0 - poly * jnp.exp(-az * az)
    return jnp.where(z >= 0, y, -y)


def _gelu_exact(x):
    return 0.5 * x * (1.0 + _erf_poly(x * (1.0 / math.sqrt(2.0))))


# --------------------------------- Pallas kernel -------------------------------- #
def make_swin_window_kernel(num_heads, head_dim, dim, window_tokens, window_batch,
                            compute_dtype):
    # NOTE: the PyTorch module scales by C**-0.5 (not head_dim**-0.5); we match it.
    scale = dim ** (-0.5)
    cdt = compute_dtype
    Nw, WB = window_tokens, window_batch
    T = WB * Nw  # tokens per grid step (WB whole windows, contiguous rows)

    def kernel(x_ref, g1_ref, b1_ref,
               wq_ref, bq_ref, wk_ref, bk_ref, wv_ref, bv_ref,
               wproj_ref, bproj_ref, bias_ref,
               g2_ref, b2_ref, w1_ref, bm1_ref, w2_ref, bm2_ref, o_ref):
        x = x_ref[...]                                           # (T, C) f32 token slab

        # ---- norm1 + windowed multi-head attention ----
        xn = _layernorm(x, g1_ref[...], b1_ref[...])
        xn_c = xn.astype(cdt)
        q = jnp.dot(xn_c, wq_ref[...], preferred_element_type=jnp.float32) + bq_ref[...]
        k = jnp.dot(xn_c, wk_ref[...], preferred_element_type=jnp.float32) + bk_ref[...]
        v = jnp.dot(xn_c, wv_ref[...], preferred_element_type=jnp.float32) + bv_ref[...]

        # Static head loop; every iteration does window-BATCHED work and accumulates the
        # output projection directly (no lane-dim concatenation of head outputs).
        attn_acc = None
        for h in range(num_heads):
            sl = slice(h * head_dim, (h + 1) * head_dim)
            qh = q[:, sl].reshape(WB, Nw, head_dim).astype(cdt)
            kh = k[:, sl].reshape(WB, Nw, head_dim).astype(cdt)
            vh = v[:, sl].reshape(WB, Nw, head_dim).astype(cdt)
            s = jnp.einsum("bqd,bkd->bqk", qh, kh,
                           preferred_element_type=jnp.float32) * scale + bias_ref[h]
            s = s - jnp.max(s, axis=-1, keepdims=True)           # softmax over keys (f32)
            e = jnp.exp(s)
            p = e * pl.reciprocal(jnp.sum(e, axis=-1, keepdims=True), approx=True)
            oh = jnp.einsum("bqk,bkd->bqd", p.astype(cdt), vh,
                            preferred_element_type=jnp.float32)  # (WB, Nw, hd)
            contrib = jnp.dot(oh.reshape(T, head_dim).astype(cdt), wproj_ref[h],
                              preferred_element_type=jnp.float32)  # (T, C)
            attn_acc = contrib if attn_acc is None else attn_acc + contrib
        x1 = attn_acc + bproj_ref[...] + x                       # residual 1

        # ---- norm2 + MLP (exact GELU, matching nn.GELU default) ----
        xn2 = _layernorm(x1, g2_ref[...], b2_ref[...]).astype(cdt)
        hmid = jnp.dot(xn2, w1_ref[...], preferred_element_type=jnp.float32) + bm1_ref[...]
        hmid = _gelu_exact(hmid)
        hout = jnp.dot(hmid.astype(cdt), w2_ref[...],
                       preferred_element_type=jnp.float32) + bm2_ref[...]
        o_ref[...] = (hout + x1).astype(o_ref.dtype)             # residual 2, one store

    return kernel


def _pick_window_batch(n_windows, tokens_per_window, target_rows=512):
    """Batch enough windows per grid step to reach ~target_rows tokens, but keep the grid
    length >= 2 when possible so 'parallel' semantics can shard steps across v7x's 2 TCs."""
    wb = max(1, min(target_rows // max(tokens_per_window, 1), n_windows))
    while wb > 1 and (n_windows + wb - 1) // wb < 2:
        wb = (wb + 1) // 2
    return wb


def attn_mlp_windows_pallas(xw, params, rel_bias, num_heads,
                            compute_dtype=jnp.float32, window_batch=None):
    """xw: (num_windows, window_size**2, C) float32 -> same-shape output."""
    nW, Nw, C = xw.shape
    hd = C // num_heads
    (g1, b1, wqkv, bqkv, wproj, bproj, g2, b2, w1, bm1, w2, bm2) = params

    WB = window_batch or _pick_window_batch(nW, Nw)
    nWp = ((nW + WB - 1) // WB) * WB
    if nWp != nW:                       # zero-pad windows to a multiple of WB (LN of a
        xw = jnp.pad(xw, ((0, nWp - nW), (0, 0), (0, 0)))  # zero row is finite -> safe)
    x2d = xw.reshape(nWp * Nw, C)       # windows are contiguous row blocks of the slab
    T = WB * Nw

    cdt = compute_dtype
    # Split packed qkv weight/bias in the wrapper (no non-128-aligned lane slicing of the
    # qkv activation in the kernel); reshape proj weight so the kernel indexes it per head
    # on a leading (free) axis and accumulates the projection instead of concatenating.
    wq, wk, wv = wqkv[:, :C], wqkv[:, C:2 * C], wqkv[:, 2 * C:]
    bq, bk, bv = bqkv[:C], bqkv[C:2 * C], bqkv[2 * C:]
    wproj3 = wproj.reshape(num_heads, hd, C)

    r2 = lambda p: p.reshape(1, -1).astype(jnp.float32)   # 1-D params -> (1, dim), f32
    wcast = lambda wmat: wmat.astype(cdt)                  # matmul operands in compute dtype
    full = lambda a: pl.BlockSpec(a.shape, lambda w, nd=a.ndim: (0,) * nd)

    args = (x2d,
            r2(g1), r2(b1),
            wcast(wq), r2(bq), wcast(wk), r2(bk), wcast(wv), r2(bv),
            wcast(wproj3), r2(bproj), rel_bias.astype(jnp.float32),
            r2(g2), r2(b2),
            wcast(w1), r2(bm1), wcast(w2), r2(bm2))

    in_specs = [pl.BlockSpec((T, C), lambda w: (w, 0))] + [full(a) for a in args[1:]]

    # VMEM budget sized from the chosen tile; capped at 64 MiB so it is valid on v7x too.
    itemsize = jnp.dtype(cdt).itemsize
    weight_bytes = 12 * C * C * itemsize * 2          # resident weights (conservatively x2)
    act_bytes = 2 * 2 * T * C * 4                     # in/out slabs, double-buffered
    scratch_bytes = T * (8 * C) * 4                   # q/k/v/hmid-class temporaries
    vmem_limit = int(min(64 * 2 ** 20,
                         max(8 * 2 ** 20, 2 * (weight_bytes + act_bytes + scratch_bytes))))

    kernel = make_swin_window_kernel(num_heads, hd, C, Nw, WB, cdt)
    out2d = pl.pallas_call(
        kernel,
        out_shape=jax.ShapeDtypeStruct((nWp * Nw, C), xw.dtype),
        grid_spec=pltpu.PrefetchScalarGridSpec(
            num_scalar_prefetch=0,
            grid=(nWp // WB,),
            in_specs=in_specs,
            out_specs=pl.BlockSpec((T, C), lambda w: (w, 0)),
        ),
        compiler_params=pltpu.CompilerParams(
            dimension_semantics=("parallel",),
            vmem_limit_bytes=vmem_limit),
    )(*args)
    return out2d.reshape(nWp, Nw, C)[:nW]


# ------------------------------- glue (pure JAX) ------------------------------- #
def window_partition(x, ws):
    B, H, W, C = x.shape
    x = x.reshape(B, H // ws, ws, W // ws, ws, C)
    return x.transpose(0, 1, 3, 2, 4, 5).reshape(-1, ws, ws, C)


def window_reverse(windows, ws, H, W):
    B = windows.shape[0] // (H * W // ws ** 2)
    x = windows.reshape(B, H // ws, W // ws, ws, ws, -1)
    return x.transpose(0, 1, 3, 2, 4, 5).reshape(B, H, W, -1)


def relative_position_bias(table, window_size, num_heads):
    ws = window_size
    Nw = ws * ws
    coords = jnp.stack(
        jnp.meshgrid(jnp.arange(ws), jnp.arange(ws), indexing="ij"), axis=0
    ).reshape(2, -1)                                        # (2, Nw)
    rel = coords[:, :, None] - coords[:, None, :]           # (2, Nw, Nw)
    rel = rel.transpose(1, 2, 0)
    idx = (rel[..., 0] + ws - 1) * (2 * ws - 1) + (rel[..., 1] + ws - 1)
    bias = table[idx.reshape(-1)].reshape(Nw, Nw, num_heads).transpose(2, 0, 1)
    return bias.astype(jnp.float32)                         # (num_heads, Nw, Nw)


def swin_block_forward(x, params, table, *, window_size, num_heads, shifted,
                       compute_dtype=jnp.float32):
    """Pallas-backed SwinBlock forward. x: (B, N, C) with N = H*W a perfect square."""
    B, N, C = x.shape
    H = W = int(round(N ** 0.5))
    assert H * W == N and H >= window_size and W >= window_size
    ws = window_size

    xv = x.reshape(B, H, W, C)
    if shifted:
        # NOTE: like the PyTorch module, the shifted path has no attention mask
        # (cross-boundary tokens attend to each other) -- semantics preserved.
        xv = jnp.roll(xv, shift=(-window_size // 2, -window_size // 2), axis=(1, 2))
    xw = window_partition(xv, ws).reshape(-1, ws * ws, C)

    bias = relative_position_bias(table, ws, num_heads)
    yw = attn_mlp_windows_pallas(xw, params, bias, num_heads,
                                 compute_dtype=compute_dtype)

    y = window_reverse(yw.reshape(-1, ws, ws, C), ws, H, W)
    if shifted:
        y = jnp.roll(y, shift=(window_size // 2, window_size // 2), axis=(1, 2))
    return y.reshape(B, H * W, -1)


# ------------------------------ pure-JAX reference ------------------------------ #
def swin_block_reference(x, params, table, *, window_size, num_heads, shifted):
    (g1, b1, wqkv, bqkv, wproj, bproj, g2, b2, w1, bm1, w2, bm2) = params
    B, N, C = x.shape
    H = W = int(round(N ** 0.5))
    ws = window_size
    hd = C // num_heads
    bias = relative_position_bias(table, ws, num_heads)

    xv = x.reshape(B, H, W, C)
    if shifted:
        xv = jnp.roll(xv, shift=(-window_size // 2, -window_size // 2), axis=(1, 2))
    xw = window_partition(xv, ws).reshape(-1, ws * ws, C)
    nW, Nw, _ = xw.shape

    xn = _layernorm(xw, g1, b1)
    qkv = xn @ wqkv + bqkv
    q, k, v = jnp.split(qkv, 3, axis=-1)
    q = q.reshape(nW, Nw, num_heads, hd).transpose(0, 2, 1, 3)
    k = k.reshape(nW, Nw, num_heads, hd).transpose(0, 2, 1, 3)
    v = v.reshape(nW, Nw, num_heads, hd).transpose(0, 2, 1, 3)
    attn = jnp.einsum("whqd,whkd->whqk", q, k) * (C ** -0.5) + bias[None]
    attn = jax.nn.softmax(attn, axis=-1)
    o = jnp.einsum("whqk,whkd->whqd", attn, v).transpose(0, 2, 1, 3).reshape(nW, Nw, C)
    o = o @ wproj + bproj
    x1 = o + xw
    h2 = jax.nn.gelu(_layernorm(x1, g2, b2) @ w1 + bm1, approximate=False) @ w2 + bm2
    yw = h2 + x1

    y = window_reverse(yw.reshape(-1, ws, ws, C), ws, H, W)
    if shifted:
        y = jnp.roll(y, shift=(window_size // 2, window_size // 2), axis=(1, 2))
    return y.reshape(B, H * W, -1)


# ------------------------------------ main ------------------------------------ #
if __name__ == "__main__":
    B, C, num_heads, window_size = 2, 32, 4, 4
    H = W = 8
    N = H * W

    key = jax.random.PRNGKey(0)
    ks = jax.random.split(key, 12)
    init = lambda k, shape: (jax.random.normal(k, shape, jnp.float32) * 0.02)

    # Linear weights stored as (in, out), applied as x @ W (matches nn.Linear semantics).
    g1, b1 = jnp.ones((C,), jnp.float32), jnp.zeros((C,), jnp.float32)
    g2, b2 = jnp.ones((C,), jnp.float32), jnp.zeros((C,), jnp.float32)
    wqkv, bqkv = init(ks[0], (C, 3 * C)), init(ks[1], (3 * C,))
    wproj, bproj = init(ks[2], (C, C)), init(ks[3], (C,))
    w1, bm1 = init(ks[4], (C, 4 * C)), init(ks[5], (4 * C,))
    w2, bm2 = init(ks[6], (4 * C, C)), init(ks[7], (C,))
    # PyTorch inits the bias table to zeros; use small nonzero values for a nontrivial test.
    table = init(ks[8], ((2 * window_size - 1) ** 2, num_heads))
    params = (g1, b1, wqkv, bqkv, wproj, bproj, g2, b2, w1, bm1, w2, bm2)

    x = jax.random.normal(ks[9], (B, N, C), jnp.float32)

    checks = []
    # f32 compute path: must match the f32 reference tightly.
    for shifted in (False, True):
        out = jax.block_until_ready(
            swin_block_forward(x, params, table, window_size=window_size,
                               num_heads=num_heads, shifted=shifted))
        ref = jax.block_until_ready(
            swin_block_reference(x, params, table, window_size=window_size,
                                 num_heads=num_heads, shifted=shifted))
        checks.append(bool(jnp.allclose(out, ref, rtol=1e-4, atol=1e-4)))

    # bf16 matmul-operand path (recommended on v6e/v7x); f32 accumulation, loose tolerance
    # against the f32 reference.
    out_bf16 = jax.block_until_ready(
        swin_block_forward(x, params, table, window_size=window_size,
                           num_heads=num_heads, shifted=False,
                           compute_dtype=jnp.bfloat16))
    ref0 = jax.block_until_ready(
        swin_block_reference(x, params, table, window_size=window_size,
                             num_heads=num_heads, shifted=False))
    checks.append(bool(jnp.allclose(out_bf16, ref0, rtol=5e-2, atol=5e-2)))

    if all(checks):
        print("KERNEL_OK")
    else:
        print("MISMATCH")
</pallas_src>

<mosaic_0001>
module attributes {stable_mosaic.version = 11 : i64} {
  func.func @kernel(%arg0: i32, %arg1: memref<64x32xf32, #tpu.memory_space<vmem>>, %arg2: memref<1x32xf32, #tpu.memory_space<vmem>>, %arg3: memref<1x32xf32, #tpu.memory_space<vmem>>, %arg4: memref<32x32xf32, #tpu.memory_space<vmem>>, %arg5: memref<1x32xf32, #tpu.memory_space<vmem>>, %arg6: memref<32x32xf32, #tpu.memory_space<vmem>>, %arg7: memref<1x32xf32, #tpu.memory_space<vmem>>, %arg8: memref<32x32xf32, #tpu.memory_space<vmem>>, %arg9: memref<1x32xf32, #tpu.memory_space<vmem>>, %arg10: memref<4x8x32xf32, #tpu.memory_space<vmem>>, %arg11: memref<1x32xf32, #tpu.memory_space<vmem>>, %arg12: memref<4x16x16xf32, #tpu.memory_space<vmem>>, %arg13: memref<1x32xf32, #tpu.memory_space<vmem>>, %arg14: memref<1x32xf32, #tpu.memory_space<vmem>>, %arg15: memref<32x128xf32, #tpu.memory_space<vmem>>, %arg16: memref<1x128xf32, #tpu.memory_space<vmem>>, %arg17: memref<128x32xf32, #tpu.memory_space<vmem>>, %arg18: memref<1x32xf32, #tpu.memory_space<vmem>>, %arg19: memref<64x32xf32, #tpu.memory_space<vmem>>) attributes {dimension_semantics = [#tpu.dimension_semantics<parallel>], iteration_bounds = array<i64: 2>, scalar_prefetch = 0 : i64, scratch_operands = 0 : i64, tpu.core_type = #tpu.core_type<tc>, window_params = [{transform_indices = @transform_0, window_bounds = array<i64: 64, 32>}, {pipeline_mode = #tpu.pipeline_mode<synchronous>, transform_indices = @transform_1, window_bounds = array<i64: 1, 32>}, {pipeline_mode = #tpu.pipeline_mode<synchronous>, transform_indices = @transform_2, window_bounds = array<i64: 1, 32>}, {pipeline_mode = #tpu.pipeline_mode<synchronous>, transform_indices = @transform_3, window_bounds = array<i64: 32, 32>}, {pipeline_mode = #tpu.pipeline_mode<synchronous>, transform_indices = @transform_4, window_bounds = array<i64: 1, 32>}, {pipeline_mode = #tpu.pipeline_mode<synchronous>, transform_indices = @transform_5, window_bounds = array<i64: 32, 32>}, {pipeline_mode = #tpu.pipeline_mode<synchronous>, transform_indices = @transform_6, window_bounds = array<i64: 1, 32>}, {pipeline_mode = #tpu.pipeline_mode<synchronous>, transform_indices = @transform_7, window_bounds = array<i64: 32, 32>}, {pipeline_mode = #tpu.pipeline_mode<synchronous>, transform_indices = @transform_8, window_bounds = array<i64: 1, 32>}, {pipeline_mode = #tpu.pipeline_mode<synchronous>, transform_indices = @transform_9, window_bounds = array<i64: 4, 8, 32>}, {pipeline_mode = #tpu.pipeline_mode<synchronous>, transform_indices = @transform_10, window_bounds = array<i64: 1, 32>}, {pipeline_mode = #tpu.pipeline_mode<synchronous>, transform_indices = @transform_11, window_bounds = array<i64: 4, 16, 16>}, {pipeline_mode = #tpu.pipeline_mode<synchronous>, transform_indices = @transform_12, window_bounds = array<i64: 1, 32>}, {pipeline_mode = #tpu.pipeline_mode<synchronous>, transform_indices = @transform_13, window_bounds = array<i64: 1, 32>}, {pipeline_mode = #tpu.pipeline_mode<synchronous>, transform_indices = @transform_14, window_bounds = array<i64: 32, 128>}, {pipeline_mode = #tpu.pipeline_mode<synchronous>, transform_indices = @transform_15, window_bounds = array<i64: 1, 128>}, {pipeline_mode = #tpu.pipeline_mode<synchronous>, transform_indices = @transform_16, window_bounds = array<i64: 128, 32>}, {pipeline_mode = #tpu.pipeline_mode<synchronous>, transform_indices = @transform_17, window_bounds = array<i64: 1, 32>}, {transform_indices = @transform_18, window_bounds = array<i64: 64, 32>}]} {
    %c0 = arith.constant 0 : index
    %c0_0 = arith.constant 0 : index
    %0 = vector.load %arg1[%c0, %c0_0] : memref<64x32xf32, #tpu.memory_space<vmem>>, vector<64x32xf32>
    %c0_1 = arith.constant 0 : index
    %c0_2 = arith.constant 0 : index
    %1 = vector.load %arg2[%c0_1, %c0_2] : memref<1x32xf32, #tpu.memory_space<vmem>>, vector<1x32xf32>
    %c0_3 = arith.constant 0 : index
    %c0_4 = arith.constant 0 : index
    %2 = vector.load %arg3[%c0_3, %c0_4] : memref<1x32xf32, #tpu.memory_space<vmem>>, vector<1x32xf32>
    %cst = arith.constant dense<0.000000e+00> : vector<64xf32>
    %3 = vector.multi_reduction <add>, %0, %cst [1] : vector<64x32xf32> to vector<64xf32>
    %4 = vector.shape_cast %3 : vector<64xf32> to vector<64x1xf32>
    %cst_5 = arith.constant 3.200000e+01 : f32
    %5 = vector.broadcast %cst_5 : f32 to vector<64x1xf32>
    %6 = arith.divf %4, %5 : vector<64x1xf32>
    %7 = vector.broadcast %6 : vector<64x1xf32> to vector<64x32xf32>
    %8 = arith.subf %0, %7 : vector<64x32xf32>
    %9 = arith.mulf %8, %8 : vector<64x32xf32>
    %cst_6 = arith.constant dense<0.000000e+00> : vector<64xf32>
    %10 = vector.multi_reduction <add>, %9, %cst_6 [1] : vector<64x32xf32> to vector<64xf32>
    %11 = vector.shape_cast %10 : vector<64xf32> to vector<64x1xf32>
    %cst_7 = arith.constant 3.200000e+01 : f32
    %12 = vector.broadcast %cst_7 : f32 to vector<64x1xf32>
    %13 = arith.divf %11, %12 : vector<64x1xf32>
    %14 = vector.broadcast %6 : vector<64x1xf32> to vector<64x32xf32>
    %15 = arith.subf %0, %14 : vector<64x32xf32>
    %cst_8 = arith.constant 9.99999974E-6 : f32
    %16 = vector.broadcast %cst_8 : f32 to vector<64x1xf32>
    %17 = arith.addf %13, %16 : vector<64x1xf32>
    %18 = math.rsqrt %17 : vector<64x1xf32>
    %19 = vector.broadcast %18 : vector<64x1xf32> to vector<64x32xf32>
    %20 = arith.mulf %15, %19 : vector<64x32xf32>
    %21 = vector.broadcast %1 : vector<1x32xf32> to vector<64x32xf32>
    %22 = arith.mulf %20, %21 : vector<64x32xf32>
    %23 = vector.broadcast %2 : vector<1x32xf32> to vector<64x32xf32>
    %24 = arith.addf %22, %23 : vector<64x32xf32>
    %c0_9 = arith.constant 0 : index
    %c0_10 = arith.constant 0 : index
    %25 = vector.load %arg4[%c0_9, %c0_10] : memref<32x32xf32, #tpu.memory_space<vmem>>, vector<32x32xf32>
    %cst_11 = arith.constant dense<0.000000e+00> : vector<64x32xf32>
    %26 = tpu.matmul %24, %25, %cst_11 {dimension_numbers = #tpu.dot_dimension_numbers<[1], [0], [0], [1], [0, 0, 1, 1], [], []>} : vector<64x32xf32>, vector<32x32xf32>, vector<64x32xf32> -> vector<64x32xf32>
    %c0_12 = arith.constant 0 : index
    %c0_13 = arith.constant 0 : index
    %27 = vector.load %arg5[%c0_12, %c0_13] : memref<1x32xf32, #tpu.memory_space<vmem>>, vector<1x32xf32>
    %28 = vector.broadcast %27 : vector<1x32xf32> to vector<64x32xf32>
    %29 = arith.addf %26, %28 : vector<64x32xf32>
    %c0_14 = arith.constant 0 : index
    %c0_15 = arith.constant 0 : index
    %30 = vector.load %arg6[%c0_14, %c0_15] : memref<32x32xf32, #tpu.memory_space<vmem>>, vector<32x32xf32>
    %cst_16 = arith.constant dense<0.000000e+00> : vector<64x32xf32>
    %31 = tpu.matmul %24, %30, %cst_16 {dimension_numbers = #tpu.dot_dimension_numbers<[1], [0], [0], [1], [0, 0, 1, 1], [], []>} : vector<64x32xf32>, vector<32x32xf32>, vector<64x32xf32> -> vector<64x32xf32>
    %c0_17 = arith.constant 0 : index
    %c0_18 = arith.constant 0 : index
    %32 = vector.load %arg7[%c0_17, %c0_18] : memref<1x32xf32, #tpu.memory_space<vmem>>, vector<1x32xf32>
    %33 = vector.broadcast %32 : vector<1x32xf32> to vector<64x32xf32>
    %34 = arith.addf %31, %33 : vector<64x32xf32>
    %c0_19 = arith.constant 0 : index
    %c0_20 = arith.constant 0 : index
    %35 = vector.load %arg8[%c0_19, %c0_20] : memref<32x32xf32, #tpu.memory_space<vmem>>, vector<32x32xf32>
    %cst_21 = arith.constant dense<0.000000e+00> : vector<64x32xf32>
    %36 = tpu.matmul %24, %35, %cst_21 {dimension_numbers = #tpu.dot_dimension_numbers<[1], [0], [0], [1], [0, 0, 1, 1], [], []>} : vector<64x32xf32>, vector<32x32xf32>, vector<64x32xf32> -> vector<64x32xf32>
    %c0_22 = arith.constant 0 : index
    %c0_23 = arith.constant 0 : index
    %37 = vector.load %arg9[%c0_22, %c0_23] : memref<1x32xf32, #tpu.memory_space<vmem>>, vector<1x32xf32>
    %38 = vector.broadcast %37 : vector<1x32xf32> to vector<64x32xf32>
    %39 = arith.addf %36, %38 : vector<64x32xf32>
    %40 = vector.extract_strided_slice %29 {offsets = [0, 0], sizes = [64, 8], strides = [1, 1]} : vector<64x32xf32> to vector<64x8xf32>
    %41 = vector.shape_cast %40 : vector<64x8xf32> to vector<4x16x8xf32>
    %42 = vector.extract_strided_slice %34 {offsets = [0, 0], sizes = [64, 8], strides = [1, 1]} : vector<64x32xf32> to vector<64x8xf32>
    %43 = vector.shape_cast %42 : vector<64x8xf32> to vector<4x16x8xf32>
    %44 = vector.extract_strided_slice %39 {offsets = [0, 0], sizes = [64, 8], strides = [1, 1]} : vector<64x32xf32> to vector<64x8xf32>
    %45 = vector.shape_cast %44 : vector<64x8xf32> to vector<4x16x8xf32>
    "tpu.trace_start"() <{level = 10 : i32, message = "bqd,bkd->bqk"}> : () -> ()
    %cst_24 = arith.constant dense<0.000000e+00> : vector<4x16x16xf32>
    %46 = tpu.matmul %41, %43, %cst_24 {dimension_numbers = #tpu.dot_dimension_numbers<[2], [2], [1], [1], [0, 0, 0, 1, 1, 1], [0], [0]>} : vector<4x16x8xf32>, vector<4x16x8xf32>, vector<4x16x16xf32> -> vector<4x16x16xf32>
    "tpu.trace_stop"() : () -> ()
    %cst_25 = arith.constant 0.176776692 : f32
    %47 = vector.broadcast %cst_25 : f32 to vector<4x16x16xf32>
    %48 = arith.mulf %46, %47 : vector<4x16x16xf32>
    %c0_26 = arith.constant 0 : index
    %c0_27 = arith.constant 0 : index
    %c0_28 = arith.constant 0 : index
    %49 = vector.load %arg12[%c0_26, %c0_27, %c0_28] : memref<4x16x16xf32, #tpu.memory_space<vmem>>, vector<1x16x16xf32>
    %50 = vector.shape_cast %49 : vector<1x16x16xf32> to vector<16x16xf32>
    %51 = vector.shape_cast %50 : vector<16x16xf32> to vector<1x16x16xf32>
    %52 = vector.broadcast %51 : vector<1x16x16xf32> to vector<4x16x16xf32>
    %53 = arith.addf %48, %52 : vector<4x16x16xf32>
    %cst_29 = arith.constant dense<0xFF800000> : vector<4x16xf32>
    %54 = vector.multi_reduction <maximumf>, %53, %cst_29 [2] : vector<4x16x16xf32> to vector<4x16xf32>
    %55 = vector.shape_cast %54 : vector<4x16xf32> to vector<4x16x1xf32>
    %56 = vector.broadcast %55 : vector<4x16x1xf32> to vector<4x16x16xf32>
    %57 = arith.subf %53, %56 : vector<4x16x16xf32>
    %58 = math.exp %57 : vector<4x16x16xf32>
    %cst_30 = arith.constant dense<0.000000e+00> : vector<4x16xf32>
    %59 = vector.multi_reduction <add>, %58, %cst_30 [2] : vector<4x16x16xf32> to vector<4x16xf32>
    %60 = vector.shape_cast %59 : vector<4x16xf32> to vector<4x16x1xf32>
    %61 = tpu.reciprocal %60 {approx = true} : vector<4x16x1xf32> -> vector<4x16x1xf32>
    %62 = vector.broadcast %61 : vector<4x16x1xf32> to vector<4x16x16xf32>
    %63 = arith.mulf %58, %62 : vector<4x16x16xf32>
    "tpu.trace_start"() <{level = 10 : i32, message = "bqk,bkd->bqd"}> : () -> ()
    %cst_31 = arith.constant dense<0.000000e+00> : vector<4x16x8xf32>
    %64 = tpu.matmul %63, %45, %cst_31 {dimension_numbers = #tpu.dot_dimension_numbers<[2], [1], [1], [2], [0, 0, 0, 1, 1, 2], [0], [0]>} : vector<4x16x16xf32>, vector<4x16x8xf32>, vector<4x16x8xf32> -> vector<4x16x8xf32>
    "tpu.trace_stop"() : () -> ()
    %65 = vector.shape_cast %64 : vector<4x16x8xf32> to vector<64x8xf32>
    %c0_32 = arith.constant 0 : index
    %c0_33 = arith.constant 0 : index
    %c0_34 = arith.constant 0 : index
    %66 = vector.load %arg10[%c0_32, %c0_33, %c0_34] : memref<4x8x32xf32, #tpu.memory_space<vmem>>, vector<1x8x32xf32>
    %67 = vector.shape_cast %66 : vector<1x8x32xf32> to vector<8x32xf32>
    %cst_35 = arith.constant dense<0.000000e+00> : vector<64x32xf32>
    %68 = tpu.matmul %65, %67, %cst_35 {dimension_numbers = #tpu.dot_dimension_numbers<[1], [0], [0], [1], [0, 0, 1, 1], [], []>} : vector<64x8xf32>, vector<8x32xf32>, vector<64x32xf32> -> vector<64x32xf32>
    %69 = vector.extract_strided_slice %29 {offsets = [0, 8], sizes = [64, 8], strides = [1, 1]} : vector<64x32xf32> to vector<64x8xf32>
    %70 = vector.shape_cast %69 : vector<64x8xf32> to vector<4x16x8xf32>
    %71 = vector.extract_strided_slice %34 {offsets = [0, 8], sizes = [64, 8], strides = [1, 1]} : vector<64x32xf32> to vector<64x8xf32>
    %72 = vector.shape_cast %71 : vector<64x8xf32> to vector<4x16x8xf32>
    %73 = vector.extract_strided_slice %39 {offsets = [0, 8], sizes = [64, 8], strides = [1, 1]} : vector<64x32xf32> to vector<64x8xf32>
    %74 = vector.shape_cast %73 : vector<64x8xf32> to vector<4x16x8xf32>
    "tpu.trace_start"() <{level = 10 : i32, message = "bqd,bkd->bqk"}> : () -> ()
    %cst_36 = arith.constant dense<0.000000e+00> : vector<4x16x16xf32>
    %75 = tpu.matmul %70, %72, %cst_36 {dimension_numbers = #tpu.dot_dimension_numbers<[2], [2], [1], [1], [0, 0, 0, 1, 1, 1], [0], [0]>} : vector<4x16x8xf32>, vector<4x16x8xf32>, vector<4x16x16xf32> -> vector<4x16x16xf32>
    "tpu.trace_stop"() : () -> ()
    %cst_37 = arith.constant 0.176776692 : f32
    %76 = vector.broadcast %cst_37 : f32 to vector<4x16x16xf32>
    %77 = arith.mulf %75, %76 : vector<4x16x16xf32>
    %c1 = arith.constant 1 : index
    %c0_38 = arith.constant 0 : index
    %c0_39 = arith.constant 0 : index
    %78 = vector.load %arg12[%c1, %c0_38, %c0_39] : memref<4x16x16xf32, #tpu.memory_space<vmem>>, vector<1x16x16xf32>
    %79 = vector.shape_cast %78 : vector<1x16x16xf32> to vector<16x16xf32>
    %80 = vector.shape_cast %79 : vector<16x16xf32> to vector<1x16x16xf32>
    %81 = vector.broadcast %80 : vector<1x16x16xf32> to vector<4x16x16xf32>
    %82 = arith.addf %77, %81 : vector<4x16x16xf32>
    %cst_40 = arith.constant dense<0xFF800000> : vector<4x16xf32>
    %83 = vector.multi_reduction <maximumf>, %82, %cst_40 [2] : vector<4x16x16xf32> to vector<4x16xf32>
    %84 = vector.shape_cast %83 : vector<4x16xf32> to vector<4x16x1xf32>
    %85 = vector.broadcast %84 : vector<4x16x1xf32> to vector<4x16x16xf32>
    %86 = arith.subf %82, %85 : vector<4x16x16xf32>
    %87 = math.exp %86 : vector<4x16x16xf32>
    %cst_41 = arith.constant dense<0.000000e+00> : vector<4x16xf32>
    %88 = vector.multi_reduction <add>, %87, %cst_41 [2] : vector<4x16x16xf32> to vector<4x16xf32>
    %89 = vector.shape_cast %88 : vector<4x16xf32> to vector<4x16x1xf32>
    %90 = tpu.reciprocal %89 {approx = true} : vector<4x16x1xf32> -> vector<4x16x1xf32>
    %91 = vector.broadcast %90 : vector<4x16x1xf32> to vector<4x16x16xf32>
    %92 = arith.mulf %87, %91 : vector<4x16x16xf32>
    "tpu.trace_start"() <{level = 10 : i32, message = "bqk,bkd->bqd"}> : () -> ()
    %cst_42 = arith.constant dense<0.000000e+00> : vector<4x16x8xf32>
    %93 = tpu.matmul %92, %74, %cst_42 {dimension_numbers = #tpu.dot_dimension_numbers<[2], [1], [1], [2], [0, 0, 0, 1, 1, 2], [0], [0]>} : vector<4x16x16xf32>, vector<4x16x8xf32>, vector<4x16x8xf32> -> vector<4x16x8xf32>
    "tpu.trace_stop"() : () -> ()
    %94 = vector.shape_cast %93 : vector<4x16x8xf32> to vector<64x8xf32>
    %c1_43 = arith.constant 1 : index
    %c0_44 = arith.constant 0 : index
    %c0_45 = arith.constant 0 : index
    %95 = vector.load %arg10[%c1_43, %c0_44, %c0_45] : memref<4x8x32xf32, #tpu.memory_space<vmem>>, vector<1x8x32xf32>
    %96 = vector.shape_cast %95 : vector<1x8x32xf32> to vector<8x32xf32>
    %cst_46 = arith.constant dense<0.000000e+00> : vector<64x32xf32>
    %97 = tpu.matmul %94, %96, %cst_46 {dimension_numbers = #tpu.dot_dimension_numbers<[1], [0], [0], [1], [0, 0, 1, 1], [], []>} : vector<64x8xf32>, vector<8x32xf32>, vector<64x32xf32> -> vector<64x32xf32>
    %98 = arith.addf %68, %97 : vector<64x32xf32>
    %99 = vector.extract_strided_slice %29 {offsets = [0, 16], sizes = [64, 8], strides = [1, 1]} : vector<64x32xf32> to vector<64x8xf32>
    %100 = vector.shape_cast %99 : vector<64x8xf32> to vector<4x16x8xf32>
    %101 = vector.extract_strided_slice %34 {offsets = [0, 16], sizes = [64, 8], strides = [1, 1]} : vector<64x32xf32> to vector<64x8xf32>
    %102 = vector.shape_cast %101 : vector<64x8xf32> to vector<4x16x8xf32>
    %103 = vector.extract_strided_slice %39 {offsets = [0, 16], sizes = [64, 8], strides = [1, 1]} : vector<64x32xf32> to vector<64x8xf32>
    %104 = vector.shape_cast %103 : vector<64x8xf32> to vector<4x16x8xf32>
    "tpu.trace_start"() <{level = 10 : i32, message = "bqd,bkd->bqk"}> : () -> ()
    %cst_47 = arith.constant dense<0.000000e+00> : vector<4x16x16xf32>
    %105 = tpu.matmul %100, %102, %cst_47 {dimension_numbers = #tpu.dot_dimension_numbers<[2], [2], [1], [1], [0, 0, 0, 1, 1, 1], [0], [0]>} : vector<4x16x8xf32>, vector<4x16x8xf32>, vector<4x16x16xf32> -> vector<4x16x16xf32>
    "tpu.trace_stop"() : () -> ()
    %cst_48 = arith.constant 0.176776692 : f32
    %106 = vector.broadcast %cst_48 : f32 to vector<4x16x16xf32>
    %107 = arith.mulf %105, %106 : vector<4x16x16xf32>
    %c2 = arith.constant 2 : index
    %c0_49 = arith.constant 0 : index
    %c0_50 = arith.constant 0 : index
    %108 = vector.load %arg12[%c2, %c0_49, %c0_50] : memref<4x16x16xf32, #tpu.memory_space<vmem>>, vector<1x16x16xf32>
    %109 = vector.shape_cast %108 : vector<1x16x16xf32> to vector<16x16xf32>
    %110 = vector.shape_cast %109 : vector<16x16xf32> to vector<1x16x16xf32>
    %111 = vector.broadcast %110 : vector<1x16x16xf32> to vector<4x16x16xf32>
    %112 = arith.addf %107, %111 : vector<4x16x16xf32>
    %cst_51 = arith.constant dense<0xFF800000> : vector<4x16xf32>
    %113 = vector.multi_reduction <maximumf>, %112, %cst_51 [2] : vector<4x16x16xf32> to vector<4x16xf32>
    %114 = vector.shape_cast %113 : vector<4x16xf32> to vector<4x16x1xf32>
    %115 = vector.broadcast %114 : vector<4x16x1xf32> to vector<4x16x16xf32>
    %116 = arith.subf %112, %115 : vector<4x16x16xf32>
    %117 = math.exp %116 : vector<4x16x16xf32>
    %cst_52 = arith.constant dense<0.000000e+00> : vector<4x16xf32>
    %118 = vector.multi_reduction <add>, %117, %cst_52 [2] : vector<4x16x16xf32> to vector<4x16xf32>
    %119 = vector.shape_cast %118 : vector<4x16xf32> to vector<4x16x1xf32>
    %120 = tpu.reciprocal %119 {approx = true} : vector<4x16x1xf32> -> vector<4x16x1xf32>
    %121 = vector.broadcast %120 : vector<4x16x1xf32> to vector<4x16x16xf32>
    %122 = arith.mulf %117, %121 : vector<4x16x16xf32>
    "tpu.trace_start"() <{level = 10 : i32, message = "bqk,bkd->bqd"}> : () -> ()
    %cst_53 = arith.constant dense<0.000000e+00> : vector<4x16x8xf32>
    %123 = tpu.matmul %122, %104, %cst_53 {dimension_numbers = #tpu.dot_dimension_numbers<[2], [1], [1], [2], [0, 0, 0, 1, 1, 2], [0], [0]>} : vector<4x16x16xf32>, vector<4x16x8xf32>, vector<4x16x8xf32> -> vector<4x16x8xf32>
    "tpu.trace_stop"() : () -> ()
    %124 = vector.shape_cast %123 : vector<4x16x8xf32> to vector<64x8xf32>
    %c2_54 = arith.constant 2 : index
    %c0_55 = arith.constant 0 : index
    %c0_56 = arith.constant 0 : index
    %125 = vector.load %arg10[%c2_54, %c0_55, %c0_56] : memref<4x8x32xf32, #tpu.memory_space<vmem>>, vector<1x8x32xf32>
    %126 = vector.shape_cast %125 : vector<1x8x32xf32> to vector<8x32xf32>
    %cst_57 = arith.constant dense<0.000000e+00> : vector<64x32xf32>
    %127 = tpu.matmul %124, %126, %cst_57 {dimension_numbers = #tpu.dot_dimension_numbers<[1], [0], [0], [1], [0, 0, 1, 1], [], []>} : vector<64x8xf32>, vector<8x32xf32>, vector<64x32xf32> -> vector<64x32xf32>
    %128 = arith.addf %98, %127 : vector<64x32xf32>
    %129 = vector.extract_strided_slice %29 {offsets = [0, 24], sizes = [64, 8], strides = [1, 1]} : vector<64x32xf32> to vector<64x8xf32>
    %130 = vector.shape_cast %129 : vector<64x8xf32> to vector<4x16x8xf32>
    %131 = vector.extract_strided_slice %34 {offsets = [0, 24], sizes = [64, 8], strides = [1, 1]} : vector<64x32xf32> to vector<64x8xf32>
    %132 = vector.shape_cast %131 : vector<64x8xf32> to vector<4x16x8xf32>
    %133 = vector.extract_strided_slice %39 {offsets = [0, 24], sizes = [64, 8], strides = [1, 1]} : vector<64x32xf32> to vector<64x8xf32>
    %134 = vector.shape_cast %133 : vector<64x8xf32> to vector<4x16x8xf32>
    "tpu.trace_start"() <{level = 10 : i32, message = "bqd,bkd->bqk"}> : () -> ()
    %cst_58 = arith.constant dense<0.000000e+00> : vector<4x16x16xf32>
    %135 = tpu.matmul %130, %132, %cst_58 {dimension_numbers = #tpu.dot_dimension_numbers<[2], [2], [1], [1], [0, 0, 0, 1, 1, 1], [0], [0]>} : vector<4x16x8xf32>, vector<4x16x8xf32>, vector<4x16x16xf32> -> vector<4x16x16xf32>
    "tpu.trace_stop"() : () -> ()
    %cst_59 = arith.constant 0.176776692 : f32
    %136 = vector.broadcast %cst_59 : f32 to vector<4x16x16xf32>
    %137 = arith.mulf %135, %136 : vector<4x16x16xf32>
    %c3 = arith.constant 3 : index
    %c0_60 = arith.constant 0 : index
    %c0_61 = arith.constant 0 : index
    %138 = vector.load %arg12[%c3, %c0_60, %c0_61] : memref<4x16x16xf32, #tpu.memory_space<vmem>>, vector<1x16x16xf32>
    %139 = vector.shape_cast %138 : vector<1x16x16xf32> to vector<16x16xf32>
    %140 = vector.shape_cast %139 : vector<16x16xf32> to vector<1x16x16xf32>
    %141 = vector.broadcast %140 : vector<1x16x16xf32> to vector<4x16x16xf32>
    %142 = arith.addf %137, %141 : vector<4x16x16xf32>
    %cst_62 = arith.constant dense<0xFF800000> : vector<4x16xf32>
    %143 = vector.multi_reduction <maximumf>, %142, %cst_62 [2] : vector<4x16x16xf32> to vector<4x16xf32>
    %144 = vector.shape_cast %143 : vector<4x16xf32> to vector<4x16x1xf32>
    %145 = vector.broadcast %144 : vector<4x16x1xf32> to vector<4x16x16xf32>
    %146 = arith.subf %142, %145 : vector<4x16x16xf32>
    %147 = math.exp %146 : vector<4x16x16xf32>
    %cst_63 = arith.constant dense<0.000000e+00> : vector<4x16xf32>
    %148 = vector.multi_reduction <add>, %147, %cst_63 [2] : vector<4x16x16xf32> to vector<4x16xf32>
    %149 = vector.shape_cast %148 : vector<4x16xf32> to vector<4x16x1xf32>
    %150 = tpu.reciprocal %149 {approx = true} : vector<4x16x1xf32> -> vector<4x16x1xf32>
    %151 = vector.broadcast %150 : vector<4x16x1xf32> to vector<4x16x16xf32>
    %152 = arith.mulf %147, %151 : vector<4x16x16xf32>
    "tpu.trace_start"() <{level = 10 : i32, message = "bqk,bkd->bqd"}> : () -> ()
    %cst_64 = arith.constant dense<0.000000e+00> : vector<4x16x8xf32>
    %153 = tpu.matmul %152, %134, %cst_64 {dimension_numbers = #tpu.dot_dimension_numbers<[2], [1], [1], [2], [0, 0, 0, 1, 1, 2], [0], [0]>} : vector<4x16x16xf32>, vector<4x16x8xf32>, vector<4x16x8xf32> -> vector<4x16x8xf32>
    "tpu.trace_stop"() : () -> ()
    %154 = vector.shape_cast %153 : vector<4x16x8xf32> to vector<64x8xf32>
    %c3_65 = arith.constant 3 : index
    %c0_66 = arith.constant 0 : index
    %c0_67 = arith.constant 0 : index
    %155 = vector.load %arg10[%c3_65, %c0_66, %c0_67] : memref<4x8x32xf32, #tpu.memory_space<vmem>>, vector<1x8x32xf32>
    %156 = vector.shape_cast %155 : vector<1x8x32xf32> to vector<8x32xf32>
    %cst_68 = arith.constant dense<0.000000e+00> : vector<64x32xf32>
    %157 = tpu.matmul %154, %156, %cst_68 {dimension_numbers = #tpu.dot_dimension_numbers<[1], [0], [0], [1], [0, 0, 1, 1], [], []>} : vector<64x8xf32>, vector<8x32xf32>, vector<64x32xf32> -> vector<64x32xf32>
    %158 = arith.addf %128, %157 : vector<64x32xf32>
    %c0_69 = arith.constant 0 : index
    %c0_70 = arith.constant 0 : index
    %159 = vector.load %arg11[%c0_69, %c0_70] : memref<1x32xf32, #tpu.memory_space<vmem>>, vector<1x32xf32>
    %160 = vector.broadcast %159 : vector<1x32xf32> to vector<64x32xf32>
    %161 = arith.addf %158, %160 : vector<64x32xf32>
    %162 = arith.addf %161, %0 : vector<64x32xf32>
    %c0_71 = arith.constant 0 : index
    %c0_72 = arith.constant 0 : index
    %163 = vector.load %arg13[%c0_71, %c0_72] : memref<1x32xf32, #tpu.memory_space<vmem>>, vector<1x32xf32>
    %c0_73 = arith.constant 0 : index
    %c0_74 = arith.constant 0 : index
    %164 = vector.load %arg14[%c0_73, %c0_74] : memref<1x32xf32, #tpu.memory_space<vmem>>, vector<1x32xf32>
    %cst_75 = arith.constant dense<0.000000e+00> : vector<64xf32>
    %165 = vector.multi_reduction <add>, %162, %cst_75 [1] : vector<64x32xf32> to vector<64xf32>
    %166 = vector.shape_cast %165 : vector<64xf32> to vector<64x1xf32>
    %cst_76 = arith.constant 3.200000e+01 : f32
    %167 = vector.broadcast %cst_76 : f32 to vector<64x1xf32>
    %168 = arith.divf %166, %167 : vector<64x1xf32>
    %169 = vector.broadcast %168 : vector<64x1xf32> to vector<64x32xf32>
    %170 = arith.subf %162, %169 : vector<64x32xf32>
    %171 = arith.mulf %170, %170 : vector<64x32xf32>
    %cst_77 = arith.constant dense<0.000000e+00> : vector<64xf32>
    %172 = vector.multi_reduction <add>, %171, %cst_77 [1] : vector<64x32xf32> to vector<64xf32>
    %173 = vector.shape_cast %172 : vector<64xf32> to vector<64x1xf32>
    %cst_78 = arith.constant 3.200000e+01 : f32
    %174 = vector.broadcast %cst_78 : f32 to vector<64x1xf32>
    %175 = arith.divf %173, %174 : vector<64x1xf32>
    %176 = vector.broadcast %168 : vector<64x1xf32> to vector<64x32xf32>
    %177 = arith.subf %162, %176 : vector<64x32xf32>
    %cst_79 = arith.constant 9.99999974E-6 : f32
    %178 = vector.broadcast %cst_79 : f32 to vector<64x1xf32>
    %179 = arith.addf %175, %178 : vector<64x1xf32>
    %180 = math.rsqrt %179 : vector<64x1xf32>
    %181 = vector.broadcast %180 : vector<64x1xf32> to vector<64x32xf32>
    %182 = arith.mulf %177, %181 : vector<64x32xf32>
    %183 = vector.broadcast %163 : vector<1x32xf32> to vector<64x32xf32>
    %184 = arith.mulf %182, %183 : vector<64x32xf32>
    %185 = vector.broadcast %164 : vector<1x32xf32> to vector<64x32xf32>
    %186 = arith.addf %184, %185 : vector<64x32xf32>
    %c0_80 = arith.constant 0 : index
    %c0_81 = arith.constant 0 : index
    %187 = vector.load %arg15[%c0_80, %c0_81] : memref<32x128xf32, #tpu.memory_space<vmem>>, vector<32x128xf32>
    %cst_82 = arith.constant dense<0.000000e+00> : vector<64x128xf32>
    %188 = tpu.matmul %186, %187, %cst_82 {dimension_numbers = #tpu.dot_dimension_numbers<[1], [0], [0], [1], [0, 0, 1, 1], [], []>} : vector<64x32xf32>, vector<32x128xf32>, vector<64x128xf32> -> vector<64x128xf32>
    %c0_83 = arith.constant 0 : index
    %c0_84 = arith.constant 0 : index
    %189 = vector.load %arg16[%c0_83, %c0_84] : memref<1x128xf32, #tpu.memory_space<vmem>>, vector<1x128xf32>
    %190 = vector.broadcast %189 : vector<1x128xf32> to vector<64x128xf32>
    %191 = arith.addf %188, %190 : vector<64x128xf32>
    %cst_85 = arith.constant 5.000000e-01 : f32
    %192 = vector.broadcast %cst_85 : f32 to vector<64x128xf32>
    %193 = arith.mulf %192, %191 : vector<64x128xf32>
    %cst_86 = arith.constant 0.707106769 : f32
    %194 = vector.broadcast %cst_86 : f32 to vector<64x128xf32>
    %195 = arith.mulf %191, %194 : vector<64x128xf32>
    %196 = math.absf %195 : vector<64x128xf32>
    %cst_87 = arith.constant 0.327591091 : f32
    %197 = vector.broadcast %cst_87 : f32 to vector<64x128xf32>
    %198 = arith.mulf %197, %196 : vector<64x128xf32>
    %cst_88 = arith.constant 1.000000e+00 : f32
    %199 = vector.broadcast %cst_88 : f32 to vector<64x128xf32>
    %200 = arith.addf %199, %198 : vector<64x128xf32>
    %cst_89 = arith.constant 1.000000e+00 : f32
    %201 = vector.broadcast %cst_89 : f32 to vector<64x128xf32>
    %202 = arith.divf %201, %200 : vector<64x128xf32>
    %cst_90 = arith.constant 1.06140542 : f32
    %203 = vector.broadcast %cst_90 : f32 to vector<64x128xf32>
    %204 = arith.mulf %203, %202 : vector<64x128xf32>
    %cst_91 = arith.constant -1.45315206 : f32
    %205 = vector.broadcast %cst_91 : f32 to vector<64x128xf32>
    %206 = arith.addf %204, %205 : vector<64x128xf32>
    %207 = arith.mulf %206, %202 : vector<64x128xf32>
    %cst_92 = arith.constant 1.42141378 : f32
    %208 = vector.broadcast %cst_92 : f32 to vector<64x128xf32>
    %209 = arith.addf %207, %208 : vector<64x128xf32>
    %210 = arith.mulf %209, %202 : vector<64x128xf32>
    %cst_93 = arith.constant -0.284496725 : f32
    %211 = vector.broadcast %cst_93 : f32 to vector<64x128xf32>
    %212 = arith.addf %210, %211 : vector<64x128xf32>
    %213 = arith.mulf %212, %202 : vector<64x128xf32>
    %cst_94 = arith.constant 0.254829586 : f32
    %214 = vector.broadcast %cst_94 : f32 to vector<64x128xf32>
    %215 = arith.addf %213, %214 : vector<64x128xf32>
    %216 = arith.mulf %215, %202 : vector<64x128xf32>
    %cst_95 = arith.constant 0.000000e+00 : f32
    %217 = vector.broadcast %cst_95 : f32 to vector<64x128xf32>
    %218 = arith.subf %217, %196 : vector<64x128xf32>
    %219 = arith.mulf %218, %196 : vector<64x128xf32>
    %220 = math.exp %219 : vector<64x128xf32>
    %221 = arith.mulf %216, %220 : vector<64x128xf32>
    %cst_96 = arith.constant 1.000000e+00 : f32
    %222 = vector.broadcast %cst_96 : f32 to vector<64x128xf32>
    %223 = arith.subf %222, %221 : vector<64x128xf32>
    %cst_97 = arith.constant 0.000000e+00 : f32
    %224 = vector.broadcast %cst_97 : f32 to vector<64x128xf32>
    %225 = arith.cmpf oge, %195, %224 : vector<64x128xf32>
    %cst_98 = arith.constant 0.000000e+00 : f32
    %226 = vector.broadcast %cst_98 : f32 to vector<64x128xf32>
    %227 = arith.subf %226, %223 : vector<64x128xf32>
    %228 = arith.select %225, %223, %227 : vector<64x128xi1>, vector<64x128xf32>
    %cst_99 = arith.constant 1.000000e+00 : f32
    %229 = vector.broadcast %cst_99 : f32 to vector<64x128xf32>
    %230 = arith.addf %229, %228 : vector<64x128xf32>
    %231 = arith.mulf %193, %230 : vector<64x128xf32>
    %c0_100 = arith.constant 0 : index
    %c0_101 = arith.constant 0 : index
    %232 = vector.load %arg17[%c0_100, %c0_101] : memref<128x32xf32, #tpu.memory_space<vmem>>, vector<128x32xf32>
    %cst_102 = arith.constant dense<0.000000e+00> : vector<64x32xf32>
    %233 = tpu.matmul %231, %232, %cst_102 {dimension_numbers = #tpu.dot_dimension_numbers<[1], [0], [0], [1], [0, 0, 1, 1], [], []>} : vector<64x128xf32>, vector<128x32xf32>, vector<64x32xf32> -> vector<64x32xf32>
    %c0_103 = arith.constant 0 : index
    %c0_104 = arith.constant 0 : index
    %234 = vector.load %arg18[%c0_103, %c0_104] : memref<1x32xf32, #tpu.memory_space<vmem>>, vector<1x32xf32>
    %235 = vector.broadcast %234 : vector<1x32xf32> to vector<64x32xf32>
    %236 = arith.addf %233, %235 : vector<64x32xf32>
    %237 = arith.addf %236, %162 : vector<64x32xf32>
    %c0_105 = arith.constant 0 : index
    %c0_106 = arith.constant 0 : index
    %238 = vector.load %arg19[%c0_105, %c0_106] : memref<64x32xf32, #tpu.memory_space<vmem>>, vector<64x32xf32>
    tpu.vector_store %arg19[%c0_105, %c0_106], %237 {strides = array<i32>} : memref<64x32xf32, #tpu.memory_space<vmem>>, vector<64x32xf32>,
    return
  }
  func.func @transform_0(%arg0: i32) -> (i32, i32) {
    %c0_i32 = arith.constant 0 : i32
    %c0_i32_0 = arith.constant 0 : i32
    return %arg0, %c0_i32 : i32, i32
  }
  func.func @transform_1(%arg0: i32) -> (i32, i32) {
    %c0_i32 = arith.constant 0 : i32
    %c0_i32_0 = arith.constant 0 : i32
    %c0_i32_1 = arith.constant 0 : i32
    return %c0_i32, %c0_i32_0 : i32, i32
  }
  func.func @transform_2(%arg0: i32) -> (i32, i32) {
    %c0_i32 = arith.constant 0 : i32
    %c0_i32_0 = arith.constant 0 : i32
    %c0_i32_1 = arith.constant 0 : i32
    return %c0_i32, %c0_i32_0 : i32, i32
  }
  func.func @transform_3(%arg0: i32) -> (i32, i32) {
    %c0_i32 = arith.constant 0 : i32
    %c0_i32_0 = arith.constant 0 : i32
    %c0_i32_1 = arith.constant 0 : i32
    return %c0_i32, %c0_i32_0 : i32, i32
  }
  func.func @transform_4(%arg0: i32) -> (i32, i32) {
    %c0_i32 = arith.constant 0 : i32
    %c0_i32_0 = arith.constant 0 : i32
    %c0_i32_1 = arith.constant 0 : i32
    return %c0_i32, %c0_i32_0 : i32, i32
  }
  func.func @transform_5(%arg0: i32) -> (i32, i32) {
    %c0_i32 = arith.constant 0 : i32
    %c0_i32_0 = arith.constant 0 : i32
    %c0_i32_1 = arith.constant 0 : i32
    return %c0_i32, %c0_i32_0 : i32, i32
  }
  func.func @transform_6(%arg0: i32) -> (i32, i32) {
    %c0_i32 = arith.constant 0 : i32
    %c0_i32_0 = arith.constant 0 : i32
    %c0_i32_1 = arith.constant 0 : i32
    return %c0_i32, %c0_i32_0 : i32, i32
  }
  func.func @transform_7(%arg0: i32) -> (i32, i32) {
    %c0_i32 = arith.constant 0 : i32
    %c0_i32_0 = arith.constant 0 : i32
    %c0_i32_1 = arith.constant 0 : i32
    return %c0_i32, %c0_i32_0 : i32, i32
  }
  func.func @transform_8(%arg0: i32) -> (i32, i32) {
    %c0_i32 = arith.constant 0 : i32
    %c0_i32_0 = arith.constant 0 : i32
    %c0_i32_1 = arith.constant 0 : i32
    return %c0_i32, %c0_i32_0 : i32, i32
  }
  func.func @transform_9(%arg0: i32) -> (i32, i32, i32) {
    %c0_i32 = arith.constant 0 : i32
    %c0_i32_0 = arith.constant 0 : i32
    %c0_i32_1 = arith.constant 0 : i32
    %c0_i32_2 = arith.constant 0 : i32
    return %c0_i32, %c0_i32_0, %c0_i32_1 : i32, i32, i32
  }
  func.func @transform_10(%arg0: i32) -> (i32, i32) {
    %c0_i32 = arith.constant 0 : i32
    %c0_i32_0 = arith.constant 0 : i32
    %c0_i32_1 = arith.constant 0 : i32
    return %c0_i32, %c0_i32_0 : i32, i32
  }
  func.func @transform_11(%arg0: i32) -> (i32, i32, i32) {
    %c0_i32 = arith.constant 0 : i32
    %c0_i32_0 = arith.constant 0 : i32
    %c0_i32_1 = arith.constant 0 : i32
    %c0_i32_2 = arith.constant 0 : i32
    return %c0_i32, %c0_i32_0, %c0_i32_1 : i32, i32, i32
  }
  func.func @transform_12(%arg0: i32) -> (i32, i32) {
    %c0_i32 = arith.constant 0 : i32
    %c0_i32_0 = arith.constant 0 : i32
    %c0_i32_1 = arith.constant 0 : i32
    return %c0_i32, %c0_i32_0 : i32, i32
  }
  func.func @transform_13(%arg0: i32) -> (i32, i32) {
    %c0_i32 = arith.constant 0 : i32
    %c0_i32_0 = arith.constant 0 : i32
    %c0_i32_1 = arith.constant 0 : i32
    return %c0_i32, %c0_i32_0 : i32, i32
  }
  func.func @transform_14(%arg0: i32) -> (i32, i32) {
    %c0_i32 = arith.constant 0 : i32
    %c0_i32_0 = arith.constant 0 : i32
    %c0_i32_1 = arith.constant 0 : i32
    return %c0_i32, %c0_i32_0 : i32, i32
  }
  func.func @transform_15(%arg0: i32) -> (i32, i32) {
    %c0_i32 = arith.constant 0 : i32
    %c0_i32_0 = arith.constant 0 : i32
    %c0_i32_1 = arith.constant 0 : i32
    return %c0_i32, %c0_i32_0 : i32, i32
  }
  func.func @transform_16(%arg0: i32) -> (i32, i32) {
    %c0_i32 = arith.constant 0 : i32
    %c0_i32_0 = arith.constant 0 : i32
    %c0_i32_1 = arith.constant 0 : i32
    return %c0_i32, %c0_i32_0 : i32, i32
  }
  func.func @transform_17(%arg0: i32) -> (i32, i32) {
    %c0_i32 = arith.constant 0 : i32
    %c0_i32_0 = arith.constant 0 : i32
    %c0_i32_1 = arith.constant 0 : i32
    return %c0_i32, %c0_i32_0 : i32, i32
  }
  func.func @transform_18(%arg0: i32) -> (i32, i32) {
    %c0_i32 = arith.constant 0 : i32
    %c0_i32_0 = arith.constant 0 : i32
    return %arg0, %c0_i32 : i32, i32
  }
}

</mosaic_0001>

<llo_original>
// kernel: tpu_custom_call.1
$region0: #{tpu_custom_call.1}
  #allocation0 [shape = 'u32[]', space=smem, size = 0x4, offset = 0x4, fixed_abs, tag = 'smem constant byte address 0x4 - core index']
  #allocation1 [shape = 'u32[144,128]{1,0:T(1,128)}', space=vmem, size = 0x12000, scoped, tag = 'internal scratch']
  %s0 = inlined_call_operand.vmem [shape: f32[128,32], index: 0, kind: input, shape index: {}]
  %s1 = inlined_call_operand.vmem [shape: f32[1,32], index: 1, kind: input, shape index: {}]
  %s2 = inlined_call_operand.vmem [shape: f32[1,32], index: 2, kind: input, shape index: {}]
  %s3 = inlined_call_operand.vmem [shape: f32[32,32], index: 3, kind: input, shape index: {}]
  %s4 = inlined_call_operand.vmem [shape: f32[1,32], index: 4, kind: input, shape index: {}]
  %s5 = inlined_call_operand.vmem [shape: f32[32,32], index: 5, kind: input, shape index: {}]
  %s6 = inlined_call_operand.vmem [shape: f32[1,32], index: 6, kind: input, shape index: {}]
  %s7 = inlined_call_operand.vmem [shape: f32[32,32], index: 7, kind: input, shape index: {}]
  %s8 = inlined_call_operand.vmem [shape: f32[1,32], index: 8, kind: input, shape index: {}]
  %s9 = inlined_call_operand.vmem [shape: f32[4,8,32], index: 9, kind: input, shape index: {}]
  %s10 = inlined_call_operand.vmem [shape: f32[1,32], index: 10, kind: input, shape index: {}]
  %s11 = inlined_call_operand.vmem [shape: f32[4,16,16], index: 11, kind: input, shape index: {}]
  %s12 = inlined_call_operand.vmem [shape: f32[1,32], index: 12, kind: input, shape index: {}]
  %s13 = inlined_call_operand.vmem [shape: f32[1,32], index: 13, kind: input, shape index: {}]
  %s14 = inlined_call_operand.vmem [shape: f32[32,128], index: 14, kind: input, shape index: {}]
  %s15 = inlined_call_operand.vmem [shape: f32[1,128], index: 15, kind: input, shape index: {}]
  %s16 = inlined_call_operand.vmem [shape: f32[128,32], index: 16, kind: input, shape index: {}]
  %s17 = inlined_call_operand.vmem [shape: f32[1,32], index: 17, kind: input, shape index: {}]
  %s18 = inlined_call_operand.vmem [shape: f32[128,32], index: 18, kind: output, shape index: {}]
  %s19 = sld [smem:[#allocation0]]
  $region105: #{tpu_custom_call.1} parent=0
    _
  %s21 = ssub.s32 1, %s19
  %s22 = scalar_select 0, %s21, %s19
  loop: start=0, step=1, limit=4
  $region2: #{tpu_custom_call.1} parent=0 // loop_pre_header
    _
  $region3: #{tpu_custom_call.1} parent=0 // loop_header
    %s24 = sphi 0, %s28
    %p25 = scmp.ge.s32.totalorder %s24, 4
    %s34 = sphi 0, %s36
    %s37 = sphi 0, %s34
    %s38 = sphi 0, %s37
    %s54 = sphi 0, %s38
    %s58 = sphi 0, %s58
    %s60 = sphi 0, %s58
    %s61 = sphi 0, %s60
    %s75 = sphi 0, %s61
    %s79 = sphi 0, %s79
    %s81 = sphi 0, %s79
    %s82 = sphi 0, %s81
    %s96 = sphi 0, %s82
    %s100 = sphi 0, %s100
    %s102 = sphi 0, %s100
    %s103 = sphi 0, %s102
    %s117 = sphi 0, %s103
    %s121 = sphi 0, %s121
    %s123 = sphi 0, %s121
    %s124 = sphi 0, %s123
    %s138 = sphi 0, %s124
    %s142 = sphi 0, %s142
    %s144 = sphi 0, %s142
    %s145 = sphi 0, %s144
    %s159 = sphi 0, %s145
    %s163 = sphi 0, %s163
    %s165 = sphi 0, %s163
    %s166 = sphi 0, %s165
    %s180 = sphi 0, %s166
    %s184 = sphi 0, %s184
    %s186 = sphi 0, %s184
    %s187 = sphi 0, %s186
    %s201 = sphi 0, %s187
    %s205 = sphi 0, %s205
    %s207 = sphi 0, %s205
    %s208 = sphi 0, %s207
    %s222 = sphi 0, %s208
    %s226 = sphi 0, %s226
    %s228 = sphi 0, %s226
    %s229 = sphi 0, %s228
    %s243 = sphi 0, %s229
    %s247 = sphi 0, %s247
    %s249 = sphi 0, %s247
    %s250 = sphi 0, %s249
    %s264 = sphi 0, %s250
    %s268 = sphi 0, %s268
    %s270 = sphi 0, %s268
    %s271 = sphi 0, %s270
    %s285 = sphi 0, %s271
    %s289 = sphi 0, %s289
    %s291 = sphi 0, %s289
    %s292 = sphi 0, %s291
    %s306 = sphi 0, %s292
    %s310 = sphi 0, %s310
    %s312 = sphi 0, %s310
    %s313 = sphi 0, %s312
    %s327 = sphi 0, %s313
    %s331 = sphi 0, %s331
    %s333 = sphi 0, %s331
    %s334 = sphi 0, %s333
    %s348 = sphi 0, %s334
    %s352 = sphi 0, %s352
    %s354 = sphi 0, %s352
    %s355 = sphi 0, %s354
    %s369 = sphi 0, %s355
    %s373 = sphi 0, %s373
    %s375 = sphi 0, %s373
    %s376 = sphi 0, %s375
    %s390 = sphi 0, %s376
    %s394 = sphi 0, %s394
    %s396 = sphi 0, %s394
    %s397 = sphi 0, %s396
    %s411 = sphi 0, %s397
    %s417 = sphi 0, %s419
    %s420 = sphi 0, %s417
    %s421 = sphi 0, %s420
    %s437 = sphi 0, %s421
  $region4: #{tpu_custom_call.1} parent=0 // loop_header_branch
    %27 = sbr.rel (%p25) target = $region8
  $region5: #{tpu_custom_call.1} parent=0 // loop_body
    %s29 = ssub.s32 %s24, 1
    %s30 = ssub.s32 %s24, 2
    %s31 = sadd.s32 %s24, 1
    %s32 = ssub.s32 %s24, %s31
    %p33 = scmp.eq.s32.totalorder %s32, 0
    %s35 = sadd.s32 %s34, 1
    %s36 = scalar_select %p33, %s34, %s35
    %p39 = pneg %p33
    %p40 = scmp.eq.s32.totalorder %s24, 1
    %p41 = por %p39, %p40
    %p42 = scmp.ne.s32.totalorder %s34, %s37
    %p43 = scmp.eq.s32.totalorder %s24, 0
    %p44 = por %p42, %p43
    %p45 = scmp.ne.s32.totalorder %s34, %s37
    %p46 = scmp.eq.s32.totalorder %s29, 1
    %p47 = por %p45, %p46
    %p48 = scmp.ne.s32.totalorder %s37, %s38
    %p49 = scmp.eq.s32.totalorder %s29, 0
    %p50 = por %p48, %p49
    %p51 = scmp.ne.s32.totalorder %s37, %s38
    %p52 = scmp.eq.s32.totalorder %s30, 1
    %p53 = por %p51, %p52
    %p55 = scmp.ne.s32.totalorder %s38, %s54
    %p56 = scmp.eq.s32.totalorder %s30, 0
    %p57 = por %p55, %p56
    %s59 = sadd.s32 %s58, 1
    %p62 = scmp.eq.s32.totalorder %s24, 1
    %p63 = scmp.ne.s32.totalorder %s58, %s60
    %p64 = scmp.eq.s32.totalorder %s24, 0
    %p65 = por %p63, %p64
    %p66 = scmp.ne.s32.totalorder %s58, %s60
    %p67 = scmp.eq.s32.totalorder %s29, 1
    %p68 = por %p66, %p67
    %p69 = scmp.ne.s32.totalorder %s60, %s61
    %p70 = scmp.eq.s32.totalorder %s29, 0
    %p71 = por %p69, %p70
    %p72 = scmp.ne.s32.totalorder %s60, %s61
    %p73 = scmp.eq.s32.totalorder %s30, 1
    %p74 = por %p72, %p73
    %p76 = scmp.ne.s32.totalorder %s61, %s75
    %p77 = scmp.eq.s32.totalorder %s30, 0
    %p78 = por %p76, %p77
    %s80 = sadd.s32 %s79, 1
    %p83 = scmp.eq.s32.totalorder %s24, 1
    %p84 = scmp.ne.s32.totalorder %s79, %s81
    %p85 = scmp.eq.s32.totalorder %s24, 0
    %p86 = por %p84, %p85
    %p87 = scmp.ne.s32.totalorder %s79, %s81
    %p88 = scmp.eq.s32.totalorder %s29, 1
    %p89 = por %p87, %p88
    %p90 = scmp.ne.s32.totalorder %s81, %s82
    %p91 = scmp.eq.s32.totalorder %s29, 0
    %p92 = por %p90, %p91
    %p93 = scmp.ne.s32.totalorder %s81, %s82
    %p94 = scmp.eq.s32.totalorder %s30, 1
    %p95 = por %p93, %p94
    %p97 = scmp.ne.s32.totalorder %s82, %s96
    %p98 = scmp.eq.s32.totalorder %s30, 0
    %p99 = por %p97, %p98
    %s101 = sadd.s32 %s100, 1
    %p104 = scmp.eq.s32.totalorder %s24, 1
    %p105 = scmp.ne.s32.totalorder %s100, %s102
    %p106 = scmp.eq.s32.totalorder %s24, 0
    %p107 = por %p105, %p106
    %p108 = scmp.ne.s32.totalorder %s100, %s102
    %p109 = scmp.eq.s32.totalorder %s29, 1
    %p110 = por %p108, %p109
    %p111 = scmp.ne.s32.totalorder %s102, %s103
    %p112 = scmp.eq.s32.totalorder %s29, 0
    %p113 = por %p111, %p112
    %p114 = scmp.ne.s32.totalorder %s102, %s103
    %p115 = scmp.eq.s32.totalorder %s30, 1
    %p116 = por %p114, %p115
    %p118 = scmp.ne.s32.totalorder %s103, %s117
    %p119 = scmp.eq.s32.totalorder %s30, 0
    %p120 = por %p118, %p119
    %s122 = sadd.s32 %s121, 1
    %p125 = scmp.eq.s32.totalorder %s24, 1
    %p126 = scmp.ne.s32.totalorder %s121, %s123
    %p127 = scmp.eq.s32.totalorder %s24, 0
    %p128 = por %p126, %p127
    %p129 = scmp.ne.s32.totalorder %s121, %s123
    %p130 = scmp.eq.s32.totalorder %s29, 1
    %p131 = por %p129, %p130
    %p132 = scmp.ne.s32.totalorder %s123, %s124
    %p133 = scmp.eq.s32.totalorder %s29, 0
    %p134 = por %p132, %p133
    %p135 = scmp.ne.s32.totalorder %s123, %s124
    %p136 = scmp.eq.s32.totalorder %s30, 1
    %p137 = por %p135, %p136
    %p139 = scmp.ne.s32.totalorder %s124, %s138
    %p140 = scmp.eq.s32.totalorder %s30, 0
    %p141 = por %p139, %p140
    %s143 = sadd.s32 %s142, 1
    %p146 = scmp.eq.s32.totalorder %s24, 1
    %p147 = scmp.ne.s32.totalorder %s142, %s144
    %p148 = scmp.eq.s32.totalorder %s24, 0
    %p149 = por %p147, %p148
    %p150 = scmp.ne.s32.totalorder %s142, %s144
    %p151 = scmp.eq.s32.totalorder %s29, 1
    %p152 = por %p150, %p151
    %p153 = scmp.ne.s32.totalorder %s144, %s145
    %p154 = scmp.eq.s32.totalorder %s29, 0
    %p155 = por %p153, %p154
    %p156 = scmp.ne.s32.totalorder %s144, %s145
    %p157 = scmp.eq.s32.totalorder %s30, 1
    %p158 = por %p156, %p157
    %p160 = scmp.ne.s32.totalorder %s145, %s159
    %p161 = scmp.eq.s32.totalorder %s30, 0
    %p162 = por %p160, %p161
    %s164 = sadd.s32 %s163, 1
    %p167 = scmp.eq.s32.totalorder %s24, 1
    %p168 = scmp.ne.s32.totalorder %s163, %s165
    %p169 = scmp.eq.s32.totalorder %s24, 0
    %p170 = por %p168, %p169
    %p171 = scmp.ne.s32.totalorder %s163, %s165
    %p172 = scmp.eq.s32.totalorder %s29, 1
    %p173 = por %p171, %p172
    %p174 = scmp.ne.s32.totalorder %s165, %s166
    %p175 = scmp.eq.s32.totalorder %s29, 0
    %p176 = por %p174, %p175
    %p177 = scmp.ne.s32.totalorder %s165, %s166
    %p178 = scmp.eq.s32.totalorder %s30, 1
    %p179 = por %p177, %p178
    %p181 = scmp.ne.s32.totalorder %s166, %s180
    %p182 = scmp.eq.s32.totalorder %s30, 0
    %p183 = por %p181, %p182
    %s185 = sadd.s32 %s184, 1
    %p188 = scmp.eq.s32.totalorder %s24, 1
    %p189 = scmp.ne.s32.totalorder %s184, %s186
    %p190 = scmp.eq.s32.totalorder %s24, 0
    %p191 = por %p189, %p190
    %p192 = scmp.ne.s32.totalorder %s184, %s186
    %p193 = scmp.eq.s32.totalorder %s29, 1
    %p194 = por %p192, %p193
    %p195 = scmp.ne.s32.totalorder %s186, %s187
    %p196 = scmp.eq.s32.totalorder %s29, 0
    %p197 = por %p195, %p196
    %p198 = scmp.ne.s32.totalorder %s186, %s187
    %p199 = scmp.eq.s32.totalorder %s30, 1
    %p200 = por %p198, %p199
    %p202 = scmp.ne.s32.totalorder %s187, %s201
    %p203 = scmp.eq.s32.totalorder %s30, 0
    %p204 = por %p202, %p203
    %s206 = sadd.s32 %s205, 1
    %p209 = scmp.eq.s32.totalorder %s24, 1
    %p210 = scmp.ne.s32.totalorder %s205, %s207
    %p211 = scmp.eq.s32.totalorder %s24, 0
    %p212 = por %p210, %p211
    %p213 = scmp.ne.s32.totalorder %s205, %s207
    %p214 = scmp.eq.s32.totalorder %s29, 1
    %p215 = por %p213, %p214
    %p216 = scmp.ne.s32.totalorder %s207, %s208
    %p217 = scmp.eq.s32.totalorder %s29, 0
    %p218 = por %p216, %p217
    %p219 = scmp.ne.s32.totalorder %s207, %s208
    %p220 = scmp.eq.s32.totalorder %s30, 1
    %p221 = por %p219, %p220
    %p223 = scmp.ne.s32.totalorder %s208, %s222
    %p224 = scmp.eq.s32.totalorder %s30, 0
    %p225 = por %p223, %p224
    %s227 = sadd.s32 %s226, 1
    %p230 = scmp.eq.s32.totalorder %s24, 1
    %p231 = scmp.ne.s32.totalorder %s226, %s228
    %p232 = scmp.eq.s32.totalorder %s24, 0
    %p233 = por %p231, %p232
    %p234 = scmp.ne.s32.totalorder %s226, %s228
    %p235 = scmp.eq.s32.totalorder %s29, 1
    %p236 = por %p234, %p235
    %p237 = scmp.ne.s32.totalorder %s228, %s229
    %p238 = scmp.eq.s32.totalorder %s29, 0
    %p239 = por %p237, %p238
    %p240 = scmp.ne.s32.totalorder %s228, %s229
    %p241 = scmp.eq.s32.totalorder %s30, 1
    %p242 = por %p240, %p241
    %p244 = scmp.ne.s32.totalorder %s229, %s243
    %p245 = scmp.eq.s32.totalorder %s30, 0
    %p246 = por %p244, %p245
    %s248 = sadd.s32 %s247, 1
    %p251 = scmp.eq.s32.totalorder %s24, 1
    %p252 = scmp.ne.s32.totalorder %s247, %s249
    %p253 = scmp.eq.s32.totalorder %s24, 0
    %p254 = por %p252, %p253
    %p255 = scmp.ne.s32.totalorder %s247, %s249
    %p256 = scmp.eq.s32.totalorder %s29, 1
    %p257 = por %p255, %p256
    %p258 = scmp.ne.s32.totalorder %s249, %s250
    %p259 = scmp.eq.s32.totalorder %s29, 0
    %p260 = por %p258, %p259
    %p261 = scmp.ne.s32.totalorder %s249, %s250
    %p262 = scmp.eq.s32.totalorder %s30, 1
    %p263 = por %p261, %p262
    %p265 = scmp.ne.s32.totalorder %s250, %s264
    %p266 = scmp.eq.s32.totalorder %s30, 0
    %p267 = por %p265, %p266
    %s269 = sadd.s32 %s268, 1
    %p272 = scmp.eq.s32.totalorder %s24, 1
    %p273 = scmp.ne.s32.totalorder %s268, %s270
    %p274 = scmp.eq.s32.totalorder %s24, 0
    %p275 = por %p273, %p274
    %p276 = scmp.ne.s32.totalorder %s268, %s270
    %p277 = scmp.eq.s32.totalorder %s29, 1
    %p278 = por %p276, %p277
    %p279 = scmp.ne.s32.totalorder %s270, %s271
    %p280 = scmp.eq.s32.totalorder %s29, 0
    %p281 = por %p279, %p280
    %p282 = scmp.ne.s32.totalorder %s270, %s271
    %p283 = scmp.eq.s32.totalorder %s30, 1
    %p284 = por %p282, %p283
    %p286 = scmp.ne.s32.totalorder %s271, %s285
    %p287 = scmp.eq.s32.totalorder %s30, 0
    %p288 = por %p286, %p287
    %s290 = sadd.s32 %s289, 1
    %p293 = scmp.eq.s32.totalorder %s24, 1
    %p294 = scmp.ne.s32.totalorder %s289, %s291
    %p295 = scmp.eq.s32.totalorder %s24, 0
    %p296 = por %p294, %p295
    %p297 = scmp.ne.s32.totalorder %s289, %s291
    %p298 = scmp.eq.s32.totalorder %s29, 1
    %p299 = por %p297, %p298
    %p300 = scmp.ne.s32.totalorder %s291, %s292
    %p301 = scmp.eq.s32.totalorder %s29, 0
    %p302 = por %p300, %p301
    %p303 = scmp.ne.s32.totalorder %s291, %s292
    %p304 = scmp.eq.s32.totalorder %s30, 1
    %p305 = por %p303, %p304
    %p307 = scmp.ne.s32.totalorder %s292, %s306
    %p308 = scmp.eq.s32.totalorder %s30, 0
    %p309 = por %p307, %p308
    %s311 = sadd.s32 %s310, 1
    %p314 = scmp.eq.s32.totalorder %s24, 1
    %p315 = scmp.ne.s32.totalorder %s310, %s312
    %p316 = scmp.eq.s32.totalorder %s24, 0
    %p317 = por %p315, %p316
    %p318 = scmp.ne.s32.totalorder %s310, %s312
    %p319 = scmp.eq.s32.totalorder %s29, 1
    %p320 = por %p318, %p319
    %p321 = scmp.ne.s32.totalorder %s312, %s313
    %p322 = scmp.eq.s32.totalorder %s29, 0
    %p323 = por %p321, %p322
    %p324 = scmp.ne.s32.totalorder %s312, %s313
    %p325 = scmp.eq.s32.totalorder %s30, 1
    %p326 = por %p324, %p325
    %p328 = scmp.ne.s32.totalorder %s313, %s327
    %p329 = scmp.eq.s32.totalorder %s30, 0
    %p330 = por %p328, %p329
    %s332 = sadd.s32 %s331, 1
    %p335 = scmp.eq.s32.totalorder %s24, 1
    %p336 = scmp.ne.s32.totalorder %s331, %s333
    %p337 = scmp.eq.s32.totalorder %s24, 0
    %p338 = por %p336, %p337
    %p339 = scmp.ne.s32.totalorder %s331, %s333
    %p340 = scmp.eq.s32.totalorder %s29, 1
    %p341 = por %p339, %p340
    %p342 = scmp.ne.s32.totalorder %s333, %s334
    %p343 = scmp.eq.s32.totalorder %s29, 0
    %p344 = por %p342, %p343
    %p345 = scmp.ne.s32.totalorder %s333, %s334
    %p346 = scmp.eq.s32.totalorder %s30, 1
    %p347 = por %p345, %p346
    %p349 = scmp.ne.s32.totalorder %s334, %s348
    %p350 = scmp.eq.s32.totalorder %s30, 0
    %p351 = por %p349, %p350
    %s353 = sadd.s32 %s352, 1
    %p356 = scmp.eq.s32.totalorder %s24, 1
    %p357 = scmp.ne.s32.totalorder %s352, %s354
    %p358 = scmp.eq.s32.totalorder %s24, 0
    %p359 = por %p357, %p358
    %p360 = scmp.ne.s32.totalorder %s352, %s354
    %p361 = scmp.eq.s32.totalorder %s29, 1
    %p362 = por %p360, %p361
    %p363 = scmp.ne.s32.totalorder %s354, %s355
    %p364 = scmp.eq.s32.totalorder %s29, 0
    %p365 = por %p363, %p364
    %p366 = scmp.ne.s32.totalorder %s354, %s355
    %p367 = scmp.eq.s32.totalorder %s30, 1
    %p368 = por %p366, %p367
    %p370 = scmp.ne.s32.totalorder %s355, %s369
    %p371 = scmp.eq.s32.totalorder %s30, 0
    %p372 = por %p370, %p371
    %s374 = sadd.s32 %s373, 1
    %p377 = scmp.eq.s32.totalorder %s24, 1
    %p378 = scmp.ne.s32.totalorder %s373, %s375
    %p379 = scmp.eq.s32.totalorder %s24, 0
    %p380 = por %p378, %p379
    %p381 = scmp.ne.s32.totalorder %s373, %s375
    %p382 = scmp.eq.s32.totalorder %s29, 1
    %p383 = por %p381, %p382
    %p384 = scmp.ne.s32.totalorder %s375, %s376
    %p385 = scmp.eq.s32.totalorder %s29, 0
    %p386 = por %p384, %p385
    %p387 = scmp.ne.s32.totalorder %s375, %s376
    %p388 = scmp.eq.s32.totalorder %s30, 1
    %p389 = por %p387, %p388
    %p391 = scmp.ne.s32.totalorder %s376, %s390
    %p392 = scmp.eq.s32.totalorder %s30, 0
    %p393 = por %p391, %p392
    %s395 = sadd.s32 %s394, 1
    %p398 = scmp.eq.s32.totalorder %s24, 1
    %p399 = scmp.ne.s32.totalorder %s394, %s396
    %p400 = scmp.eq.s32.totalorder %s24, 0
    %p401 = por %p399, %p400
    %p402 = scmp.ne.s32.totalorder %s394, %s396
    %p403 = scmp.eq.s32.totalorder %s29, 1
    %p404 = por %p402, %p403
    %p405 = scmp.ne.s32.totalorder %s396, %s397
    %p406 = scmp.eq.s32.totalorder %s29, 0
    %p407 = por %p405, %p406
    %p408 = scmp.ne.s32.totalorder %s396, %s397
    %p409 = scmp.eq.s32.totalorder %s30, 1
    %p410 = por %p408, %p409
    %p412 = scmp.ne.s32.totalorder %s397, %s411
    %p413 = scmp.eq.s32.totalorder %s30, 0
    %p414 = por %p412, %p413
    %s415 = ssub.s32 %s24, %s31
    %p416 = scmp.eq.s32.totalorder %s415, 0
    %s418 = sadd.s32 %s417, 1
    %s419 = scalar_select %p416, %s417, %s418
    %p422 = pneg %p416
    %p423 = scmp.eq.s32.totalorder %s24, 1
    %p424 = por %p422, %p423
    %p425 = scmp.ne.s32.totalorder %s417, %s420
    %p426 = scmp.eq.s32.totalorder %s24, 0
    %p427 = por %p425, %p426
    %p428 = scmp.ne.s32.totalorder %s417, %s420
    %p429 = scmp.eq.s32.totalorder %s29, 1
    %p430 = por %p428, %p429
    %p431 = scmp.ne.s32.totalorder %s420, %s421
    %p432 = scmp.eq.s32.totalorder %s29, 0
    %p433 = por %p431, %p432
    %p434 = scmp.ne.s32.totalorder %s420, %s421
    %p435 = scmp.eq.s32.totalorder %s30, 1
    %p436 = por %p434, %p435
    %p438 = scmp.ne.s32.totalorder %s421, %s437
    %p439 = scmp.eq.s32.totalorder %s30, 0
    %p440 = por %p438, %p439
    %p441 = scmp.le.s32.totalorder 1, %s24
    %p442 = scmp.lt.s32.totalorder %s24, 3
    %p443 = pnand %p441, %p442
    %p444 = pneg %p443
    // Predicated region
    $region9: #{tpu_custom_call.1} parent=5 // pred_check
      _
    $region10: #{tpu_custom_call.1} parent=5 // pred_check_branch
      %446 = sbr.rel (%p443) target = $region12
    $region11: #{tpu_custom_call.1} parent=5 // pred_region
      %s447 = ssub.s32 %s24, 1
      // Predicated region
      $region13: #{tpu_custom_call.1} parent=11 // pred_check
        %p448 = pneg %p71
      $region14: #{tpu_custom_call.1} parent=11 // pred_check_branch
        %450 = sbr.rel (%p448) target = $region16
      $region15: #{tpu_custom_call.1} parent=11 // pred_region
        _
      $region16: #{tpu_custom_call.1} parent=11 // pred_fallthru
        _
      // Predicated region
      $region17: #{tpu_custom_call.1} parent=11 // pred_check
        %p451 = pneg %p92
      $region18: #{tpu_custom_call.1} parent=11 // pred_check_branch
        %453 = sbr.rel (%p451) target = $region20
      $region19: #{tpu_custom_call.1} parent=11 // pred_region
        _
      $region20: #{tpu_custom_call.1} parent=11 // pred_fallthru
        _
      // Predicated region
      $region21: #{tpu_custom_call.1} parent=11 // pred_check
        %p454 = pneg %p113
      $region22: #{tpu_custom_call.1} parent=11 // pred_check_branch
        %456 = sbr.rel (%p454) target = $region24
      $region23: #{tpu_custom_call.1} parent=11 // pred_region
        _
      $region24: #{tpu_custom_call.1} parent=11 // pred_fallthru
        _
      // Predicated region
      $region25: #{tpu_custom_call.1} parent=11 // pred_check
        %p457 = pneg %p134
      $region26: #{tpu_custom_call.1} parent=11 // pred_check_branch
        %459 = sbr.rel (%p457) target = $region28
      $region27: #{tpu_custom_call.1} parent=11 // pred_region
        _
      $region28: #{tpu_custom_call.1} parent=11 // pred_fallthru
        _
      // Predicated region
      $region29: #{tpu_custom_call.1} parent=11 // pred_check
        %p460 = pneg %p155
      $region30: #{tpu_custom_call.1} parent=11 // pred_check_branch
        %462 = sbr.rel (%p460) target = $region32
      $region31: #{tpu_custom_call.1} parent=11 // pred_region
        _
      $region32: #{tpu_custom_call.1} parent=11 // pred_fallthru
        _
      // Predicated region
      $region33: #{tpu_custom_call.1} parent=11 // pred_check
        %p463 = pneg %p176
      $region34: #{tpu_custom_call.1} parent=11 // pred_check_branch
        %465 = sbr.rel (%p463) target = $region36
      $region35: #{tpu_custom_call.1} parent=11 // pred_region
        _
      $region36: #{tpu_custom_call.1} parent=11 // pred_fallthru
        _
      // Predicated region
      $region37: #{tpu_custom_call.1} parent=11 // pred_check
        %p466 = pneg %p197
      $region38: #{tpu_custom_call.1} parent=11 // pred_check_branch
        %468 = sbr.rel (%p466) target = $region40
      $region39: #{tpu_custom_call.1} parent=11 // pred_region
        _
      $region40: #{tpu_custom_call.1} parent=11 // pred_fallthru
        _
      // Predicated region
      $region41: #{tpu_custom_call.1} parent=11 // pred_check
        %p469 = pneg %p218
      $region42: #{tpu_custom_call.1} parent=11 // pred_check_branch
        %471 = sbr.rel (%p469) target = $region44
      $region43: #{tpu_custom_call.1} parent=11 // pred_region
        _
      $region44: #{tpu_custom_call.1} parent=11 // pred_fallthru
        _
      // Predicated region
      $region45: #{tpu_custom_call.1} parent=11 // pred_check
        %p472 = pneg %p239
      $region46: #{tpu_custom_call.1} parent=11 // pred_check_branch
        %474 = sbr.rel (%p472) target = $region48
      $region47: #{tpu_custom_call.1} parent=11 // pred_region
        _
      $region48: #{tpu_custom_call.1} parent=11 // pred_fallthru
        _
      // Predicated region
      $region49: #{tpu_custom_call.1} parent=11 // pred_check
        %p475 = pneg %p260
      $region50: #{tpu_custom_call.1} parent=11 // pred_check_branch
        %477 = sbr.rel (%p475) target = $region52
      $region51: #{tpu_custom_call.1} parent=11 // pred_region
        _
      $region52: #{tpu_custom_call.1} parent=11 // pred_fallthru
        _
      // Predicated region
      $region53: #{tpu_custom_call.1} parent=11 // pred_check
        %p478 = pneg %p281
      $region54: #{tpu_custom_call.1} parent=11 // pred_check_branch
        %480 = sbr.rel (%p478) target = $region56
      $region55: #{tpu_custom_call.1} parent=11 // pred_region
        _
      $region56: #{tpu_custom_call.1} parent=11 // pred_fallthru
        _
      // Predicated region
      $region57: #{tpu_custom_call.1} parent=11 // pred_check
        %p481 = pneg %p302
      $region58: #{tpu_custom_call.1} parent=11 // pred_check_branch
        %483 = sbr.rel (%p481) target = $region60
      $region59: #{tpu_custom_call.1} parent=11 // pred_region
        _
      $region60: #{tpu_custom_call.1} parent=11 // pred_fallthru
        _
      // Predicated region
      $region61: #{tpu_custom_call.1} parent=11 // pred_check
        %p484 = pneg %p323
      $region62: #{tpu_custom_call.1} parent=11 // pred_check_branch
        %486 = sbr.rel (%p484) target = $region64
      $region63: #{tpu_custom_call.1} parent=11 // pred_region
        _
      $region64: #{tpu_custom_call.1} parent=11 // pred_fallthru
        _
      // Predicated region
      $region65: #{tpu_custom_call.1} parent=11 // pred_check
        %p487 = pneg %p344
      $region66: #{tpu_custom_call.1} parent=11 // pred_check_branch
        %489 = sbr.rel (%p487) target = $region68
      $region67: #{tpu_custom_call.1} parent=11 // pred_region
        _
      $region68: #{tpu_custom_call.1} parent=11 // pred_fallthru
        _
      // Predicated region
      $region69: #{tpu_custom_call.1} parent=11 // pred_check
        %p490 = pneg %p365
      $region70: #{tpu_custom_call.1} parent=11 // pred_check_branch
        %492 = sbr.rel (%p490) target = $region72
      $region71: #{tpu_custom_call.1} parent=11 // pred_region
        _
      $region72: #{tpu_custom_call.1} parent=11 // pred_fallthru
        _
      // Predicated region
      $region73: #{tpu_custom_call.1} parent=11 // pred_check
        %p493 = pneg %p386
      $region74: #{tpu_custom_call.1} parent=11 // pred_check_branch
        %495 = sbr.rel (%p493) target = $region76
      $region75: #{tpu_custom_call.1} parent=11 // pred_region
        _
      $region76: #{tpu_custom_call.1} parent=11 // pred_fallthru
        _
      // Predicated region
      $region77: #{tpu_custom_call.1} parent=11 // pred_check
        %p496 = pneg %p407
      $region78: #{tpu_custom_call.1} parent=11 // pred_check_branch
        %498 = sbr.rel (%p496) target = $region80
      $region79: #{tpu_custom_call.1} parent=11 // pred_region
        _
      $region80: #{tpu_custom_call.1} parent=11 // pred_fallthru
        _
    $region12: #{tpu_custom_call.1} parent=5 // pred_fallthru
      _
    %p499 = scmp.lt.s32.totalorder %s24, 2
    // Predicated region
    $region81: #{tpu_custom_call.1} parent=5 // pred_check
      %p500 = pneg %p499
    $region82: #{tpu_custom_call.1} parent=5 // pred_check_branch
      %502 = sbr.rel (%p500) target = $region84
    $region83: #{tpu_custom_call.1} parent=5 // pred_region
      // Predicated region
      $region85: #{tpu_custom_call.1} parent=83 // pred_check
        %p503 = pneg %p44
      $region86: #{tpu_custom_call.1} parent=83 // pred_check_branch
        %505 = sbr.rel (%p503) target = $region88
      $region87: #{tpu_custom_call.1} parent=83 // pred_region
        %s506 = smul.u32 8, %s24
        %p507 = scmp.lt.s32.totalorder %s506, 15
        %s508 = scalar_select %p507, %s506, 15
        %s509 = smul.addr %s508, 8
        %s510 = scalar_lea.vmem %s0, %s509
        %s511 = smul.u32 8, %s24
      $region88: #{tpu_custom_call.1} parent=83 // pred_fallthru
        _
    $region84: #{tpu_custom_call.1} parent=5 // pred_fallthru
      _
    %p512 = scmp.le.s32.totalorder 1, %s24
    %p513 = scmp.lt.s32.totalorder %s24, 3
    %p514 = pnand %p512, %p513
    %p515 = pneg %p514
    // Predicated region
    $region89: #{tpu_custom_call.1} parent=5 // pred_check
      _
    $region90: #{tpu_custom_call.1} parent=5 // pred_check_branch
      %517 = sbr.rel (%p514) target = $region92
    $region91: #{tpu_custom_call.1} parent=5 // pred_region
      %s518 = ssub.s32 %s24, 1
      %s519 = smul.u32 8, %s29
      %p520 = scmp.lt.s32.totalorder %s519, 15
      %s521 = scalar_select %p520, %s519, 15
      %s522 = smul.addr %s521, 8
      %s523 = scalar_lea.vmem %s0, %s522
      %p524 = pneg %p50
      %p525 = pneg %p47
      %p526 = pneg %p71
      %p527 = pneg %p68
      %p528 = pneg %p92
      %p529 = pneg %p89
      %p530 = pneg %p113
      %p531 = pneg %p110
      %p532 = pneg %p134
      %p533 = pneg %p131
      %p534 = pneg %p155
      %p535 = pneg %p152
      %p536 = pneg %p176
      %p537 = pneg %p173
      %p538 = pneg %p197
      %p539 = pneg %p194
      %p540 = pneg %p218
      %p541 = pneg %p215
      %p542 = pneg %p239
      %p543 = pneg %p236
      %p544 = pneg %p260
      %p545 = pneg %p257
      %p546 = pneg %p281
      %p547 = pneg %p278
      %p548 = pneg %p302
      %p549 = pneg %p299
      %p550 = pneg %p323
      %p551 = pneg %p320
      %p552 = pneg %p344
      %p553 = pneg %p341
      %p554 = pneg %p365
      %p555 = pneg %p362
      %p556 = pneg %p386
      %p557 = pneg %p383
      %p558 = pneg %p407
      %p559 = pneg %p404
      %p560 = pneg %p433
      %p561 = pneg %p430
      %s562 = smul.u32 8, %s29
      %p563 = scmp.lt.s32.totalorder %s562, 15
      %s564 = scalar_select %p563, %s562, 15
      %s565 = smul.addr %s564, 8
      %s566 = scalar_lea.vmem %s18, %s565
      %s567 = smul.u32 8, %s29
      %p568 = scmp.lt.s32.totalorder %s567, 15
      %s569 = scalar_select %p568, %s567, 15
      %s570 = smul.addr %s569, 8
      %s571 = scalar_lea.vmem %s0, %s570
      %s572 = smul.u32 8, %s29
      %s573 = smul.u32 8, %s29
      %p574 = scmp.lt.s32.totalorder %s573, 15
      %s575 = scalar_select %p574, %s573, 15
      %s576 = smul.addr %s575, 8
      %s577 = scalar_lea.vmem %s18, %s576
      %s578 = smul.u32 8, %s29
      %v579 = vld [vmem:[%s571] sm:$0xff]
      %v580 = vld [vmem:[%s571 + $0x8] sm:$0xff]
      %v581 = vld [vmem:[%s571 + $0x10] sm:$0xff]
      %v582 = vld [vmem:[%s571 + $0x18] sm:$0xff]
      %v583 = vld [vmem:[%s571 + $0x20] sm:$0xff]
      %v584 = vld [vmem:[%s571 + $0x28] sm:$0xff]
      %v585 = vld [vmem:[%s571 + $0x30] sm:$0xff]
      %v586 = vld [vmem:[%s571 + $0x38] sm:$0xff]
      %v587 = vld [vmem:[%s1] sm:$0x1]
      %v588 = vld [vmem:[%s2] sm:$0x1]
      %vm589 = vcmask 261120
      %v590 = vsel %vm589, %v579, 0.0
      %591 = vadd.xlane.f32.xlu0 %v590
      %v592 = vpop.xlane.xlu0 %591
      %v593 = vsel %vm589, %v580, 0.0
      %594 = vadd.xlane.f32.xlu0 %v593
      %v595 = vpop.xlane.xlu0 %594
      %v596 = vsel %vm589, %v581, 0.0
      %597 = vadd.xlane.f32.xlu0 %v596
      %v598 = vpop.xlane.xlu0 %597
      %v599 = vsel %vm589, %v582, 0.0
      %600 = vadd.xlane.f32.xlu0 %v599
      %v601 = vpop.xlane.xlu0 %600
      %v602 = vsel %vm589, %v583, 0.0
      %603 = vadd.xlane.f32.xlu0 %v602
      %v604 = vpop.xlane.xlu0 %603
      %v605 = vsel %vm589, %v584, 0.0
      %606 = vadd.xlane.f32.xlu0 %v605
      %v607 = vpop.xlane.xlu0 %606
      %v608 = vsel %vm589, %v585, 0.0
      %609 = vadd.xlane.f32.xlu0 %v608
      %v610 = vpop.xlane.xlu0 %609
      %v611 = vsel %vm589, %v586, 0.0
      %612 = vadd.xlane.f32.xlu0 %v611
      %v613 = vpop.xlane.xlu0 %612
      %v614 = vrcp.pop 32.0
      %v615 = vmul.f32 %v592, %v614
      %v616 = vmul.f32 %v595, %v614
      %v617 = vmul.f32 %v598, %v614
      %v618 = vmul.f32 %v601, %v614
      %v619 = vmul.f32 %v604, %v614
      %v620 = vmul.f32 %v607, %v614
      %v621 = vmul.f32 %v610, %v614
      %v622 = vmul.f32 %v613, %v614
      %v623 = vsub.f32 %v579, %v615
      %v624 = vsub.f32 %v580, %v616
      %v625 = vsub.f32 %v581, %v617
      %v626 = vsub.f32 %v582, %v618
      %v627 = vsub.f32 %v583, %v619
      %v628 = vsub.f32 %v584, %v620
      %v629 = vsub.f32 %v585, %v621
      %v630 = vsub.f32 %v586, %v622
      %v631 = vmul.f32 %v623, %v623
      %v632 = vmul.f32 %v624, %v624
      %v633 = vmul.f32 %v625, %v625
      %v634 = vmul.f32 %v626, %v626
      %v635 = vmul.f32 %v627, %v627
      %v636 = vmul.f32 %v628, %v628
      %v637 = vmul.f32 %v629, %v629
      %v638 = vmul.f32 %v630, %v630
      %v639 = vsel %vm589, %v631, 0.0
      %640 = vadd.xlane.f32.xlu0 %v639
      %v641 = vpop.xlane.xlu0 %640
      %v642 = vsel %vm589, %v632, 0.0
      %643 = vadd.xlane.f32.xlu0 %v642
      %v644 = vpop.xlane.xlu0 %643
      %v645 = vsel %vm589, %v633, 0.0
      %646 = vadd.xlane.f32.xlu0 %v645
      %v647 = vpop.xlane.xlu0 %646
      %v648 = vsel %vm589, %v634, 0.0
      %649 = vadd.xlane.f32.xlu0 %v648
      %v650 = vpop.xlane.xlu0 %649
      %v651 = vsel %vm589, %v635, 0.0
      %652 = vadd.xlane.f32.xlu0 %v651
      %v653 = vpop.xlane.xlu0 %652
      %v654 = vsel %vm589, %v636, 0.0
      %655 = vadd.xlane.f32.xlu0 %v654
      %v656 = vpop.xlane.xlu0 %655
      %v657 = vsel %vm589, %v637, 0.0
      %658 = vadd.xlane.f32.xlu0 %v657
      %v659 = vpop.xlane.xlu0 %658
      %v660 = vsel %vm589, %v638, 0.0
      %661 = vadd.xlane.f32.xlu0 %v660
      %v662 = vpop.xlane.xlu0 %661
      %v663 = vmul.f32 %v641, %v614
      %v664 = vmul.f32 %v644, %v614
      %v665 = vmul.f32 %v647, %v614
      %v666 = vmul.f32 %v650, %v614
      %v667 = vmul.f32 %v653, %v614
      %v668 = vmul.f32 %v656, %v614
      %v669 = vmul.f32 %v659, %v614
      %v670 = vmul.f32 %v662, %v614
      %v671 = vadd.f32 %v663, 1e-05
      %v672 = vadd.f32 %v664, 1e-05
      %v673 = vadd.f32 %v665, 1e-05
      %v674 = vadd.f32 %v666, 1e-05
      %v675 = vadd.f32 %v667, 1e-05
      %v676 = vadd.f32 %v668, 1e-05
      %v677 = vadd.f32 %v669, 1e-05
      %v678 = vadd.f32 %v670, 1e-05
      %v679 = vrsqrt.pop %v671
      %v680 = vrsqrt.pop %v672
      %v681 = vrsqrt.pop %v673
      %v682 = vrsqrt.pop %v674
      %v683 = vrsqrt.pop %v675
      %v684 = vrsqrt.pop %v676
      %v685 = vrsqrt.pop %v677
      %v686 = vrsqrt.pop %v678
      %v687 = vmul.f32 %v623, %v679
      %v688 = vmul.f32 %v624, %v680
      %v689 = vmul.f32 %v625, %v681
      %v690 = vmul.f32 %v626, %v682
      %v691 = vmul.f32 %v627, %v683
      %v692 = vmul.f32 %v628, %v684
      %v693 = vmul.f32 %v629, %v685
      %v694 = vmul.f32 %v630, %v686
      %v696 = vlaneseq
      %v697 = vshrl.u32 %v696, 7
      %v698 = vsub.s32 0, %v697
      %v699 = vrot.slane %v587, %v698
      %v701 = vmul.f32 %v687, %v699
      %v702 = vmul.f32 %v688, %v699
      %v703 = vmul.f32 %v689, %v699
      %v704 = vmul.f32 %v690, %v699
      %v705 = vmul.f32 %v691, %v699
      %v706 = vmul.f32 %v692, %v699
      %v707 = vmul.f32 %v693, %v699
      %v708 = vmul.f32 %v694, %v699
      %v710 = vlaneseq
      %v711 = vshrl.u32 %v710, 7
      %v712 = vsub.s32 0, %v711
      %v713 = vrot.slane %v588, %v712
      %v715 = vadd.f32 %v701, %v713
      %v716 = vadd.f32 %v702, %v713
      %v717 = vadd.f32 %v703, %v713
      %v718 = vadd.f32 %v704, %v713
      %v719 = vadd.f32 %v705, %v713
      %v720 = vadd.f32 %v706, %v713
      %v721 = vadd.f32 %v707, %v713
      %v722 = vadd.f32 %v708, %v713
      %v723 = vld [vmem:[%s3] sm:$0xff]
      %v724 = vld [vmem:[%s3 + $0x8] sm:$0xff]
      %v725 = vld [vmem:[%s3 + $0x10] sm:$0xff]
      %v726 = vld [vmem:[%s3 + $0x18] sm:$0xff]
      %v727 = vld [vmem:[%s4] sm:$0x1]
      %v729 = vlaneseq
      %v730 = vshrl.u32 %v729, 7
      %v731 = vsub.s32 0, %v730
      %v732 = vrot.slane %v727, %v731
      %v735 = vsel %vm589, %v715, 0
      %v738 = vsel %vm589, %v716, 0
      %v741 = vsel %vm589, %v717, 0
      %v744 = vsel %vm589, %v718, 0
      %v747 = vsel %vm589, %v719, 0
      %v750 = vsel %vm589, %v720, 0
      %v753 = vsel %vm589, %v721, 0
      %v756 = vsel %vm589, %v722, 0
      %758 = vmatprep.subr.mxu0 0.0
      %759 = vmatpush1.msra.mxu0 %v723
      %760 = vmatprep.subr.mxu0 0.0
      %761 = vmatpush1.msra.mxu0 %v724
      %762 = vmatprep.subr.mxu0 0.0
      %763 = vmatpush1.msra.mxu0 %v725
      %764 = vmatprep.subr.mxu0 0.0
      %765 = vmatpush1.msra.mxu0 %v726
      %766 = vmatprep.subr.mxu0 0.0
      %767 = vmatpush1.msra.mxu0 0.0
      %768 = vmatprep.subr.mxu0 0.0
      %769 = vmatpush1.msra.mxu0 0.0
      %770 = vmatprep.subr.mxu0 0.0
      %771 = vmatpush1.msra.mxu0 0.0
      %772 = vmatprep.subr.mxu0 0.0
      %773 = vmatpush1.msra.mxu0 0.0
      %774 = vmatprep.subr.mxu0 0.0
      %775 = vmatpush1.msra.mxu0 0.0
      %776 = vmatprep.subr.mxu0 0.0
      %777 = vmatpush1.msra.mxu0 0.0
      %778 = vmatprep.subr.mxu0 0.0
      %779 = vmatpush1.msra.mxu0 0.0
      %780 = vmatprep.subr.mxu0 0.0
      %781 = vmatpush1.msra.mxu0 0.0
      %782 = vmatprep.subr.mxu0 0.0
      %783 = vmatpush1.msra.mxu0 0.0
      %784 = vmatprep.subr.mxu0 0.0
      %785 = vmatpush1.msra.mxu0 0.0
      %786 = vmatprep.subr.mxu0 0.0
      %787 = vmatpush1.msra.mxu0 0.0
      %788 = vmatprep.subr.mxu0 0.0
      %789 = vmatpush1.msra.mxu0 0.0
      %790 = vmatprep.subr.mxu0 0.0
      %791 = vmatpush1.msra.mxu0 0.0
      %792 = vmatprep.subr.mxu0 0.0
      %793 = vmatpush1.msra.mxu0 0.0
      %794 = vmatprep.subr.mxu0 0.0
      %795 = vmatpush1.msra.mxu0 0.0
      %796 = vmatprep.subr.mxu0 0.0
      %797 = vmatpush1.msra.mxu0 0.0
      %798 = vmatprep.subr.mxu0 0.0
      %799 = vmatpush1.msra.mxu0 0.0
      %800 = vmatprep.subr.mxu0 0.0
      %801 = vmatpush1.msra.mxu0 0.0
      %802 = vmatprep.subr.mxu0 0.0
      %803 = vmatpush1.msra.mxu0 0.0
      %804 = vmatprep.subr.mxu0 0.0
      %805 = vmatpush1.msra.mxu0 0.0
      %806 = vmatprep.subr.mxu0 0.0
      %807 = vmatpush1.msra.mxu0 0.0
      %808 = vmatprep.subr.mxu0 0.0
      %809 = vmatpush1.msra.mxu0 0.0
      %810 = vmatprep.subr.mxu0 0.0
      %811 = vmatpush1.msra.mxu0 0.0
      %812 = vmatprep.subr.mxu0 0.0
      %813 = vmatpush1.msra.mxu0 0.0
      %814 = vmatprep.subr.mxu0 0.0
      %815 = vmatpush1.msra.mxu0 0.0
      %816 = vmatprep.subr.mxu0 0.0
      %817 = vmatpush1.msra.mxu0 0.0
      %818 = vmatprep.subr.mxu0 0.0
      %819 = vmatpush1.msra.mxu0 0.0
      %820 = vmatprep.subr.mxu0 0.0
      %821 = vmatpush1.msra.mxu0 0.0
      %822 = vmatprep.mubr.f32.mxu0 0.0
      %823 = vmatmul.mubr.f32.gmra.mrb[0].mxu0 %v735
      %v824 = vpop.f32.mrb[0].mxu0
      %v825 = vadd.f32 %v732, %v824
      %v826 = vpop.f32.mrb[0].mxu0
      %827 = vmatprep.mubr.f32.mxu0 0.0
      %828 = vmatmul.mubr.f32.gmra.mrb[0].mxu0 %v738
      %v829 = vpop.f32.mrb[0].mxu0
      %v830 = vadd.f32 %v732, %v829
      %v831 = vpop.f32.mrb[0].mxu0
      %832 = vmatprep.mubr.f32.mxu0 0.0
      %833 = vmatmul.mubr.f32.gmra.mrb[0].mxu0 %v741
      %v834 = vpop.f32.mrb[0].mxu0
      %v835 = vadd.f32 %v732, %v834
      %v836 = vpop.f32.mrb[0].mxu0
      %837 = vmatprep.mubr.f32.mxu0 0.0
      %838 = vmatmul.mubr.f32.gmra.mrb[0].mxu0 %v744
      %v839 = vpop.f32.mrb[0].mxu0
      %v840 = vadd.f32 %v732, %v839
      %v841 = vpop.f32.mrb[0].mxu0
      %842 = vmatprep.mubr.f32.mxu0 0.0
      %843 = vmatmul.mubr.f32.gmra.mrb[0].mxu0 %v747
      %v844 = vpop.f32.mrb[0].mxu0
      %v845 = vadd.f32 %v732, %v844
      %v846 = vpop.f32.mrb[0].mxu0
      %847 = vmatprep.mubr.f32.mxu0 0.0
      %848 = vmatmul.mubr.f32.gmra.mrb[0].mxu0 %v750
      %v849 = vpop.f32.mrb[0].mxu0
      %v850 = vadd.f32 %v732, %v849
      %v851 = vpop.f32.mrb[0].mxu0
      %852 = vmatprep.mubr.f32.mxu0 0.0
      %853 = vmatmul.mubr.f32.gmra.mrb[0].mxu0 %v753
      %v854 = vpop.f32.mrb[0].mxu0
      %v855 = vadd.f32 %v732, %v854
      %v856 = vpop.f32.mrb[0].mxu0
      %857 = vmatprep.mubr.f32.mxu0 0.0
      %858 = vmatmul.mubr.f32.gmra.mrb[0].mxu0 %v756
      %v859 = vpop.f32.mrb[0].mxu0
      %v860 = vadd.f32 %v732, %v859
      %v861 = vpop.f32.mrb[0].mxu0
      %862 = vdwg.mxu0
      %v863 = vld [vmem:[%s5] sm:$0xff]
      %v864 = vld [vmem:[%s5 + $0x8] sm:$0xff]
      %v865 = vld [vmem:[%s5 + $0x10] sm:$0xff]
      %v866 = vld [vmem:[%s5 + $0x18] sm:$0xff]
      %v867 = vld [vmem:[%s6] sm:$0x1]
      %v869 = vlaneseq
      %v870 = vshrl.u32 %v869, 7
      %v871 = vsub.s32 0, %v870
      %v872 = vrot.slane %v867, %v871
      %874 = vmatprep.subr.mxu0 0.0
      %875 = vmatpush1.msra.mxu0 %v863
      %876 = vmatprep.subr.mxu0 0.0
      %877 = vmatpush1.msra.mxu0 %v864
      %878 = vmatprep.subr.mxu0 0.0
      %879 = vmatpush1.msra.mxu0 %v865
      %880 = vmatprep.subr.mxu0 0.0
      %881 = vmatpush1.msra.mxu0 %v866
      %882 = vmatprep.subr.mxu0 0.0
      %883 = vmatpush1.msra.mxu0 0.0
      %884 = vmatprep.subr.mxu0 0.0
      %885 = vmatpush1.msra.mxu0 0.0
      %886 = vmatprep.subr.mxu0 0.0
      %887 = vmatpush1.msra.mxu0 0.0
      %888 = vmatprep.subr.mxu0 0.0
      %889 = vmatpush1.msra.mxu0 0.0
      %890 = vmatprep.subr.mxu0 0.0
      %891 = vmatpush1.msra.mxu0 0.0
      %892 = vmatprep.subr.mxu0 0.0
      %893 = vmatpush1.msra.mxu0 0.0
      %894 = vmatprep.subr.mxu0 0.0
      %895 = vmatpush1.msra.mxu0 0.0
      %896 = vmatprep.subr.mxu0 0.0
      %897 = vmatpush1.msra.mxu0 0.0
      %898 = vmatprep.subr.mxu0 0.0
      %899 = vmatpush1.msra.mxu0 0.0
      %900 = vmatprep.subr.mxu0 0.0
      %901 = vmatpush1.msra.mxu0 0.0
      %902 = vmatprep.subr.mxu0 0.0
      %903 = vmatpush1.msra.mxu0 0.0
      %904 = vmatprep.subr.mxu0 0.0
      %905 = vmatpush1.msra.mxu0 0.0
      %906 = vmatprep.subr.mxu0 0.0
      %907 = vmatpush1.msra.mxu0 0.0
      %908 = vmatprep.subr.mxu0 0.0
      %909 = vmatpush1.msra.mxu0 0.0
      %910 = vmatprep.subr.mxu0 0.0
      %911 = vmatpush1.msra.mxu0 0.0
      %912 = vmatprep.subr.mxu0 0.0
      %913 = vmatpush1.msra.mxu0 0.0
      %914 = vmatprep.subr.mxu0 0.0
      %915 = vmatpush1.msra.mxu0 0.0
      %916 = vmatprep.subr.mxu0 0.0
      %917 = vmatpush1.msra.mxu0 0.0
      %918 = vmatprep.subr.mxu0 0.0
      %919 = vmatpush1.msra.mxu0 0.0
      %920 = vmatprep.subr.mxu0 0.0
      %921 = vmatpush1.msra.mxu0 0.0
      %922 = vmatprep.subr.mxu0 0.0
      %923 = vmatpush1.msra.mxu0 0.0
      %924 = vmatprep.subr.mxu0 0.0
      %925 = vmatpush1.msra.mxu0 0.0
      %926 = vmatprep.subr.mxu0 0.0
      %927 = vmatpush1.msra.mxu0 0.0
      %928 = vmatprep.subr.mxu0 0.0
      %929 = vmatpush1.msra.mxu0 0.0
      %930 = vmatprep.subr.mxu0 0.0
      %931 = vmatpush1.msra.mxu0 0.0
      %932 = vmatprep.subr.mxu0 0.0
      %933 = vmatpush1.msra.mxu0 0.0
      %934 = vmatprep.subr.mxu0 0.0
      %935 = vmatpush1.msra.mxu0 0.0
      %936 = vmatprep.subr.mxu0 0.0
      %937 = vmatpush1.msra.mxu0 0.0
      %938 = vmatprep.mubr.f32.mxu0 0.0
      %939 = vmatmul.mubr.f32.gmra.mrb[0].mxu0 %v735
      %v940 = vpop.f32.mrb[0].mxu0
      %v941 = vadd.f32 %v872, %v940
      %v942 = vpop.f32.mrb[0].mxu0
      %943 = vmatprep.mubr.f32.mxu0 0.0
      %944 = vmatmul.mubr.f32.gmra.mrb[0].mxu0 %v738
      %v945 = vpop.f32.mrb[0].mxu0
      %v946 = vadd.f32 %v872, %v945
      %v947 = vpop.f32.mrb[0].mxu0
      %948 = vmatprep.mubr.f32.mxu0 0.0
      %949 = vmatmul.mubr.f32.gmra.mrb[0].mxu0 %v741
      %v950 = vpop.f32.mrb[0].mxu0
      %v951 = vadd.f32 %v872, %v950
      %v952 = vpop.f32.mrb[0].mxu0
      %953 = vmatprep.mubr.f32.mxu0 0.0
      %954 = vmatmul.mubr.f32.gmra.mrb[0].mxu0 %v744
      %v955 = vpop.f32.mrb[0].mxu0
      %v956 = vadd.f32 %v872, %v955
      %v957 = vpop.f32.mrb[0].mxu0
      %958 = vmatprep.mubr.f32.mxu0 0.0
      %959 = vmatmul.mubr.f32.gmra.mrb[0].mxu0 %v747
      %v960 = vpop.f32.mrb[0].mxu0
      %v961 = vadd.f32 %v872, %v960
      %v962 = vpop.f32.mrb[0].mxu0
      %963 = vmatprep.mubr.f32.mxu0 0.0
      %964 = vmatmul.mubr.f32.gmra.mrb[0].mxu0 %v750
      %v965 = vpop.f32.mrb[0].mxu0
      %v966 = vadd.f32 %v872, %v965
      %v967 = vpop.f32.mrb[0].mxu0
      %968 = vmatprep.mubr.f32.mxu0 0.0
      %969 = vmatmul.mubr.f32.gmra.mrb[0].mxu0 %v753
      %v970 = vpop.f32.mrb[0].mxu0
      %v971 = vadd.f32 %v872, %v970
      %v972 = vpop.f32.mrb[0].mxu0
      %973 = vmatprep.mubr.f32.mxu0 0.0
      %974 = vmatmul.mubr.f32.gmra.mrb[0].mxu0 %v756
      %v975 = vpop.f32.mrb[0].mxu0
      %v976 = vadd.f32 %v872, %v975
      %v977 = vpop.f32.mrb[0].mxu0
      %978 = vdwg.mxu0
      %v979 = vld [vmem:[%s7] sm:$0xff]
      %v980 = vld [vmem:[%s7 + $0x8] sm:$0xff]
      %v981 = vld [vmem:[%s7 + $0x10] sm:$0xff]
      %v982 = vld [vmem:[%s7 + $0x18] sm:$0xff]
      %v983 = vld [vmem:[%s8] sm:$0x1]
      %v985 = vlaneseq
      %v986 = vshrl.u32 %v985, 7
      %v987 = vsub.s32 0, %v986
      %v988 = vrot.slane %v983, %v987
      %990 = vmatprep.subr.mxu0 0.0
      %991 = vmatpush1.msra.mxu0 %v979
      %992 = vmatprep.subr.mxu0 0.0
      %993 = vmatpush1.msra.mxu0 %v980
      %994 = vmatprep.subr.mxu0 0.0
      %995 = vmatpush1.msra.mxu0 %v981
      %996 = vmatprep.subr.mxu0 0.0
      %997 = vmatpush1.msra.mxu0 %v982
      %998 = vmatprep.subr.mxu0 0.0
      %999 = vmatpush1.msra.mxu0 0.0
      %1000 = vmatprep.subr.mxu0 0.0
      %1001 = vmatpush1.msra.mxu0 0.0
      %1002 = vmatprep.subr.mxu0 0.0
      %1003 = vmatpush1.msra.mxu0 0.0
      %1004 = vmatprep.subr.mxu0 0.0
      %1005 = vmatpush1.msra.mxu0 0.0
      %1006 = vmatprep.subr.mxu0 0.0
      %1007 = vmatpush1.msra.mxu0 0.0
      %1008 = vmatprep.subr.mxu0 0.0
      %1009 = vmatpush1.msra.mxu0 0.0
      %1010 = vmatprep.subr.mxu0 0.0
      %1011 = vmatpush1.msra.mxu0 0.0
      %1012 = vmatprep.subr.mxu0 0.0
      %1013 = vmatpush1.msra.mxu0 0.0
      %1014 = vmatprep.subr.mxu0 0.0
      %1015 = vmatpush1.msra.mxu0 0.0
      %1016 = vmatprep.subr.mxu0 0.0
      %1017 = vmatpush1.msra.mxu0 0.0
      %1018 = vmatprep.subr.mxu0 0.0
      %1019 = vmatpush1.msra.mxu0 0.0
      %1020 = vmatprep.subr.mxu0 0.0
      %1021 = vmatpush1.msra.mxu0 0.0
      %1022 = vmatprep.subr.mxu0 0.0
      %1023 = vmatpush1.msra.mxu0 0.0
      %1024 = vmatprep.subr.mxu0 0.0
      %1025 = vmatpush1.msra.mxu0 0.0
      %1026 = vmatprep.subr.mxu0 0.0
      %1027 = vmatpush1.msra.mxu0 0.0
      %1028 = vmatprep.subr.mxu0 0.0
      %1029 = vmatpush1.msra.mxu0 0.0
      %1030 = vmatprep.subr.mxu0 0.0
      %1031 = vmatpush1.msra.mxu0 0.0
      %1032 = vmatprep.subr.mxu0 0.0
      %1033 = vmatpush1.msra.mxu0 0.0
      %1034 = vmatprep.subr.mxu0 0.0
      %1035 = vmatpush1.msra.mxu0 0.0
      %1036 = vmatprep.subr.mxu0 0.0
      %1037 = vmatpush1.msra.mxu0 0.0
      %1038 = vmatprep.subr.mxu0 0.0
      %1039 = vmatpush1.msra.mxu0 0.0
      %1040 = vmatprep.subr.mxu0 0.0
      %1041 = vmatpush1.msra.mxu0 0.0
      %1042 = vmatprep.subr.mxu0 0.0
      %1043 = vmatpush1.msra.mxu0 0.0
      %1044 = vmatprep.subr.mxu0 0.0
      %1045 = vmatpush1.msra.mxu0 0.0
      %1046 = vmatprep.subr.mxu0 0.0
      %1047 = vmatpush1.msra.mxu0 0.0
      %1048 = vmatprep.subr.mxu0 0.0
      %1049 = vmatpush1.msra.mxu0 0.0
      %1050 = vmatprep.subr.mxu0 0.0
      %1051 = vmatpush1.msra.mxu0 0.0
      %1052 = vmatprep.subr.mxu0 0.0
      %1053 = vmatpush1.msra.mxu0 0.0
      %1054 = vmatprep.mubr.f32.mxu0 0.0
      %1055 = vmatmul.mubr.f32.gmra.mrb[0].mxu0 %v735
      %v1056 = vpop.f32.mrb[0].mxu0
      %v1057 = vadd.f32 %v988, %v1056
      %v1058 = vpop.f32.mrb[0].mxu0
      %1059 = vmatprep.mubr.f32.mxu0 0.0
      %1060 = vmatmul.mubr.f32.gmra.mrb[0].mxu0 %v738
      %v1061 = vpop.f32.mrb[0].mxu0
      %v1062 = vadd.f32 %v988, %v1061
      %v1063 = vpop.f32.mrb[0].mxu0
      %1064 = vmatprep.mubr.f32.mxu0 0.0
      %1065 = vmatmul.mubr.f32.gmra.mrb[0].mxu0 %v741
      %v1066 = vpop.f32.mrb[0].mxu0
      %v1067 = vadd.f32 %v988, %v1066
      %v1068 = vpop.f32.mrb[0].mxu0
      %1069 = vmatprep.mubr.f32.mxu0 0.0
      %1070 = vmatmul.mubr.f32.gmra.mrb[0].mxu0 %v744
      %v1071 = vpop.f32.mrb[0].mxu0
      %v1072 = vadd.f32 %v988, %v1071
      %v1073 = vpop.f32.mrb[0].mxu0
      %1074 = vmatprep.mubr.f32.mxu0 0.0
      %1075 = vmatmul.mubr.f32.gmra.mrb[0].mxu0 %v747
      %v1076 = vpop.f32.mrb[0].mxu0
      %v1077 = vadd.f32 %v988, %v1076
      %v1078 = vpop.f32.mrb[0].mxu0
      %1079 = vmatprep.mubr.f32.mxu0 0.0
      %1080 = vmatmul.mubr.f32.gmra.mrb[0].mxu0 %v750
      %v1081 = vpop.f32.mrb[0].mxu0
      %v1082 = vadd.f32 %v988, %v1081
      %v1083 = vpop.f32.mrb[0].mxu0
      %1084 = vmatprep.mubr.f32.mxu0 0.0
      %1085 = vmatmul.mubr.f32.gmra.mrb[0].mxu0 %v753
      %v1086 = vpop.f32.mrb[0].mxu0
      %v1087 = vadd.f32 %v988, %v1086
      %v1088 = vpop.f32.mrb[0].mxu0
      %1089 = vmatprep.mubr.f32.mxu0 0.0
      %1090 = vmatmul.mubr.f32.gmra.mrb[0].mxu0 %v756
      %v1091 = vpop.f32.mrb[0].mxu0
      %v1092 = vadd.f32 %v988, %v1091
      %v1093 = vpop.f32.mrb[0].mxu0
      %1094 = vdwg.mxu0
      %vm1095 = vcmask 64512
      %v1097 = vsel %vm1095, %v825, 0
      %v1100 = vsel %vm1095, %v830, 0
      %v1103 = vsel %vm1095, %v941, 0
      %v1106 = vsel %vm1095, %v946, 0
      %1108 = vmatprep.subr.mxu0 0.0
      %1109 = vmatpush1.xpose.msra.mxu0 %v1103
      %1110 = vmatprep.subr.mxu0 0.0
      %1111 = vmatpush1.xpose.msra.mxu0 %v1106
      %1112 = vmatprep.subr.mxu0 0.0
      %1113 = vmatpush1.xpose.msra.mxu0 0.0
      %1114 = vmatprep.subr.mxu0 0.0
      %1115 = vmatpush1.xpose.msra.mxu0 0.0
      %1116 = vmatprep.subr.mxu0 0.0
      %1117 = vmatpush1.xpose.msra.mxu0 0.0
      %1118 = vmatprep.subr.mxu0 0.0
      %1119 = vmatpush1.xpose.msra.mxu0 0.0
      %1120 = vmatprep.subr.mxu0 0.0
      %1121 = vmatpush1.xpose.msra.mxu0 0.0
      %1122 = vmatprep.subr.mxu0 0.0
      %1123 = vmatpush1.xpose.msra.mxu0 0.0
      %1124 = vmatprep.subr.mxu0 0.0
      %1125 = vmatpush1.xpose.msra.mxu0 0.0
      %1126 = vmatprep.subr.mxu0 0.0
      %1127 = vmatpush1.xpose.msra.mxu0 0.0
      %1128 = vmatprep.subr.mxu0 0.0
      %1129 = vmatpush1.xpose.msra.mxu0 0.0
      %1130 = vmatprep.subr.mxu0 0.0
      %1131 = vmatpush1.xpose.msra.mxu0 0.0
      %1132 = vmatprep.subr.mxu0 0.0
      %1133 = vmatpush1.xpose.msra.mxu0 0.0
      %1134 = vmatprep.subr.mxu0 0.0
      %1135 = vmatpush1.xpose.msra.mxu0 0.0
      %1136 = vmatprep.subr.mxu0 0.0
      %1137 = vmatpush1.xpose.msra.mxu0 0.0
      %1138 = vmatprep.subr.mxu0 0.0
      %1139 = vmatpush1.xpose.msra.mxu0 0.0
      %1140 = vmatprep.subr.mxu0 0.0
      %1141 = vmatpush1.xpose.msra.mxu0 0.0
      %1142 = vmatprep.subr.mxu0 0.0
      %1143 = vmatpush1.xpose.msra.mxu0 0.0
      %1144 = vmatprep.subr.mxu0 0.0
      %1145 = vmatpush1.xpose.msra.mxu0 0.0
      %1146 = vmatprep.subr.mxu0 0.0
      %1147 = vmatpush1.xpose.msra.mxu0 0.0
      %1148 = vmatprep.subr.mxu0 0.0
      %1149 = vmatpush1.xpose.msra.mxu0 0.0
      %1150 = vmatprep.subr.mxu0 0.0
      %1151 = vmatpush1.xpose.msra.mxu0 0.0
      %1152 = vmatprep.subr.mxu0 0.0
      %1153 = vmatpush1.xpose.msra.mxu0 0.0
      %1154 = vmatprep.subr.mxu0 0.0
      %1155 = vmatpush1.xpose.msra.mxu0 0.0
      %1156 = vmatprep.subr.mxu0 0.0
      %1157 = vmatpush1.xpose.msra.mxu0 0.0
      %1158 = vmatprep.subr.mxu0 0.0
      %1159 = vmatpush1.xpose.msra.mxu0 0.0
      %1160 = vmatprep.subr.mxu0 0.0
      %1161 = vmatpush1.xpose.msra.mxu0 0.0
      %1162 = vmatprep.subr.mxu0 0.0
      %1163 = vmatpush1.xpose.msra.mxu0 0.0
      %1164 = vmatprep.subr.mxu0 0.0
      %1165 = vmatpush1.xpose.msra.mxu0 0.0
      %1166 = vmatprep.subr.mxu0 0.0
      %1167 = vmatpush1.xpose.msra.mxu0 0.0
      %1168 = vmatprep.subr.mxu0 0.0
      %1169 = vmatpush1.xpose.msra.mxu0 0.0
      %1170 = vmatprep.subr.mxu0 0.0
      %1171 = vmatpush1.xpose.msra.mxu0 0.0
      %1172 = vmatprep.mubr.f32.mxu0 0.0
      %1173 = vmatmul.mubr.f32.gmra.mrb[0].mxu0 %v1097
      %v1174 = vpop.f32.mrb[0].mxu0
      %v1175 = vadd.f32 0.0, %v1174
      %v1176 = vpop.f32.mrb[0].mxu0
      %1177 = vmatprep.mubr.f32.mxu0 0.0
      %1178 = vmatmul.mubr.f32.gmra.mrb[0].mxu0 %v1100
      %v1179 = vpop.f32.mrb[0].mxu0
      %v1180 = vadd.f32 0.0, %v1179
      %v1181 = vpop.f32.mrb[0].mxu0
      %1182 = vdwg.mxu0
      %v1184 = vsel %vm1095, %v835, 0
      %v1187 = vsel %vm1095, %v840, 0
      %v1190 = vsel %vm1095, %v951, 0
      %v1193 = vsel %vm1095, %v956, 0
      %1195 = vmatprep.subr.mxu0 0.0
      %1196 = vmatpush1.xpose.msra.mxu0 %v1190
      %1197 = vmatprep.subr.mxu0 0.0
      %1198 = vmatpush1.xpose.msra.mxu0 %v1193
      %1199 = vmatprep.subr.mxu0 0.0
      %1200 = vmatpush1.xpose.msra.mxu0 0.0
      %1201 = vmatprep.subr.mxu0 0.0
      %1202 = vmatpush1.xpose.msra.mxu0 0.0
      %1203 = vmatprep.subr.mxu0 0.0
      %1204 = vmatpush1.xpose.msra.mxu0 0.0
      %1205 = vmatprep.subr.mxu0 0.0
      %1206 = vmatpush1.xpose.msra.mxu0 0.0
      %1207 = vmatprep.subr.mxu0 0.0
      %1208 = vmatpush1.xpose.msra.mxu0 0.0
      %1209 = vmatprep.subr.mxu0 0.0
      %1210 = vmatpush1.xpose.msra.mxu0 0.0
      %1211 = vmatprep.subr.mxu0 0.0
      %1212 = vmatpush1.xpose.msra.mxu0 0.0
      %1213 = vmatprep.subr.mxu0 0.0
      %1214 = vmatpush1.xpose.msra.mxu0 0.0
      %1215 = vmatprep.subr.mxu0 0.0
      %1216 = vmatpush1.xpose.msra.mxu0 0.0
      %1217 = vmatprep.subr.mxu0 0.0
      %1218 = vmatpush1.xpose.msra.mxu0 0.0
      %1219 = vmatprep.subr.mxu0 0.0
      %1220 = vmatpush1.xpose.msra.mxu0 0.0
      %1221 = vmatprep.subr.mxu0 0.0
      %1222 = vmatpush1.xpose.msra.mxu0 0.0
      %1223 = vmatprep.subr.mxu0 0.0
      %1224 = vmatpush1.xpose.msra.mxu0 0.0
      %1225 = vmatprep.subr.mxu0 0.0
      %1226 = vmatpush1.xpose.msra.mxu0 0.0
      %1227 = vmatprep.subr.mxu0 0.0
      %1228 = vmatpush1.xpose.msra.mxu0 0.0
      %1229 = vmatprep.subr.mxu0 0.0
      %1230 = vmatpush1.xpose.msra.mxu0 0.0
      %1231 = vmatprep.subr.mxu0 0.0
      %1232 = vmatpush1.xpose.msra.mxu0 0.0
      %1233 = vmatprep.subr.mxu0 0.0
      %1234 = vmatpush1.xpose.msra.mxu0 0.0
      %1235 = vmatprep.subr.mxu0 0.0
      %1236 = vmatpush1.xpose.msra.mxu0 0.0
      %1237 = vmatprep.subr.mxu0 0.0
      %1238 = vmatpush1.xpose.msra.mxu0 0.0
      %1239 = vmatprep.subr.mxu0 0.0
      %1240 = vmatpush1.xpose.msra.mxu0 0.0
      %1241 = vmatprep.subr.mxu0 0.0
      %1242 = vmatpush1.xpose.msra.mxu0 0.0
      %1243 = vmatprep.subr.mxu0 0.0
      %1244 = vmatpush1.xpose.msra.mxu0 0.0
      %1245 = vmatprep.subr.mxu0 0.0
      %1246 = vmatpush1.xpose.msra.mxu0 0.0
      %1247 = vmatprep.subr.mxu0 0.0
      %1248 = vmatpush1.xpose.msra.mxu0 0.0
      %1249 = vmatprep.subr.mxu0 0.0
      %1250 = vmatpush1.xpose.msra.mxu0 0.0
      %1251 = vmatprep.subr.mxu0 0.0
      %1252 = vmatpush1.xpose.msra.mxu0 0.0
      %1253 = vmatprep.subr.mxu0 0.0
      %1254 = vmatpush1.xpose.msra.mxu0 0.0
      %1255 = vmatprep.subr.mxu0 0.0
      %1256 = vmatpush1.xpose.msra.mxu0 0.0
      %1257 = vmatprep.subr.mxu0 0.0
      %1258 = vmatpush1.xpose.msra.mxu0 0.0
      %1259 = vmatprep.mubr.f32.mxu0 0.0
      %1260 = vmatmul.mubr.f32.gmra.mrb[0].mxu0 %v1184
      %v1261 = vpop.f32.mrb[0].mxu0
      %v1262 = vadd.f32 0.0, %v1261
      %v1263 = vpop.f32.mrb[0].mxu0
      %1264 = vmatprep.mubr.f32.mxu0 0.0
      %1265 = vmatmul.mubr.f32.gmra.mrb[0].mxu0 %v1187
      %v1266 = vpop.f32.mrb[0].mxu0
      %v1267 = vadd.f32 0.0, %v1266
      %v1268 = vpop.f32.mrb[0].mxu0
      %1269 = vdwg.mxu0
      %v1271 = vsel %vm1095, %v845, 0
      %v1274 = vsel %vm1095, %v850, 0
      %v1277 = vsel %vm1095, %v961, 0
      %v1280 = vsel %vm1095, %v966, 0
      %1282 = vmatprep.subr.mxu0 0.0
      %1283 = vmatpush1.xpose.msra.mxu0 %v1277
      %1284 = vmatprep.subr.mxu0 0.0
      %1285 = vmatpush1.xpose.msra.mxu0 %v1280
      %1286 = vmatprep.subr.mxu0 0.0
      %1287 = vmatpush1.xpose.msra.mxu0 0.0
      %1288 = vmatprep.subr.mxu0 0.0
      %1289 = vmatpush1.xpose.msra.mxu0 0.0
      %1290 = vmatprep.subr.mxu0 0.0
      %1291 = vmatpush1.xpose.msra.mxu0 0.0
      %1292 = vmatprep.subr.mxu0 0.0
      %1293 = vmatpush1.xpose.msra.mxu0 0.0
      %1294 = vmatprep.subr.mxu0 0.0
      %1295 = vmatpush1.xpose.msra.mxu0 0.0
      %1296 = vmatprep.subr.mxu0 0.0
      %1297 = vmatpush1.xpose.msra.mxu0 0.0
      %1298 = vmatprep.subr.mxu0 0.0
      %1299 = vmatpush1.xpose.msra.mxu0 0.0
      %1300 = vmatprep.subr.mxu0 0.0
      %1301 = vmatpush1.xpose.msra.mxu0 0.0
      %1302 = vmatprep.subr.mxu0 0.0
      %1303 = vmatpush1.xpose.msra.mxu0 0.0
      %1304 = vmatprep.subr.mxu0 0.0
      %1305 = vmatpush1.xpose.msra.mxu0 0.0
      %1306 = vmatprep.subr.mxu0 0.0
      %1307 = vmatpush1.xpose.msra.mxu0 0.0
      %1308 = vmatprep.subr.mxu0 0.0
      %1309 = vmatpush1.xpose.msra.mxu0 0.0
      %1310 = vmatprep.subr.mxu0 0.0
      %1311 = vmatpush1.xpose.msra.mxu0 0.0
      %1312 = vmatprep.subr.mxu0 0.0
      %1313 = vmatpush1.xpose.msra.mxu0 0.0
      %1314 = vmatprep.subr.mxu0 0.0
      %1315 = vmatpush1.xpose.msra.mxu0 0.0
      %1316 = vmatprep.subr.mxu0 0.0
      %1317 = vmatpush1.xpose.msra.mxu0 0.0
      %1318 = vmatprep.subr.mxu0 0.0
      %1319 = vmatpush1.xpose.msra.mxu0 0.0
      %1320 = vmatprep.subr.mxu0 0.0
      %1321 = vmatpush1.xpose.msra.mxu0 0.0
      %1322 = vmatprep.subr.mxu0 0.0
      %1323 = vmatpush1.xpose.msra.mxu0 0.0
      %1324 = vmatprep.subr.mxu0 0.0
      %1325 = vmatpush1.xpose.msra.mxu0 0.0
      %1326 = vmatprep.subr.mxu0 0.0
      %1327 = vmatpush1.xpose.msra.mxu0 0.0
      %1328 = vmatprep.subr.mxu0 0.0
      %1329 = vmatpush1.xpose.msra.mxu0 0.0
      %1330 = vmatprep.subr.mxu0 0.0
      %1331 = vmatpush1.xpose.msra.mxu0 0.0
      %1332 = vmatprep.subr.mxu0 0.0
      %1333 = vmatpush1.xpose.msra.mxu0 0.0
      %1334 = vmatprep.subr.mxu0 0.0
      %1335 = vmatpush1.xpose.msra.mxu0 0.0
      %1336 = vmatprep.subr.mxu0 0.0
      %1337 = vmatpush1.xpose.msra.mxu0 0.0
      %1338 = vmatprep.subr.mxu0 0.0
      %1339 = vmatpush1.xpose.msra.mxu0 0.0
      %1340 = vmatprep.subr.mxu0 0.0
      %1341 = vmatpush1.xpose.msra.mxu0 0.0
      %1342 = vmatprep.subr.mxu0 0.0
      %1343 = vmatpush1.xpose.msra.mxu0 0.0
      %1344 = vmatprep.subr.mxu0 0.0
      %1345 = vmatpush1.xpose.msra.mxu0 0.0
      %1346 = vmatprep.mubr.f32.mxu0 0.0
      %1347 = vmatmul.mubr.f32.gmra.mrb[0].mxu0 %v1271
      %v1348 = vpop.f32.mrb[0].mxu0
      %v1349 = vadd.f32 0.0, %v1348
      %v1350 = vpop.f32.mrb[0].mxu0
      %1351 = vmatprep.mubr.f32.mxu0 0.0
      %1352 = vmatmul.mubr.f32.gmra.mrb[0].mxu0 %v1274
      %v1353 = vpop.f32.mrb[0].mxu0
      %v1354 = vadd.f32 0.0, %v1353
      %v1355 = vpop.f32.mrb[0].mxu0
      %1356 = vdwg.mxu0
      %v1358 = vsel %vm1095, %v855, 0
      %v1361 = vsel %vm1095, %v860, 0
      %v1364 = vsel %vm1095, %v971, 0
      %v1367 = vsel %vm1095, %v976, 0
      %1369 = vmatprep.subr.mxu0 0.0
      %1370 = vmatpush1.xpose.msra.mxu0 %v1364
      %1371 = vmatprep.subr.mxu0 0.0
      %1372 = vmatpush1.xpose.msra.mxu0 %v1367
      %1373 = vmatprep.subr.mxu0 0.0
      %1374 = vmatpush1.xpose.msra.mxu0 0.0
      %1375 = vmatprep.subr.mxu0 0.0
      %1376 = vmatpush1.xpose.msra.mxu0 0.0
      %1377 = vmatprep.subr.mxu0 0.0
      %1378 = vmatpush1.xpose.msra.mxu0 0.0
      %1379 = vmatprep.subr.mxu0 0.0
      %1380 = vmatpush1.xpose.msra.mxu0 0.0
      %1381 = vmatprep.subr.mxu0 0.0
      %1382 = vmatpush1.xpose.msra.mxu0 0.0
      %1383 = vmatprep.subr.mxu0 0.0
      %1384 = vmatpush1.xpose.msra.mxu0 0.0
      %1385 = vmatprep.subr.mxu0 0.0
      %1386 = vmatpush1.xpose.msra.mxu0 0.0
      %1387 = vmatprep.subr.mxu0 0.0
      %1388 = vmatpush1.xpose.msra.mxu0 0.0
      %1389 = vmatprep.subr.mxu0 0.0
      %1390 = vmatpush1.xpose.msra.mxu0 0.0
      %1391 = vmatprep.subr.mxu0 0.0
      %1392 = vmatpush1.xpose.msra.mxu0 0.0
      %1393 = vmatprep.subr.mxu0 0.0
      %1394 = vmatpush1.xpose.msra.mxu0 0.0
      %1395 = vmatprep.subr.mxu0 0.0
      %1396 = vmatpush1.xpose.msra.mxu0 0.0
      %1397 = vmatprep.subr.mxu0 0.0
      %1398 = vmatpush1.xpose.msra.mxu0 0.0
      %1399 = vmatprep.subr.mxu0 0.0
      %1400 = vmatpush1.xpose.msra.mxu0 0.0
      %1401 = vmatprep.subr.mxu0 0.0
      %1402 = vmatpush1.xpose.msra.mxu0 0.0
      %1403 = vmatprep.subr.mxu0 0.0
      %1404 = vmatpush1.xpose.msra.mxu0 0.0
      %1405 = vmatprep.subr.mxu0 0.0
      %1406 = vmatpush1.xpose.msra.mxu0 0.0
      %1407 = vmatprep.subr.mxu0 0.0
      %1408 = vmatpush1.xpose.msra.mxu0 0.0
      %1409 = vmatprep.subr.mxu0 0.0
      %1410 = vmatpush1.xpose.msra.mxu0 0.0
      %1411 = vmatprep.subr.mxu0 0.0
      %1412 = vmatpush1.xpose.msra.mxu0 0.0
      %1413 = vmatprep.subr.mxu0 0.0
      %1414 = vmatpush1.xpose.msra.mxu0 0.0
      %1415 = vmatprep.subr.mxu0 0.0
      %1416 = vmatpush1.xpose.msra.mxu0 0.0
      %1417 = vmatprep.subr.mxu0 0.0
      %1418 = vmatpush1.xpose.msra.mxu0 0.0
      %1419 = vmatprep.subr.mxu0 0.0
      %1420 = vmatpush1.xpose.msra.mxu0 0.0
      %1421 = vmatprep.subr.mxu0 0.0
      %1422 = vmatpush1.xpose.msra.mxu0 0.0
      %1423 = vmatprep.subr.mxu0 0.0
      %1424 = vmatpush1.xpose.msra.mxu0 0.0
      %1425 = vmatprep.subr.mxu0 0.0
      %1426 = vmatpush1.xpose.msra.mxu0 0.0
      %1427 = vmatprep.subr.mxu0 0.0
      %1428 = vmatpush1.xpose.msra.mxu0 0.0
      %1429 = vmatprep.subr.mxu0 0.0
      %1430 = vmatpush1.xpose.msra.mxu0 0.0
      %1431 = vmatprep.subr.mxu0 0.0
      %1432 = vmatpush1.xpose.msra.mxu0 0.0
      %1433 = vmatprep.mubr.f32.mxu0 0.0
      %1434 = vmatmul.mubr.f32.gmra.mrb[0].mxu0 %v1358
      %v1435 = vpop.f32.mrb[0].mxu0
      %v1436 = vadd.f32 0.0, %v1435
      %v1437 = vpop.f32.mrb[0].mxu0
      %1438 = vmatprep.mubr.f32.mxu0 0.0
      %1439 = vmatmul.mubr.f32.gmra.mrb[0].mxu0 %v1361
      %v1440 = vpop.f32.mrb[0].mxu0
      %v1441 = vadd.f32 0.0, %v1440
      %v1442 = vpop.f32.mrb[0].mxu0
      %1443 = vdwg.mxu0
      %v1444 = vmul.f32 %v1175, 0.17677669
      %v1445 = vmul.f32 %v1180, 0.17677669
      %v1446 = vmul.f32 %v1262, 0.17677669
      %v1447 = vmul.f32 %v1267, 0.17677669
      %v1448 = vmul.f32 %v1349, 0.17677669
      %v1449 = vmul.f32 %v1354, 0.17677669
      %v1450 = vmul.f32 %v1436, 0.17677669
      %v1451 = vmul.f32 %v1441, 0.17677669
      %v1452 = vld [vmem:[%s11] sm:$0xff]
      %v1453 = vld [vmem:[%s11 + $0x8] sm:$0xff]
      %v1454 = vadd.f32 %v1444, %v1452
      %v1455 = vadd.f32 %v1445, %v1453
      %v1456 = vadd.f32 %v1446, %v1452
      %v1457 = vadd.f32 %v1447, %v1453
      %v1458 = vadd.f32 %v1448, %v1452
      %v1459 = vadd.f32 %v1449, %v1453
      %v1460 = vadd.f32 %v1450, %v1452
      %v1461 = vadd.f32 %v1451, %v1453
      %vm1462 = vcmask 130048
      %v1463 = vsel %vm1462, %v1454, -inf
      %1464 = vmax.xlane.f32.xlu0 %v1463
      %v1465 = vpop.xlane.xlu0 %1464
      %v1466 = vsel %vm1462, %v1455, -inf
      %1467 = vmax.xlane.f32.xlu0 %v1466
      %v1468 = vpop.xlane.xlu0 %1467
      %v1469 = vsel %vm1462, %v1456, -inf
      %1470 = vmax.xlane.f32.xlu0 %v1469
      %v1471 = vpop.xlane.xlu0 %1470
      %v1472 = vsel %vm1462, %v1457, -inf
      %1473 = vmax.xlane.f32.xlu0 %v1472
      %v1474 = vpop.xlane.xlu0 %1473
      %v1475 = vsel %vm1462, %v1458, -inf
      %1476 = vmax.xlane.f32.xlu0 %v1475
      %v1477 = vpop.xlane.xlu0 %1476
      %v1478 = vsel %vm1462, %v1459, -inf
      %1479 = vmax.xlane.f32.xlu0 %v1478
      %v1480 = vpop.xlane.xlu0 %1479
      %v1481 = vsel %vm1462, %v1460, -inf
      %1482 = vmax.xlane.f32.xlu0 %v1481
      %v1483 = vpop.xlane.xlu0 %1482
      %v1484 = vsel %vm1462, %v1461, -inf
      %1485 = vmax.xlane.f32.xlu0 %v1484
      %v1486 = vpop.xlane.xlu0 %1485
      %v1487 = vsub.f32 %v1454, %v1465
      %v1488 = vsub.f32 %v1455, %v1468
      %v1489 = vsub.f32 %v1456, %v1471
      %v1490 = vsub.f32 %v1457, %v1474
      %v1491 = vsub.f32 %v1458, %v1477
      %v1492 = vsub.f32 %v1459, %v1480
      %v1493 = vsub.f32 %v1460, %v1483
      %v1494 = vsub.f32 %v1461, %v1486
      %v1495 = vmul.f32 %v1487, 1.442695
      %v1496 = vpow.pop %v1495
      %v1497 = vmul.f32 %v1488, 1.442695
      %v1498 = vpow.pop %v1497
      %v1499 = vmul.f32 %v1489, 1.442695
      %v1500 = vpow.pop %v1499
      %v1501 = vmul.f32 %v1490, 1.442695
      %v1502 = vpow.pop %v1501
      %v1503 = vmul.f32 %v1491, 1.442695
      %v1504 = vpow.pop %v1503
      %v1505 = vmul.f32 %v1492, 1.442695
      %v1506 = vpow.pop %v1505
      %v1507 = vmul.f32 %v1493, 1.442695
      %v1508 = vpow.pop %v1507
      %v1509 = vmul.f32 %v1494, 1.442695
      %v1510 = vpow.pop %v1509
      %v1511 = vsel %vm1462, %v1496, 0.0
      %1512 = vadd.xlane.f32.xlu0 %v1511
      %v1513 = vpop.xlane.xlu0 %1512
      %v1514 = vsel %vm1462, %v1498, 0.0
      %1515 = vadd.xlane.f32.xlu0 %v1514
      %v1516 = vpop.xlane.xlu0 %1515
      %v1517 = vsel %vm1462, %v1500, 0.0
      %1518 = vadd.xlane.f32.xlu0 %v1517
      %v1519 = vpop.xlane.xlu0 %1518
      %v1520 = vsel %vm1462, %v1502, 0.0
      %1521 = vadd.xlane.f32.xlu0 %v1520
      %v1522 = vpop.xlane.xlu0 %1521
      %v1523 = vsel %vm1462, %v1504, 0.0
      %1524 = vadd.xlane.f32.xlu0 %v1523
      %v1525 = vpop.xlane.xlu0 %1524
      %v1526 = vsel %vm1462, %v1506, 0.0
      %1527 = vadd.xlane.f32.xlu0 %v1526
      %v1528 = vpop.xlane.xlu0 %1527
      %v1529 = vsel %vm1462, %v1508, 0.0
      %1530 = vadd.xlane.f32.xlu0 %v1529
      %v1531 = vpop.xlane.xlu0 %1530
      %v1532 = vsel %vm1462, %v1510, 0.0
      %1533 = vadd.xlane.f32.xlu0 %v1532
      %v1534 = vpop.xlane.xlu0 %1533
      %v1535 = vrcp.pop %v1513
      %v1536 = vrcp.pop %v1516
      %v1537 = vrcp.pop %v1519
      %v1538 = vrcp.pop %v1522
      %v1539 = vrcp.pop %v1525
      %v1540 = vrcp.pop %v1528
      %v1541 = vrcp.pop %v1531
      %v1542 = vrcp.pop %v1534
      %v1543 = vmul.f32 %v1496, %v1535
      %v1544 = vmul.f32 %v1498, %v1536
      %v1545 = vmul.f32 %v1500, %v1537
      %v1546 = vmul.f32 %v1502, %v1538
      %v1547 = vmul.f32 %v1504, %v1539
      %v1548 = vmul.f32 %v1506, %v1540
      %v1549 = vmul.f32 %v1508, %v1541
      %v1550 = vmul.f32 %v1510, %v1542
      %v1552 = vsel %vm1462, %v1543, 0
      %v1555 = vsel %vm1462, %v1544, 0
      %1557 = vmatprep.subr.mxu0 0.0
      %1558 = vmatpush1.msra.mxu0 %v1057
      %1559 = vmatprep.subr.mxu0 0.0
      %1560 = vmatpush1.msra.mxu0 %v1062
      %1561 = vmatprep.subr.mxu0 0.0
      %1562 = vmatpush1.msra.mxu0 0.0
      %1563 = vmatprep.subr.mxu0 0.0
      %1564 = vmatpush1.msra.mxu0 0.0
      %1565 = vmatprep.subr.mxu0 0.0
      %1566 = vmatpush1.msra.mxu0 0.0
      %1567 = vmatprep.subr.mxu0 0.0
      %1568 = vmatpush1.msra.mxu0 0.0
      %1569 = vmatprep.subr.mxu0 0.0
      %1570 = vmatpush1.msra.mxu0 0.0
      %1571 = vmatprep.subr.mxu0 0.0
      %1572 = vmatpush1.msra.mxu0 0.0
      %1573 = vmatprep.subr.mxu0 0.0
      %1574 = vmatpush1.msra.mxu0 0.0
      %1575 = vmatprep.subr.mxu0 0.0
      %1576 = vmatpush1.msra.mxu0 0.0
      %1577 = vmatprep.subr.mxu0 0.0
      %1578 = vmatpush1.msra.mxu0 0.0
      %1579 = vmatprep.subr.mxu0 0.0
      %1580 = vmatpush1.msra.mxu0 0.0
      %1581 = vmatprep.subr.mxu0 0.0
      %1582 = vmatpush1.msra.mxu0 0.0
      %1583 = vmatprep.subr.mxu0 0.0
      %1584 = vmatpush1.msra.mxu0 0.0
      %1585 = vmatprep.subr.mxu0 0.0
      %1586 = vmatpush1.msra.mxu0 0.0
      %1587 = vmatprep.subr.mxu0 0.0
      %1588 = vmatpush1.msra.mxu0 0.0
      %1589 = vmatprep.subr.mxu0 0.0
      %1590 = vmatpush1.msra.mxu0 0.0
      %1591 = vmatprep.subr.mxu0 0.0
      %1592 = vmatpush1.msra.mxu0 0.0
      %1593 = vmatprep.subr.mxu0 0.0
      %1594 = vmatpush1.msra.mxu0 0.0
      %1595 = vmatprep.subr.mxu0 0.0
      %1596 = vmatpush1.msra.mxu0 0.0
      %1597 = vmatprep.subr.mxu0 0.0
      %1598 = vmatpush1.msra.mxu0 0.0
      %1599 = vmatprep.subr.mxu0 0.0
      %1600 = vmatpush1.msra.mxu0 0.0
      %1601 = vmatprep.subr.mxu0 0.0
      %1602 = vmatpush1.msra.mxu0 0.0
      %1603 = vmatprep.subr.mxu0 0.0
      %1604 = vmatpush1.msra.mxu0 0.0
      %1605 = vmatprep.subr.mxu0 0.0
      %1606 = vmatpush1.msra.mxu0 0.0
      %1607 = vmatprep.subr.mxu0 0.0
      %1608 = vmatpush1.msra.mxu0 0.0
      %1609 = vmatprep.subr.mxu0 0.0
      %1610 = vmatpush1.msra.mxu0 0.0
      %1611 = vmatprep.subr.mxu0 0.0
      %1612 = vmatpush1.msra.mxu0 0.0
      %1613 = vmatprep.subr.mxu0 0.0
      %1614 = vmatpush1.msra.mxu0 0.0
      %1615 = vmatprep.subr.mxu0 0.0
      %1616 = vmatpush1.msra.mxu0 0.0
      %1617 = vmatprep.subr.mxu0 0.0
      %1618 = vmatpush1.msra.mxu0 0.0
      %1619 = vmatprep.subr.mxu0 0.0
      %1620 = vmatpush1.msra.mxu0 0.0
      %1621 = vmatprep.mubr.f32.mxu0 0.0
      %1622 = vmatmul.mubr.f32.gmra.mrb[0].mxu0 %v1552
      %v1623 = vpop.f32.mrb[0].mxu0
      %v1624 = vadd.f32 0.0, %v1623
      %v1625 = vpop.f32.mrb[0].mxu0
      %1626 = vmatprep.mubr.f32.mxu0 0.0
      %1627 = vmatmul.mubr.f32.gmra.mrb[0].mxu0 %v1555
      %v1628 = vpop.f32.mrb[0].mxu0
      %v1629 = vadd.f32 0.0, %v1628
      %v1630 = vpop.f32.mrb[0].mxu0
      %1631 = vdwg.mxu0
      %v1633 = vsel %vm1462, %v1545, 0
      %v1636 = vsel %vm1462, %v1546, 0
      %1638 = vmatprep.subr.mxu0 0.0
      %1639 = vmatpush1.msra.mxu0 %v1067
      %1640 = vmatprep.subr.mxu0 0.0
      %1641 = vmatpush1.msra.mxu0 %v1072
      %1642 = vmatprep.subr.mxu0 0.0
      %1643 = vmatpush1.msra.mxu0 0.0
      %1644 = vmatprep.subr.mxu0 0.0
      %1645 = vmatpush1.msra.mxu0 0.0
      %1646 = vmatprep.subr.mxu0 0.0
      %1647 = vmatpush1.msra.mxu0 0.0
      %1648 = vmatprep.subr.mxu0 0.0
      %1649 = vmatpush1.msra.mxu0 0.0
      %1650 = vmatprep.subr.mxu0 0.0
      %1651 = vmatpush1.msra.mxu0 0.0
      %1652 = vmatprep.subr.mxu0 0.0
      %1653 = vmatpush1.msra.mxu0 0.0
      %1654 = vmatprep.subr.mxu0 0.0
      %1655 = vmatpush1.msra.mxu0 0.0
      %1656 = vmatprep.subr.mxu0 0.0
      %1657 = vmatpush1.msra.mxu0 0.0
      %1658 = vmatprep.subr.mxu0 0.0
      %1659 = vmatpush1.msra.mxu0 0.0
      %1660 = vmatprep.subr.mxu0 0.0
      %1661 = vmatpush1.msra.mxu0 0.0
      %1662 = vmatprep.subr.mxu0 0.0
      %1663 = vmatpush1.msra.mxu0 0.0
      %1664 = vmatprep.subr.mxu0 0.0
      %1665 = vmatpush1.msra.mxu0 0.0
      %1666 = vmatprep.subr.mxu0 0.0
      %1667 = vmatpush1.msra.mxu0 0.0
      %1668 = vmatprep.subr.mxu0 0.0
      %1669 = vmatpush1.msra.mxu0 0.0
      %1670 = vmatprep.subr.mxu0 0.0
      %1671 = vmatpush1.msra.mxu0 0.0
      %1672 = vmatprep.subr.mxu0 0.0
      %1673 = vmatpush1.msra.mxu0 0.0
      %1674 = vmatprep.subr.mxu0 0.0
      %1675 = vmatpush1.msra.mxu0 0.0
      %1676 = vmatprep.subr.mxu0 0.0
      %1677 = vmatpush1.msra.mxu0 0.0
      %1678 = vmatprep.subr.mxu0 0.0
      %1679 = vmatpush1.msra.mxu0 0.0
      %1680 = vmatprep.subr.mxu0 0.0
      %1681 = vmatpush1.msra.mxu0 0.0
      %1682 = vmatprep.subr.mxu0 0.0
      %1683 = vmatpush1.msra.mxu0 0.0
      %1684 = vmatprep.subr.mxu0 0.0
      %1685 = vmatpush1.msra.mxu0 0.0
      %1686 = vmatprep.subr.mxu0 0.0
      %1687 = vmatpush1.msra.mxu0 0.0
      %1688 = vmatprep.subr.mxu0 0.0
      %1689 = vmatpush1.msra.mxu0 0.0
      %1690 = vmatprep.subr.mxu0 0.0
      %1691 = vmatpush1.msra.mxu0 0.0
      %1692 = vmatprep.subr.mxu0 0.0
      %1693 = vmatpush1.msra.mxu0 0.0
      %1694 = vmatprep.subr.mxu0 0.0
      %1695 = vmatpush1.msra.mxu0 0.0
      %1696 = vmatprep.subr.mxu0 0.0
      %1697 = vmatpush1.msra.mxu0 0.0
      %1698 = vmatprep.subr.mxu0 0.0
      %1699 = vmatpush1.msra.mxu0 0.0
      %1700 = vmatprep.subr.mxu0 0.0
      %1701 = vmatpush1.msra.mxu0 0.0
      %1702 = vmatprep.mubr.f32.mxu0 0.0
      %1703 = vmatmul.mubr.f32.gmra.mrb[0].mxu0 %v1633
      %v1704 = vpop.f32.mrb[0].mxu0
      %v1705 = vadd.f32 0.0, %v1704
      %v1706 = vpop.f32.mrb[0].mxu0
      %1707 = vmatprep.mubr.f32.mxu0 0.0
      %1708 = vmatmul.mubr.f32.gmra.mrb[0].mxu0 %v1636
      %v1709 = vpop.f32.mrb[0].mxu0
      %v1710 = vadd.f32 0.0, %v1709
      %v1711 = vpop.f32.mrb[0].mxu0
      %1712 = vdwg.mxu0
      %v1714 = vsel %vm1462, %v1547, 0
      %v1717 = vsel %vm1462, %v1548, 0
      %1719 = vmatprep.subr.mxu0 0.0
      %1720 = vmatpush1.msra.mxu0 %v1077
      %1721 = vmatprep.subr.mxu0 0.0
      %1722 = vmatpush1.msra.mxu0 %v1082
      %1723 = vmatprep.subr.mxu0 0.0
      %1724 = vmatpush1.msra.mxu0 0.0
      %1725 = vmatprep.subr.mxu0 0.0
      %1726 = vmatpush1.msra.mxu0 0.0
      %1727 = vmatprep.subr.mxu0 0.0
      %1728 = vmatpush1.msra.mxu0 0.0
      %1729 = vmatprep.subr.mxu0 0.0
      %1730 = vmatpush1.msra.mxu0 0.0
      %1731 = vmatprep.subr.mxu0 0.0
      %1732 = vmatpush1.msra.mxu0 0.0
      %1733 = vmatprep.subr.mxu0 0.0
      %1734 = vmatpush1.msra.mxu0 0.0
      %1735 = vmatprep.subr.mxu0 0.0
      %1736 = vmatpush1.msra.mxu0 0.0
      %1737 = vmatprep.subr.mxu0 0.0
      %1738 = vmatpush1.msra.mxu0 0.0
      %1739 = vmatprep.subr.mxu0 0.0
      %1740 = vmatpush1.msra.mxu0 0.0
      %1741 = vmatprep.subr.mxu0 0.0
      %1742 = vmatpush1.msra.mxu0 0.0
      %1743 = vmatprep.subr.mxu0 0.0
      %1744 = vmatpush1.msra.mxu0 0.0
      %1745 = vmatprep.subr.mxu0 0.0
      %1746 = vmatpush1.msra.mxu0 0.0
      %1747 = vmatprep.subr.mxu0 0.0
      %1748 = vmatpush1.msra.mxu0 0.0
      %1749 = vmatprep.subr.mxu0 0.0
      %1750 = vmatpush1.msra.mxu0 0.0
      %1751 = vmatprep.subr.mxu0 0.0
      %1752 = vmatpush1.msra.mxu0 0.0
      %1753 = vmatprep.subr.mxu0 0.0
      %1754 = vmatpush1.msra.mxu0 0.0
      %1755 = vmatprep.subr.mxu0 0.0
      %1756 = vmatpush1.msra.mxu0 0.0
      %1757 = vmatprep.subr.mxu0 0.0
      %1758 = vmatpush1.msra.mxu0 0.0
      %1759 = vmatprep.subr.mxu0 0.0
      %1760 = vmatpush1.msra.mxu0 0.0
      %1761 = vmatprep.subr.mxu0 0.0
      %1762 = vmatpush1.msra.mxu0 0.0
      %1763 = vmatprep.subr.mxu0 0.0
      %1764 = vmatpush1.msra.mxu0 0.0
      %1765 = vmatprep.subr.mxu0 0.0
      %1766 = vmatpush1.msra.mxu0 0.0
      %1767 = vmatprep.subr.mxu0 0.0
      %1768 = vmatpush1.msra.mxu0 0.0
      %1769 = vmatprep.subr.mxu0 0.0
      %1770 = vmatpush1.msra.mxu0 0.0
      %1771 = vmatprep.subr.mxu0 0.0
      %1772 = vmatpush1.msra.mxu0 0.0
      %1773 = vmatprep.subr.mxu0 0.0
      %1774 = vmatpush1.msra.mxu0 0.0
      %1775 = vmatprep.subr.mxu0 0.0
      %1776 = vmatpush1.msra.mxu0 0.0
      %1777 = vmatprep.subr.mxu0 0.0
      %1778 = vmatpush1.msra.mxu0 0.0
      %1779 = vmatprep.subr.mxu0 0.0
      %1780 = vmatpush1.msra.mxu0 0.0
      %1781 = vmatprep.subr.mxu0 0.0
      %1782 = vmatpush1.msra.mxu0 0.0
      %1783 = vmatprep.mubr.f32.mxu0 0.0
      %1784 = vmatmul.mubr.f32.gmra.mrb[0].mxu0 %v1714
      %v1785 = vpop.f32.mrb[0].mxu0
      %v1786 = vadd.f32 0.0, %v1785
      %v1787 = vpop.f32.mrb[0].mxu0
      %1788 = vmatprep.mubr.f32.mxu0 0.0
      %1789 = vmatmul.mubr.f32.gmra.mrb[0].mxu0 %v1717
      %v1790 = vpop.f32.mrb[0].mxu0
      %v1791 = vadd.f32 0.0, %v1790
      %v1792 = vpop.f32.mrb[0].mxu0
      %1793 = vdwg.mxu0
      %v1795 = vsel %vm1462, %v1549, 0
      %v1798 = vsel %vm1462, %v1550, 0
      %1800 = vmatprep.subr.mxu0 0.0
      %1801 = vmatpush1.msra.mxu0 %v1087
      %1802 = vmatprep.subr.mxu0 0.0
      %1803 = vmatpush1.msra.mxu0 %v1092
      %1804 = vmatprep.subr.mxu0 0.0
      %1805 = vmatpush1.msra.mxu0 0.0
      %1806 = vmatprep.subr.mxu0 0.0
      %1807 = vmatpush1.msra.mxu0 0.0
      %1808 = vmatprep.subr.mxu0 0.0
      %1809 = vmatpush1.msra.mxu0 0.0
      %1810 = vmatprep.subr.mxu0 0.0
      %1811 = vmatpush1.msra.mxu0 0.0
      %1812 = vmatprep.subr.mxu0 0.0
      %1813 = vmatpush1.msra.mxu0 0.0
      %1814 = vmatprep.subr.mxu0 0.0
      %1815 = vmatpush1.msra.mxu0 0.0
      %1816 = vmatprep.subr.mxu0 0.0
      %1817 = vmatpush1.msra.mxu0 0.0
      %1818 = vmatprep.subr.mxu0 0.0
      %1819 = vmatpush1.msra.mxu0 0.0
      %1820 = vmatprep.subr.mxu0 0.0
      %1821 = vmatpush1.msra.mxu0 0.0
      %1822 = vmatprep.subr.mxu0 0.0
      %1823 = vmatpush1.msra.mxu0 0.0
      %1824 = vmatprep.subr.mxu0 0.0
      %1825 = vmatpush1.msra.mxu0 0.0
      %1826 = vmatprep.subr.mxu0 0.0
      %1827 = vmatpush1.msra.mxu0 0.0
      %1828 = vmatprep.subr.mxu0 0.0
      %1829 = vmatpush1.msra.mxu0 0.0
      %1830 = vmatprep.subr.mxu0 0.0
      %1831 = vmatpush1.msra.mxu0 0.0
      %1832 = vmatprep.subr.mxu0 0.0
      %1833 = vmatpush1.msra.mxu0 0.0
      %1834 = vmatprep.subr.mxu0 0.0
      %1835 = vmatpush1.msra.mxu0 0.0
      %1836 = vmatprep.subr.mxu0 0.0
      %1837 = vmatpush1.msra.mxu0 0.0
      %1838 = vmatprep.subr.mxu0 0.0
      %1839 = vmatpush1.msra.mxu0 0.0
      %1840 = vmatprep.subr.mxu0 0.0
      %1841 = vmatpush1.msra.mxu0 0.0
      %1842 = vmatprep.subr.mxu0 0.0
      %1843 = vmatpush1.msra.mxu0 0.0
      %1844 = vmatprep.subr.mxu0 0.0
      %1845 = vmatpush1.msra.mxu0 0.0
      %1846 = vmatprep.subr.mxu0 0.0
      %1847 = vmatpush1.msra.mxu0 0.0
      %1848 = vmatprep.subr.mxu0 0.0
      %1849 = vmatpush1.msra.mxu0 0.0
      %1850 = vmatprep.subr.mxu0 0.0
      %1851 = vmatpush1.msra.mxu0 0.0
      %1852 = vmatprep.subr.mxu0 0.0
      %1853 = vmatpush1.msra.mxu0 0.0
      %1854 = vmatprep.subr.mxu0 0.0
      %1855 = vmatpush1.msra.mxu0 0.0
      %1856 = vmatprep.subr.mxu0 0.0
      %1857 = vmatpush1.msra.mxu0 0.0
      %1858 = vmatprep.subr.mxu0 0.0
      %1859 = vmatpush1.msra.mxu0 0.0
      %1860 = vmatprep.subr.mxu0 0.0
      %1861 = vmatpush1.msra.mxu0 0.0
      %1862 = vmatprep.subr.mxu0 0.0
      %1863 = vmatpush1.msra.mxu0 0.0
      %1864 = vmatprep.mubr.f32.mxu0 0.0
      %1865 = vmatmul.mubr.f32.gmra.mrb[0].mxu0 %v1795
      %v1866 = vpop.f32.mrb[0].mxu0
      %v1867 = vadd.f32 0.0, %v1866
      %v1868 = vpop.f32.mrb[0].mxu0
      %1869 = vmatprep.mubr.f32.mxu0 0.0
      %1870 = vmatmul.mubr.f32.gmra.mrb[0].mxu0 %v1798
      %v1871 = vpop.f32.mrb[0].mxu0
      %v1872 = vadd.f32 0.0, %v1871
      %v1873 = vpop.f32.mrb[0].mxu0
      %1874 = vdwg.mxu0
      %v1875 = vld [vmem:[%s9] sm:$0xff]
      %1876 = vrot.lane.b32.xlu0 %v825, 120
      %v1877 = vpop.permute.xlu0 %1876
      %1878 = vrot.lane.b32.xlu0 %v830, 120
      %v1879 = vpop.permute.xlu0 %1878
      %1880 = vrot.lane.b32.xlu0 %v941, 120
      %v1881 = vpop.permute.xlu0 %1880
      %1882 = vrot.lane.b32.xlu0 %v946, 120
      %v1883 = vpop.permute.xlu0 %1882
      %v1884 = vsel %vm1095, %v1877, 0
      %v1886 = vsel %vm1095, %v1879, 0
      %v1888 = vsel %vm1095, %v1881, 0
      %v1890 = vsel %vm1095, %v1883, 0
      %1892 = vmatprep.subr.mxu0 0.0
      %1893 = vmatpush1.xpose.msra.mxu0 %v1888
      %1894 = vmatprep.subr.mxu0 0.0
      %1895 = vmatpush1.xpose.msra.mxu0 %v1890
      %1896 = vmatprep.subr.mxu0 0.0
      %1897 = vmatpush1.xpose.msra.mxu0 0.0
      %1898 = vmatprep.subr.mxu0 0.0
      %1899 = vmatpush1.xpose.msra.mxu0 0.0
      %1900 = vmatprep.subr.mxu0 0.0
      %1901 = vmatpush1.xpose.msra.mxu0 0.0
      %1902 = vmatprep.subr.mxu0 0.0
      %1903 = vmatpush1.xpose.msra.mxu0 0.0
      %1904 = vmatprep.subr.mxu0 0.0
      %1905 = vmatpush1.xpose.msra.mxu0 0.0
      %1906 = vmatprep.subr.mxu0 0.0
      %1907 = vmatpush1.xpose.msra.mxu0 0.0
      %1908 = vmatprep.subr.mxu0 0.0
      %1909 = vmatpush1.xpose.msra.mxu0 0.0
      %1910 = vmatprep.subr.mxu0 0.0
      %1911 = vmatpush1.xpose.msra.mxu0 0.0
      %1912 = vmatprep.subr.mxu0 0.0
      %1913 = vmatpush1.xpose.msra.mxu0 0.0
      %1914 = vmatprep.subr.mxu0 0.0
      %1915 = vmatpush1.xpose.msra.mxu0 0.0
      %1916 = vmatprep.subr.mxu0 0.0
      %1917 = vmatpush1.xpose.msra.mxu0 0.0
      %1918 = vmatprep.subr.mxu0 0.0
      %1919 = vmatpush1.xpose.msra.mxu0 0.0
      %1920 = vmatprep.subr.mxu0 0.0
      %1921 = vmatpush1.xpose.msra.mxu0 0.0
      %1922 = vmatprep.subr.mxu0 0.0
      %1923 = vmatpush1.xpose.msra.mxu0 0.0
      %1924 = vmatprep.subr.mxu0 0.0
      %1925 = vmatpush1.xpose.msra.mxu0 0.0
      %1926 = vmatprep.subr.mxu0 0.0
      %1927 = vmatpush1.xpose.msra.mxu0 0.0
      %1928 = vmatprep.subr.mxu0 0.0
      %1929 = vmatpush1.xpose.msra.mxu0 0.0
      %1930 = vmatprep.subr.mxu0 0.0
      %1931 = vmatpush1.xpose.msra.mxu0 0.0
      %1932 = vmatprep.subr.mxu0 0.0
      %1933 = vmatpush1.xpose.msra.mxu0 0.0
      %1934 = vmatprep.subr.mxu0 0.0
      %1935 = vmatpush1.xpose.msra.mxu0 0.0
      %1936 = vmatprep.subr.mxu0 0.0
      %1937 = vmatpush1.xpose.msra.mxu0 0.0
      %1938 = vmatprep.subr.mxu0 0.0
      %1939 = vmatpush1.xpose.msra.mxu0 0.0
      %1940 = vmatprep.subr.mxu0 0.0
      %1941 = vmatpush1.xpose.msra.mxu0 0.0
      %1942 = vmatprep.subr.mxu0 0.0
      %1943 = vmatpush1.xpose.msra.mxu0 0.0
      %1944 = vmatprep.subr.mxu0 0.0
      %1945 = vmatpush1.xpose.msra.mxu0 0.0
      %1946 = vmatprep.subr.mxu0 0.0
      %1947 = vmatpush1.xpose.msra.mxu0 0.0
      %1948 = vmatprep.subr.mxu0 0.0
      %1949 = vmatpush1.xpose.msra.mxu0 0.0
      %1950 = vmatprep.subr.mxu0 0.0
      %1951 = vmatpush1.xpose.msra.mxu0 0.0
      %1952 = vmatprep.subr.mxu0 0.0
      %1953 = vmatpush1.xpose.msra.mxu0 0.0
      %1954 = vmatprep.subr.mxu0 0.0
      %1955 = vmatpush1.xpose.msra.mxu0 0.0
      %1956 = vmatprep.mubr.f32.mxu0 0.0
      %1957 = vmatmul.mubr.f32.gmra.mrb[0].mxu0 %v1884
      %v1958 = vpop.f32.mrb[0].mxu0
      %v1959 = vadd.f32 0.0, %v1958
      %v1960 = vpop.f32.mrb[0].mxu0
      %1961 = vmatprep.mubr.f32.mxu0 0.0
      %1962 = vmatmul.mubr.f32.gmra.mrb[0].mxu0 %v1886
      %v1963 = vpop.f32.mrb[0].mxu0
      %v1964 = vadd.f32 0.0, %v1963
      %v1965 = vpop.f32.mrb[0].mxu0
      %1966 = vdwg.mxu0
      %1967 = vrot.lane.b32.xlu0 %v835, 120
      %v1968 = vpop.permute.xlu0 %1967
      %1969 = vrot.lane.b32.xlu0 %v840, 120
      %v1970 = vpop.permute.xlu0 %1969
      %1971 = vrot.lane.b32.xlu0 %v951, 120
      %v1972 = vpop.permute.xlu0 %1971
      %1973 = vrot.lane.b32.xlu0 %v956, 120
      %v1974 = vpop.permute.xlu0 %1973
      %v1975 = vsel %vm1095, %v1968, 0
      %v1977 = vsel %vm1095, %v1970, 0
      %v1979 = vsel %vm1095, %v1972, 0
      %v1981 = vsel %vm1095, %v1974, 0
      %1983 = vmatprep.subr.mxu0 0.0
      %1984 = vmatpush1.xpose.msra.mxu0 %v1979
      %1985 = vmatprep.subr.mxu0 0.0
      %1986 = vmatpush1.xpose.msra.mxu0 %v1981
      %1987 = vmatprep.subr.mxu0 0.0
      %1988 = vmatpush1.xpose.msra.mxu0 0.0
      %1989 = vmatprep.subr.mxu0 0.0
      %1990 = vmatpush1.xpose.msra.mxu0 0.0
      %1991 = vmatprep.subr.mxu0 0.0
      %1992 = vmatpush1.xpose.msra.mxu0 0.0
      %1993 = vmatprep.subr.mxu0 0.0
      %1994 = vmatpush1.xpose.msra.mxu0 0.0
      %1995 = vmatprep.subr.mxu0 0.0
      %1996 = vmatpush1.xpose.msra.mxu0 0.0
      %1997 = vmatprep.subr.mxu0 0.0
      %1998 = vmatpush1.xpose.msra.mxu0 0.0
      %1999 = vmatprep.subr.mxu0 0.0
      %2000 = vmatpush1.xpose.msra.mxu0 0.0
      %2001 = vmatprep.subr.mxu0 0.0
      %2002 = vmatpush1.xpose.msra.mxu0 0.0
      %2003 = vmatprep.subr.mxu0 0.0
      %2004 = vmatpush1.xpose.msra.mxu0 0.0
      %2005 = vmatprep.subr.mxu0 0.0
      %2006 = vmatpush1.xpose.msra.mxu0 0.0
      %2007 = vmatprep.subr.mxu0 0.0
      %2008 = vmatpush1.xpose.msra.mxu0 0.0
      %2009 = vmatprep.subr.mxu0 0.0
      %2010 = vmatpush1.xpose.msra.mxu0 0.0
      %2011 = vmatprep.subr.mxu0 0.0
      %2012 = vmatpush1.xpose.msra.mxu0 0.0
      %2013 = vmatprep.subr.mxu0 0.0
      %2014 = vmatpush1.xpose.msra.mxu0 0.0
      %2015 = vmatprep.subr.mxu0 0.0
      %2016 = vmatpush1.xpose.msra.mxu0 0.0
      %2017 = vmatprep.subr.mxu0 0.0
      %2018 = vmatpush1.xpose.msra.mxu0 0.0
      %2019 = vmatprep.subr.mxu0 0.0
      %2020 = vmatpush1.xpose.msra.mxu0 0.0
      %2021 = vmatprep.subr.mxu0 0.0
      %2022 = vmatpush1.xpose.msra.mxu0 0.0
      %2023 = vmatprep.subr.mxu0 0.0
      %2024 = vmatpush1.xpose.msra.mxu0 0.0
      %2025 = vmatprep.subr.mxu0 0.0
      %2026 = vmatpush1.xpose.msra.mxu0 0.0
      %2027 = vmatprep.subr.mxu0 0.0
      %2028 = vmatpush1.xpose.msra.mxu0 0.0
      %2029 = vmatprep.subr.mxu0 0.0
      %2030 = vmatpush1.xpose.msra.mxu0 0.0
      %2031 = vmatprep.subr.mxu0 0.0
      %2032 = vmatpush1.xpose.msra.mxu0 0.0
      %2033 = vmatprep.subr.mxu0 0.0
      %2034 = vmatpush1.xpose.msra.mxu0 0.0
      %2035 = vmatprep.subr.mxu0 0.0
      %2036 = vmatpush1.xpose.msra.mxu0 0.0
      %2037 = vmatprep.subr.mxu0 0.0
      %2038 = vmatpush1.xpose.msra.mxu0 0.0
      %2039 = vmatprep.subr.mxu0 0.0
      %2040 = vmatpush1.xpose.msra.mxu0 0.0
      %2041 = vmatprep.subr.mxu0 0.0
      %2042 = vmatpush1.xpose.msra.mxu0 0.0
      %2043 = vmatprep.subr.mxu0 0.0
      %2044 = vmatpush1.xpose.msra.mxu0 0.0
      %2045 = vmatprep.subr.mxu0 0.0
      %2046 = vmatpush1.xpose.msra.mxu0 0.0
      %2047 = vmatprep.mubr.f32.mxu0 0.0
      %2048 = vmatmul.mubr.f32.gmra.mrb[0].mxu0 %v1975
      %v2049 = vpop.f32.mrb[0].mxu0
      %v2050 = vadd.f32 0.0, %v2049
      %v2051 = vpop.f32.mrb[0].mxu0
      %2052 = vmatprep.mubr.f32.mxu0 0.0
      %2053 = vmatmul.mubr.f32.gmra.mrb[0].mxu0 %v1977
      %v2054 = vpop.f32.mrb[0].mxu0
      %v2055 = vadd.f32 0.0, %v2054
      %v2056 = vpop.f32.mrb[0].mxu0
      %2057 = vdwg.mxu0
      %2058 = vrot.lane.b32.xlu0 %v845, 120
      %v2059 = vpop.permute.xlu0 %2058
      %2060 = vrot.lane.b32.xlu0 %v850, 120
      %v2061 = vpop.permute.xlu0 %2060
      %2062 = vrot.lane.b32.xlu0 %v961, 120
      %v2063 = vpop.permute.xlu0 %2062
      %2064 = vrot.lane.b32.xlu0 %v966, 120
      %v2065 = vpop.permute.xlu0 %2064
      %v2066 = vsel %vm1095, %v2059, 0
      %v2068 = vsel %vm1095, %v2061, 0
      %v2070 = vsel %vm1095, %v2063, 0
      %v2072 = vsel %vm1095, %v2065, 0
      %2074 = vmatprep.subr.mxu0 0.0
      %2075 = vmatpush1.xpose.msra.mxu0 %v2070
      %2076 = vmatprep.subr.mxu0 0.0
      %2077 = vmatpush1.xpose.msra.mxu0 %v2072
      %2078 = vmatprep.subr.mxu0 0.0
      %2079 = vmatpush1.xpose.msra.mxu0 0.0
      %2080 = vmatprep.subr.mxu0 0.0
      %2081 = vmatpush1.xpose.msra.mxu0 0.0
      %2082 = vmatprep.subr.mxu0 0.0
      %2083 = vmatpush1.xpose.msra.mxu0 0.0
      %2084 = vmatprep.subr.mxu0 0.0
      %2085 = vmatpush1.xpose.msra.mxu0 0.0
      %2086 = vmatprep.subr.mxu0 0.0
      %2087 = vmatpush1.xpose.msra.mxu0 0.0
      %2088 = vmatprep.subr.mxu0 0.0
      %2089 = vmatpush1.xpose.msra.mxu0 0.0
      %2090 = vmatprep.subr.mxu0 0.0
      %2091 = vmatpush1.xpose.msra.mxu0 0.0
      %2092 = vmatprep.subr.mxu0 0.0
      %2093 = vmatpush1.xpose.msra.mxu0 0.0
      %2094 = vmatprep.subr.mxu0 0.0
      %2095 = vmatpush1.xpose.msra.mxu0 0.0
      %2096 = vmatprep.subr.mxu0 0.0
      %2097 = vmatpush1.xpose.msra.mxu0 0.0
      %2098 = vmatprep.subr.mxu0 0.0
      %2099 = vmatpush1.xpose.msra.mxu0 0.0
      %2100 = vmatprep.subr.mxu0 0.0
      %2101 = vmatpush1.xpose.msra.mxu0 0.0
      %2102 = vmatprep.subr.mxu0 0.0
      %2103 = vmatpush1.xpose.msra.mxu0 0.0
      %2104 = vmatprep.subr.mxu0 0.0
      %2105 = vmatpush1.xpose.msra.mxu0 0.0
      %2106 = vmatprep.subr.mxu0 0.0
      %2107 = vmatpush1.xpose.msra.mxu0 0.0
      %2108 = vmatprep.subr.mxu0 0.0
      %2109 = vmatpush1.xpose.msra.mxu0 0.0
      %2110 = vmatprep.subr.mxu0 0.0
      %2111 = vmatpush1.xpose.msra.mxu0 0.0
      %2112 = vmatprep.subr.mxu0 0.0
      %2113 = vmatpush1.xpose.msra.mxu0 0.0
      %2114 = vmatprep.subr.mxu0 0.0
      %2115 = vmatpush1.xpose.msra.mxu0 0.0
      %2116 = vmatprep.subr.mxu0 0.0
      %2117 = vmatpush1.xpose.msra.mxu0 0.0
      %2118 = vmatprep.subr.mxu0 0.0
      %2119 = vmatpush1.xpose.msra.mxu0 0.0
      %2120 = vmatprep.subr.mxu0 0.0
      %2121 = vmatpush1.xpose.msra.mxu0 0.0
      %2122 = vmatprep.subr.mxu0 0.0
      %2123 = vmatpush1.xpose.msra.mxu0 0.0
      %2124 = vmatprep.subr.mxu0 0.0
      %2125 = vmatpush1.xpose.msra.mxu0 0.0
      %2126 = vmatprep.subr.mxu0 0.0
      %2127 = vmatpush1.xpose.msra.mxu0 0.0
      %2128 = vmatprep.subr.mxu0 0.0
      %2129 = vmatpush1.xpose.msra.mxu0 0.0
      %2130 = vmatprep.subr.mxu0 0.0
      %2131 = vmatpush1.xpose.msra.mxu0 0.0
      %2132 = vmatprep.subr.mxu0 0.0
      %2133 = vmatpush1.xpose.msra.mxu0 0.0
      %2134 = vmatprep.subr.mxu0 0.0
      %2135 = vmatpush1.xpose.msra.mxu0 0.0
      %2136 = vmatprep.subr.mxu0 0.0
      %2137 = vmatpush1.xpose.msra.mxu0 0.0
      %2138 = vmatprep.mubr.f32.mxu0 0.0
      %2139 = vmatmul.mubr.f32.gmra.mrb[0].mxu0 %v2066
      %v2140 = vpop.f32.mrb[0].mxu0
      %v2141 = vadd.f32 0.0, %v2140
      %v2142 = vpop.f32.mrb[0].mxu0
      %2143 = vmatprep.mubr.f32.mxu0 0.0
      %2144 = vmatmul.mubr.f32.gmra.mrb[0].mxu0 %v2068
      %v2145 = vpop.f32.mrb[0].mxu0
      %v2146 = vadd.f32 0.0, %v2145
      %v2147 = vpop.f32.mrb[0].mxu0
      %2148 = vdwg.mxu0
      %2149 = vrot.lane.b32.xlu0 %v855, 120
      %v2150 = vpop.permute.xlu0 %2149
      %2151 = vrot.lane.b32.xlu0 %v860, 120
      %v2152 = vpop.permute.xlu0 %2151
      %2153 = vrot.lane.b32.xlu0 %v971, 120
      %v2154 = vpop.permute.xlu0 %2153
      %2155 = vrot.lane.b32.xlu0 %v976, 120
      %v2156 = vpop.permute.xlu0 %2155
      %v2157 = vsel %vm1095, %v2150, 0
      %v2159 = vsel %vm1095, %v2152, 0
      %v2161 = vsel %vm1095, %v2154, 0
      %v2163 = vsel %vm1095, %v2156, 0
      %2165 = vmatprep.subr.mxu0 0.0
      %2166 = vmatpush1.xpose.msra.mxu0 %v2161
      %2167 = vmatprep.subr.mxu0 0.0
      %2168 = vmatpush1.xpose.msra.mxu0 %v2163
      %2169 = vmatprep.subr.mxu0 0.0
      %2170 = vmatpush1.xpose.msra.mxu0 0.0
      %2171 = vmatprep.subr.mxu0 0.0
      %2172 = vmatpush1.xpose.msra.mxu0 0.0
      %2173 = vmatprep.subr.mxu0 0.0
      %2174 = vmatpush1.xpose.msra.mxu0 0.0
      %2175 = vmatprep.subr.mxu0 0.0
      %2176 = vmatpush1.xpose.msra.mxu0 0.0
      %2177 = vmatprep.subr.mxu0 0.0
      %2178 = vmatpush1.xpose.msra.mxu0 0.0
      %2179 = vmatprep.subr.mxu0 0.0
      %2180 = vmatpush1.xpose.msra.mxu0 0.0
      %2181 = vmatprep.subr.mxu0 0.0
      %2182 = vmatpush1.xpose.msra.mxu0 0.0
      %2183 = vmatprep.subr.mxu0 0.0
      %2184 = vmatpush1.xpose.msra.mxu0 0.0
      %2185 = vmatprep.subr.mxu0 0.0
      %2186 = vmatpush1.xpose.msra.mxu0 0.0
      %2187 = vmatprep.subr.mxu0 0.0
      %2188 = vmatpush1.xpose.msra.mxu0 0.0
      %2189 = vmatprep.subr.mxu0 0.0
      %2190 = vmatpush1.xpose.msra.mxu0 0.0
      %2191 = vmatprep.subr.mxu0 0.0
      %2192 = vmatpush1.xpose.msra.mxu0 0.0
      %2193 = vmatprep.subr.mxu0 0.0
      %2194 = vmatpush1.xpose.msra.mxu0 0.0
      %2195 = vmatprep.subr.mxu0 0.0
      %2196 = vmatpush1.xpose.msra.mxu0 0.0
      %2197 = vmatprep.subr.mxu0 0.0
      %2198 = vmatpush1.xpose.msra.mxu0 0.0
      %2199 = vmatprep.subr.mxu0 0.0
      %2200 = vmatpush1.xpose.msra.mxu0 0.0
      %2201 = vmatprep.subr.mxu0 0.0
      %2202 = vmatpush1.xpose.msra.mxu0 0.0
      %2203 = vmatprep.subr.mxu0 0.0
      %2204 = vmatpush1.xpose.msra.mxu0 0.0
      %2205 = vmatprep.subr.mxu0 0.0
      %2206 = vmatpush1.xpose.msra.mxu0 0.0
      %2207 = vmatprep.subr.mxu0 0.0
      %2208 = vmatpush1.xpose.msra.mxu0 0.0
      %2209 = vmatprep.subr.mxu0 0.0
      %2210 = vmatpush1.xpose.msra.mxu0 0.0
      %2211 = vmatprep.subr.mxu0 0.0
      %2212 = vmatpush1.xpose.msra.mxu0 0.0
      %2213 = vmatprep.subr.mxu0 0.0
      %2214 = vmatpush1.xpose.msra.mxu0 0.0
      %2215 = vmatprep.subr.mxu0 0.0
      %2216 = vmatpush1.xpose.msra.mxu0 0.0
      %2217 = vmatprep.subr.mxu0 0.0
      %2218 = vmatpush1.xpose.msra.mxu0 0.0
      %2219 = vmatprep.subr.mxu0 0.0
      %2220 = vmatpush1.xpose.msra.mxu0 0.0
      %2221 = vmatprep.subr.mxu0 0.0
      %2222 = vmatpush1.xpose.msra.mxu0 0.0
      %2223 = vmatprep.subr.mxu0 0.0
      %2224 = vmatpush1.xpose.msra.mxu0 0.0
      %2225 = vmatprep.subr.mxu0 0.0
      %2226 = vmatpush1.xpose.msra.mxu0 0.0
      %2227 = vmatprep.subr.mxu0 0.0
      %2228 = vmatpush1.xpose.msra.mxu0 0.0
      %2229 = vmatprep.mubr.f32.mxu0 0.0
      %2230 = vmatmul.mubr.f32.gmra.mrb[0].mxu0 %v2157
      %v2231 = vpop.f32.mrb[0].mxu0
      %v2232 = vadd.f32 0.0, %v2231
      %v2233 = vpop.f32.mrb[0].mxu0
      %2234 = vmatprep.mubr.f32.mxu0 0.0
      %2235 = vmatmul.mubr.f32.gmra.mrb[0].mxu0 %v2159
      %v2236 = vpop.f32.mrb[0].mxu0
      %v2237 = vadd.f32 0.0, %v2236
      %v2238 = vpop.f32.mrb[0].mxu0
      %2239 = vdwg.mxu0
      %v2240 = vmul.f32 %v1959, 0.17677669
      %v2241 = vmul.f32 %v1964, 0.17677669
      %v2242 = vmul.f32 %v2050, 0.17677669
      %v2243 = vmul.f32 %v2055, 0.17677669
      %v2244 = vmul.f32 %v2141, 0.17677669
      %v2245 = vmul.f32 %v2146, 0.17677669
      %v2246 = vmul.f32 %v2232, 0.17677669
      %v2247 = vmul.f32 %v2237, 0.17677669
      %s2248 = scalar_lea.vmem %s11, 16
      %v2249 = vld [vmem:[%s2248] sm:$0xff]
      %v2250 = vld [vmem:[%s2248 + $0x8] sm:$0xff]
      %v2251 = vadd.f32 %v2240, %v2249
      %v2252 = vadd.f32 %v2241, %v2250
      %v2253 = vadd.f32 %v2242, %v2249
      %v2254 = vadd.f32 %v2243, %v2250
      %v2255 = vadd.f32 %v2244, %v2249
      %v2256 = vadd.f32 %v2245, %v2250
      %v2257 = vadd.f32 %v2246, %v2249
      %v2258 = vadd.f32 %v2247, %v2250
      %v2259 = vsel %vm1462, %v2251, -inf
      %2260 = vmax.xlane.f32.xlu0 %v2259
      %v2261 = vpop.xlane.xlu0 %2260
      %v2262 = vsel %vm1462, %v2252, -inf
      %2263 = vmax.xlane.f32.xlu0 %v2262
      %v2264 = vpop.xlane.xlu0 %2263
      %v2265 = vsel %vm1462, %v2253, -inf
      %2266 = vmax.xlane.f32.xlu0 %v2265
      %v2267 = vpop.xlane.xlu0 %2266
      %v2268 = vsel %vm1462, %v2254, -inf
      %2269 = vmax.xlane.f32.xlu0 %v2268
      %v2270 = vpop.xlane.xlu0 %2269
      %v2271 = vsel %vm1462, %v2255, -inf
      %2272 = vmax.xlane.f32.xlu0 %v2271
      %v2273 = vpop.xlane.xlu0 %2272
      %v2274 = vsel %vm1462, %v2256, -inf
      %2275 = vmax.xlane.f32.xlu0 %v2274
      %v2276 = vpop.xlane.xlu0 %2275
      %v2277 = vsel %vm1462, %v2257, -inf
      %2278 = vmax.xlane.f32.xlu0 %v2277
      %v2279 = vpop.xlane.xlu0 %2278
      %v2280 = vsel %vm1462, %v2258, -inf
      %2281 = vmax.xlane.f32.xlu0 %v2280
      %v2282 = vpop.xlane.xlu0 %2281
      %v2283 = vsub.f32 %v2251, %v2261
      %v2284 = vsub.f32 %v2252, %v2264
      %v2285 = vsub.f32 %v2253, %v2267
      %v2286 = vsub.f32 %v2254, %v2270
      %v2287 = vsub.f32 %v2255, %v2273
      %v2288 = vsub.f32 %v2256, %v2276
      %v2289 = vsub.f32 %v2257, %v2279
      %v2290 = vsub.f32 %v2258, %v2282
      %v2291 = vmul.f32 %v2283, 1.442695
      %v2292 = vpow.pop %v2291
      %v2293 = vmul.f32 %v2284, 1.442695
      %v2294 = vpow.pop %v2293
      %v2295 = vmul.f32 %v2285, 1.442695
      %v2296 = vpow.pop %v2295
      %v2297 = vmul.f32 %v2286, 1.442695
      %v2298 = vpow.pop %v2297
      %v2299 = vmul.f32 %v2287, 1.442695
      %v2300 = vpow.pop %v2299
      %v2301 = vmul.f32 %v2288, 1.442695
      %v2302 = vpow.pop %v2301
      %v2303 = vmul.f32 %v2289, 1.442695
      %v2304 = vpow.pop %v2303
      %v2305 = vmul.f32 %v2290, 1.442695
      %v2306 = vpow.pop %v2305
      %v2307 = vsel %vm1462, %v2292, 0.0
      %2308 = vadd.xlane.f32.xlu0 %v2307
      %v2309 = vpop.xlane.xlu0 %2308
      %v2310 = vsel %vm1462, %v2294, 0.0
      %2311 = vadd.xlane.f32.xlu0 %v2310
      %v2312 = vpop.xlane.xlu0 %2311
      %v2313 = vsel %vm1462, %v2296, 0.0
      %2314 = vadd.xlane.f32.xlu0 %v2313
      %v2315 = vpop.xlane.xlu0 %2314
      %v2316 = vsel %vm1462, %v2298, 0.0
      %2317 = vadd.xlane.f32.xlu0 %v2316
      %v2318 = vpop.xlane.xlu0 %2317
      %v2319 = vsel %vm1462, %v2300, 0.0
      %2320 = vadd.xlane.f32.xlu0 %v2319
      %v2321 = vpop.xlane.xlu0 %2320
      %v2322 = vsel %vm1462, %v2302, 0.0
      %2323 = vadd.xlane.f32.xlu0 %v2322
      %v2324 = vpop.xlane.xlu0 %2323
      %v2325 = vsel %vm1462, %v2304, 0.0
      %2326 = vadd.xlane.f32.xlu0 %v2325
      %v2327 = vpop.xlane.xlu0 %2326
      %v2328 = vsel %vm1462, %v2306, 0.0
      %2329 = vadd.xlane.f32.xlu0 %v2328
      %v2330 = vpop.xlane.xlu0 %2329
      %v2331 = vrcp.pop %v2309
      %v2332 = vrcp.pop %v2312
      %v2333 = vrcp.pop %v2315
      %v2334 = vrcp.pop %v2318
      %v2335 = vrcp.pop %v2321
      %v2336 = vrcp.pop %v2324
      %v2337 = vrcp.pop %v2327
      %v2338 = vrcp.pop %v2330
      %v2339 = vmul.f32 %v2292, %v2331
      %v2340 = vmul.f32 %v2294, %v2332
      %v2341 = vmul.f32 %v2296, %v2333
      %v2342 = vmul.f32 %v2298, %v2334
      %v2343 = vmul.f32 %v2300, %v2335
      %v2344 = vmul.f32 %v2302, %v2336
      %v2345 = vmul.f32 %v2304, %v2337
      %v2346 = vmul.f32 %v2306, %v2338
      %2349 = vrot.lane.b32.xlu0 %v1057, 120
      %v2350 = vpop.permute.xlu0 %2349
      %2351 = vrot.lane.b32.xlu0 %v1062, 120
      %v2352 = vpop.permute.xlu0 %2351
      %v2356 = vsel %vm1462, %v2339, 0
      %v2359 = vsel %vm1462, %v2340, 0
      %2361 = vmatprep.subr.mxu0 0.0
      %2362 = vmatpush1.msra.mxu0 %v2350
      %2363 = vmatprep.subr.mxu0 0.0
      %2364 = vmatpush1.msra.mxu0 %v2352
      %2365 = vmatprep.subr.mxu0 0.0
      %2366 = vmatpush1.msra.mxu0 0.0
      %2367 = vmatprep.subr.mxu0 0.0
      %2368 = vmatpush1.msra.mxu0 0.0
      %2369 = vmatprep.subr.mxu0 0.0
      %2370 = vmatpush1.msra.mxu0 0.0
      %2371 = vmatprep.subr.mxu0 0.0
      %2372 = vmatpush1.msra.mxu0 0.0
      %2373 = vmatprep.subr.mxu0 0.0
      %2374 = vmatpush1.msra.mxu0 0.0
      %2375 = vmatprep.subr.mxu0 0.0
      %2376 = vmatpush1.msra.mxu0 0.0
      %2377 = vmatprep.subr.mxu0 0.0
      %2378 = vmatpush1.msra.mxu0 0.0
      %2379 = vmatprep.subr.mxu0 0.0
      %2380 = vmatpush1.msra.mxu0 0.0
      %2381 = vmatprep.subr.mxu0 0.0
      %2382 = vmatpush1.msra.mxu0 0.0
      %2383 = vmatprep.subr.mxu0 0.0
      %2384 = vmatpush1.msra.mxu0 0.0
      %2385 = vmatprep.subr.mxu0 0.0
      %2386 = vmatpush1.msra.mxu0 0.0
      %2387 = vmatprep.subr.mxu0 0.0
      %2388 = vmatpush1.msra.mxu0 0.0
      %2389 = vmatprep.subr.mxu0 0.0
      %2390 = vmatpush1.msra.mxu0 0.0
      %2391 = vmatprep.subr.mxu0 0.0
      %2392 = vmatpush1.msra.mxu0 0.0
      %2393 = vmatprep.subr.mxu0 0.0
      %2394 = vmatpush1.msra.mxu0 0.0
      %2395 = vmatprep.subr.mxu0 0.0
      %2396 = vmatpush1.msra.mxu0 0.0
      %2397 = vmatprep.subr.mxu0 0.0
      %2398 = vmatpush1.msra.mxu0 0.0
      %2399 = vmatprep.subr.mxu0 0.0
      %2400 = vmatpush1.msra.mxu0 0.0
      %2401 = vmatprep.subr.mxu0 0.0
      %2402 = vmatpush1.msra.mxu0 0.0
      %2403 = vmatprep.subr.mxu0 0.0
      %2404 = vmatpush1.msra.mxu0 0.0
      %2405 = vmatprep.subr.mxu0 0.0
      %2406 = vmatpush1.msra.mxu0 0.0
      %2407 = vmatprep.subr.mxu0 0.0
      %2408 = vmatpush1.msra.mxu0 0.0
      %2409 = vmatprep.subr.mxu0 0.0
      %2410 = vmatpush1.msra.mxu0 0.0
      %2411 = vmatprep.subr.mxu0 0.0
      %2412 = vmatpush1.msra.mxu0 0.0
      %2413 = vmatprep.subr.mxu0 0.0
      %2414 = vmatpush1.msra.mxu0 0.0
      %2415 = vmatprep.subr.mxu0 0.0
      %2416 = vmatpush1.msra.mxu0 0.0
      %2417 = vmatprep.subr.mxu0 0.0
      %2418 = vmatpush1.msra.mxu0 0.0
      %2419 = vmatprep.subr.mxu0 0.0
      %2420 = vmatpush1.msra.mxu0 0.0
      %2421 = vmatprep.subr.mxu0 0.0
      %2422 = vmatpush1.msra.mxu0 0.0
      %2423 = vmatprep.subr.mxu0 0.0
      %2424 = vmatpush1.msra.mxu0 0.0
      %2425 = vmatprep.mubr.f32.mxu0 0.0
      %2426 = vmatmul.mubr.f32.gmra.mrb[0].mxu0 %v2356
      %v2427 = vpop.f32.mrb[0].mxu0
      %v2428 = vadd.f32 0.0, %v2427
      %v2429 = vpop.f32.mrb[0].mxu0
      %2430 = vmatprep.mubr.f32.mxu0 0.0
      %2431 = vmatmul.mubr.f32.gmra.mrb[0].mxu0 %v2359
      %v2432 = vpop.f32.mrb[0].mxu0
      %v2433 = vadd.f32 0.0, %v2432
      %v2434 = vpop.f32.mrb[0].mxu0
      %2435 = vdwg.mxu0
      %2438 = vrot.lane.b32.xlu0 %v1067, 120
      %v2439 = vpop.permute.xlu0 %2438
      %2440 = vrot.lane.b32.xlu0 %v1072, 120
      %v2441 = vpop.permute.xlu0 %2440
      %v2445 = vsel %vm1462, %v2341, 0
      %v2448 = vsel %vm1462, %v2342, 0
      %2450 = vmatprep.subr.mxu0 0.0
      %2451 = vmatpush1.msra.mxu0 %v2439
      %2452 = vmatprep.subr.mxu0 0.0
      %2453 = vmatpush1.msra.mxu0 %v2441
      %2454 = vmatprep.subr.mxu0 0.0
      %2455 = vmatpush1.msra.mxu0 0.0
      %2456 = vmatprep.subr.mxu0 0.0
      %2457 = vmatpush1.msra.mxu0 0.0
      %2458 = vmatprep.subr.mxu0 0.0
      %2459 = vmatpush1.msra.mxu0 0.0
      %2460 = vmatprep.subr.mxu0 0.0
      %2461 = vmatpush1.msra.mxu0 0.0
      %2462 = vmatprep.subr.mxu0 0.0
      %2463 = vmatpush1.msra.mxu0 0.0
      %2464 = vmatprep.subr.mxu0 0.0
      %2465 = vmatpush1.msra.mxu0 0.0
      %2466 = vmatprep.subr.mxu0 0.0
      %2467 = vmatpush1.msra.mxu0 0.0
      %2468 = vmatprep.subr.mxu0 0.0
      %2469 = vmatpush1.msra.mxu0 0.0
      %2470 = vmatprep.subr.mxu0 0.0
      %2471 = vmatpush1.msra.mxu0 0.0
      %2472 = vmatprep.subr.mxu0 0.0
      %2473 = vmatpush1.msra.mxu0 0.0
      %2474 = vmatprep.subr.mxu0 0.0
      %2475 = vmatpush1.msra.mxu0 0.0
      %2476 = vmatprep.subr.mxu0 0.0
      %2477 = vmatpush1.msra.mxu0 0.0
      %2478 = vmatprep.subr.mxu0 0.0
      %2479 = vmatpush1.msra.mxu0 0.0
      %2480 = vmatprep.subr.mxu0 0.0
      %2481 = vmatpush1.msra.mxu0 0.0
      %2482 = vmatprep.subr.mxu0 0.0
      %2483 = vmatpush1.msra.mxu0 0.0
      %2484 = vmatprep.subr.mxu0 0.0
      %2485 = vmatpush1.msra.mxu0 0.0
      %2486 = vmatprep.subr.mxu0 0.0
      %2487 = vmatpush1.msra.mxu0 0.0
      %2488 = vmatprep.subr.mxu0 0.0
      %2489 = vmatpush1.msra.mxu0 0.0
      %2490 = vmatprep.subr.mxu0 0.0
      %2491 = vmatpush1.msra.mxu0 0.0
      %2492 = vmatprep.subr.mxu0 0.0
      %2493 = vmatpush1.msra.mxu0 0.0
      %2494 = vmatprep.subr.mxu0 0.0
      %2495 = vmatpush1.msra.mxu0 0.0
      %2496 = vmatprep.subr.mxu0 0.0
      %2497 = vmatpush1.msra.mxu0 0.0
      %2498 = vmatprep.subr.mxu0 0.0
      %2499 = vmatpush1.msra.mxu0 0.0
      %2500 = vmatprep.subr.mxu0 0.0
      %2501 = vmatpush1.msra.mxu0 0.0
      %2502 = vmatprep.subr.mxu0 0.0
      %2503 = vmatpush1.msra.mxu0 0.0
      %2504 = vmatprep.subr.mxu0 0.0
      %2505 = vmatpush1.msra.mxu0 0.0
      %2506 = vmatprep.subr.mxu0 0.0
      %2507 = vmatpush1.msra.mxu0 0.0
      %2508 = vmatprep.subr.mxu0 0.0
      %2509 = vmatpush1.msra.mxu0 0.0
      %2510 = vmatprep.subr.mxu0 0.0
      %2511 = vmatpush1.msra.mxu0 0.0
      %2512 = vmatprep.subr.mxu0 0.0
      %2513 = vmatpush1.msra.mxu0 0.0
      %2514 = vmatprep.mubr.f32.mxu0 0.0
      %2515 = vmatmul.mubr.f32.gmra.mrb[0].mxu0 %v2445
      %v2516 = vpop.f32.mrb[0].mxu0
      %v2517 = vadd.f32 0.0, %v2516
      %v2518 = vpop.f32.mrb[0].mxu0
      %2519 = vmatprep.mubr.f32.mxu0 0.0
      %2520 = vmatmul.mubr.f32.gmra.mrb[0].mxu0 %v2448
      %v2521 = vpop.f32.mrb[0].mxu0
      %v2522 = vadd.f32 0.0, %v2521
      %v2523 = vpop.f32.mrb[0].mxu0
      %2524 = vdwg.mxu0
      %2527 = vrot.lane.b32.xlu0 %v1077, 120
      %v2528 = vpop.permute.xlu0 %2527
      %2529 = vrot.lane.b32.xlu0 %v1082, 120
      %v2530 = vpop.permute.xlu0 %2529
      %v2534 = vsel %vm1462, %v2343, 0
      %v2537 = vsel %vm1462, %v2344, 0
      %2539 = vmatprep.subr.mxu0 0.0
      %2540 = vmatpush1.msra.mxu0 %v2528
      %2541 = vmatprep.subr.mxu0 0.0
      %2542 = vmatpush1.msra.mxu0 %v2530
      %2543 = vmatprep.subr.mxu0 0.0
      %2544 = vmatpush1.msra.mxu0 0.0
      %2545 = vmatprep.subr.mxu0 0.0
      %2546 = vmatpush1.msra.mxu0 0.0
      %2547 = vmatprep.subr.mxu0 0.0
      %2548 = vmatpush1.msra.mxu0 0.0
      %2549 = vmatprep.subr.mxu0 0.0
      %2550 = vmatpush1.msra.mxu0 0.0
      %2551 = vmatprep.subr.mxu0 0.0
      %2552 = vmatpush1.msra.mxu0 0.0
      %2553 = vmatprep.subr.mxu0 0.0
      %2554 = vmatpush1.msra.mxu0 0.0
      %2555 = vmatprep.subr.mxu0 0.0
      %2556 = vmatpush1.msra.mxu0 0.0
      %2557 = vmatprep.subr.mxu0 0.0
      %2558 = vmatpush1.msra.mxu0 0.0
      %2559 = vmatprep.subr.mxu0 0.0
      %2560 = vmatpush1.msra.mxu0 0.0
      %2561 = vmatprep.subr.mxu0 0.0
      %2562 = vmatpush1.msra.mxu0 0.0
      %2563 = vmatprep.subr.mxu0 0.0
      %2564 = vmatpush1.msra.mxu0 0.0
      %2565 = vmatprep.subr.mxu0 0.0
      %2566 = vmatpush1.msra.mxu0 0.0
      %2567 = vmatprep.subr.mxu0 0.0
      %2568 = vmatpush1.msra.mxu0 0.0
      %2569 = vmatprep.subr.mxu0 0.0
      %2570 = vmatpush1.msra.mxu0 0.0
      %2571 = vmatprep.subr.mxu0 0.0
      %2572 = vmatpush1.msra.mxu0 0.0
      %2573 = vmatprep.subr.mxu0 0.0
      %2574 = vmatpush1.msra.mxu0 0.0
      %2575 = vmatprep.subr.mxu0 0.0
      %2576 = vmatpush1.msra.mxu0 0.0
      %2577 = vmatprep.subr.mxu0 0.0
      %2578 = vmatpush1.msra.mxu0 0.0
      %2579 = vmatprep.subr.mxu0 0.0
      %2580 = vmatpush1.msra.mxu0 0.0
      %2581 = vmatprep.subr.mxu0 0.0
      %2582 = vmatpush1.msra.mxu0 0.0
      %2583 = vmatprep.subr.mxu0 0.0
      %2584 = vmatpush1.msra.mxu0 0.0
      %2585 = vmatprep.subr.mxu0 0.0
      %2586 = vmatpush1.msra.mxu0 0.0
      %2587 = vmatprep.subr.mxu0 0.0
      %2588 = vmatpush1.msra.mxu0 0.0
      %2589 = vmatprep.subr.mxu0 0.0
      %2590 = vmatpush1.msra.mxu0 0.0
      %2591 = vmatprep.subr.mxu0 0.0
      %2592 = vmatpush1.msra.mxu0 0.0
      %2593 = vmatprep.subr.mxu0 0.0
      %2594 = vmatpush1.msra.mxu0 0.0
      %2595 = vmatprep.subr.mxu0 0.0
      %2596 = vmatpush1.msra.mxu0 0.0
      %2597 = vmatprep.subr.mxu0 0.0
      %2598 = vmatpush1.msra.mxu0 0.0
      %2599 = vmatprep.subr.mxu0 0.0
      %2600 = vmatpush1.msra.mxu0 0.0
      %2601 = vmatprep.subr.mxu0 0.0
      %2602 = vmatpush1.msra.mxu0 0.0
      %2603 = vmatprep.mubr.f32.mxu0 0.0
      %2604 = vmatmul.mubr.f32.gmra.mrb[0].mxu0 %v2534
      %v2605 = vpop.f32.mrb[0].mxu0
      %v2606 = vadd.f32 0.0, %v2605
      %v2607 = vpop.f32.mrb[0].mxu0
      %2608 = vmatprep.mubr.f32.mxu0 0.0
      %2609 = vmatmul.mubr.f32.gmra.mrb[0].mxu0 %v2537
      %v2610 = vpop.f32.mrb[0].mxu0
      %v2611 = vadd.f32 0.0, %v2610
      %v2612 = vpop.f32.mrb[0].mxu0
      %2613 = vdwg.mxu0
      %2616 = vrot.lane.b32.xlu0 %v1087, 120
      %v2617 = vpop.permute.xlu0 %2616
      %2618 = vrot.lane.b32.xlu0 %v1092, 120
      %v2619 = vpop.permute.xlu0 %2618
      %v2623 = vsel %vm1462, %v2345, 0
      %v2626 = vsel %vm1462, %v2346, 0
      %2628 = vmatprep.subr.mxu0 0.0
      %2629 = vmatpush1.msra.mxu0 %v2617
      %2630 = vmatprep.subr.mxu0 0.0
      %2631 = vmatpush1.msra.mxu0 %v2619
      %2632 = vmatprep.subr.mxu0 0.0
      %2633 = vmatpush1.msra.mxu0 0.0
      %2634 = vmatprep.subr.mxu0 0.0
      %2635 = vmatpush1.msra.mxu0 0.0
      %2636 = vmatprep.subr.mxu0 0.0
      %2637 = vmatpush1.msra.mxu0 0.0
      %2638 = vmatprep.subr.mxu0 0.0
      %2639 = vmatpush1.msra.mxu0 0.0
      %2640 = vmatprep.subr.mxu0 0.0
      %2641 = vmatpush1.msra.mxu0 0.0
      %2642 = vmatprep.subr.mxu0 0.0
      %2643 = vmatpush1.msra.mxu0 0.0
      %2644 = vmatprep.subr.mxu0 0.0
      %2645 = vmatpush1.msra.mxu0 0.0
      %2646 = vmatprep.subr.mxu0 0.0
      %2647 = vmatpush1.msra.mxu0 0.0
      %2648 = vmatprep.subr.mxu0 0.0
      %2649 = vmatpush1.msra.mxu0 0.0
      %2650 = vmatprep.subr.mxu0 0.0
      %2651 = vmatpush1.msra.mxu0 0.0
      %2652 = vmatprep.subr.mxu0 0.0
      %2653 = vmatpush1.msra.mxu0 0.0
      %2654 = vmatprep.subr.mxu0 0.0
      %2655 = vmatpush1.msra.mxu0 0.0
      %2656 = vmatprep.subr.mxu0 0.0
      %2657 = vmatpush1.msra.mxu0 0.0
      %2658 = vmatprep.subr.mxu0 0.0
      %2659 = vmatpush1.msra.mxu0 0.0
      %2660 = vmatprep.subr.mxu0 0.0
      %2661 = vmatpush1.msra.mxu0 0.0
      %2662 = vmatprep.subr.mxu0 0.0
      %2663 = vmatpush1.msra.mxu0 0.0
      %2664 = vmatprep.subr.mxu0 0.0
      %2665 = vmatpush1.msra.mxu0 0.0
      %2666 = vmatprep.subr.mxu0 0.0
      %2667 = vmatpush1.msra.mxu0 0.0
      %2668 = vmatprep.subr.mxu0 0.0
      %2669 = vmatpush1.msra.mxu0 0.0
      %2670 = vmatprep.subr.mxu0 0.0
      %2671 = vmatpush1.msra.mxu0 0.0
      %2672 = vmatprep.subr.mxu0 0.0
      %2673 = vmatpush1.msra.mxu0 0.0
      %2674 = vmatprep.subr.mxu0 0.0
      %2675 = vmatpush1.msra.mxu0 0.0
      %2676 = vmatprep.subr.mxu0 0.0
      %2677 = vmatpush1.msra.mxu0 0.0
      %2678 = vmatprep.subr.mxu0 0.0
      %2679 = vmatpush1.msra.mxu0 0.0
      %2680 = vmatprep.subr.mxu0 0.0
      %2681 = vmatpush1.msra.mxu0 0.0
      %2682 = vmatprep.subr.mxu0 0.0
      %2683 = vmatpush1.msra.mxu0 0.0
      %2684 = vmatprep.subr.mxu0 0.0
      %2685 = vmatpush1.msra.mxu0 0.0
      %2686 = vmatprep.subr.mxu0 0.0
      %2687 = vmatpush1.msra.mxu0 0.0
      %2688 = vmatprep.subr.mxu0 0.0
      %2689 = vmatpush1.msra.mxu0 0.0
      %2690 = vmatprep.subr.mxu0 0.0
      %2691 = vmatpush1.msra.mxu0 0.0
      %2692 = vmatprep.mubr.f32.mxu0 0.0
      %2693 = vmatmul.mubr.f32.gmra.mrb[0].mxu0 %v2623
      %v2694 = vpop.f32.mrb[0].mxu0
      %v2695 = vadd.f32 0.0, %v2694
      %v2696 = vpop.f32.mrb[0].mxu0
      %2697 = vmatprep.mubr.f32.mxu0 0.0
      %2698 = vmatmul.mubr.f32.gmra.mrb[0].mxu0 %v2626
      %v2699 = vpop.f32.mrb[0].mxu0
      %v2700 = vadd.f32 0.0, %v2699
      %v2701 = vpop.f32.mrb[0].mxu0
      %2702 = vdwg.mxu0
      %s2703 = scalar_lea.vmem %s9, 8
      %v2704 = vld [vmem:[%s2703] sm:$0xff]
      %v2706 = vsel %vm1095, %v2428, 0
      %v2709 = vsel %vm1095, %v2433, 0
      %v2712 = vsel %vm1095, %v2517, 0
      %v2715 = vsel %vm1095, %v2522, 0
      %v2718 = vsel %vm1095, %v2606, 0
      %v2721 = vsel %vm1095, %v2611, 0
      %v2724 = vsel %vm1095, %v2695, 0
      %v2727 = vsel %vm1095, %v2700, 0
      %2729 = vmatprep.subr.mxu0 0.0
      %2730 = vmatpush1.msra.mxu0 %v2704
      %2731 = vmatprep.subr.mxu0 0.0
      %2732 = vmatpush1.msra.mxu0 0.0
      %2733 = vmatprep.subr.mxu0 0.0
      %2734 = vmatpush1.msra.mxu0 0.0
      %2735 = vmatprep.subr.mxu0 0.0
      %2736 = vmatpush1.msra.mxu0 0.0
      %2737 = vmatprep.subr.mxu0 0.0
      %2738 = vmatpush1.msra.mxu0 0.0
      %2739 = vmatprep.subr.mxu0 0.0
      %2740 = vmatpush1.msra.mxu0 0.0
      %2741 = vmatprep.subr.mxu0 0.0
      %2742 = vmatpush1.msra.mxu0 0.0
      %2743 = vmatprep.subr.mxu0 0.0
      %2744 = vmatpush1.msra.mxu0 0.0
      %2745 = vmatprep.subr.mxu0 0.0
      %2746 = vmatpush1.msra.mxu0 0.0
      %2747 = vmatprep.subr.mxu0 0.0
      %2748 = vmatpush1.msra.mxu0 0.0
      %2749 = vmatprep.subr.mxu0 0.0
      %2750 = vmatpush1.msra.mxu0 0.0
      %2751 = vmatprep.subr.mxu0 0.0
      %2752 = vmatpush1.msra.mxu0 0.0
      %2753 = vmatprep.subr.mxu0 0.0
      %2754 = vmatpush1.msra.mxu0 0.0
      %2755 = vmatprep.subr.mxu0 0.0
      %2756 = vmatpush1.msra.mxu0 0.0
      %2757 = vmatprep.subr.mxu0 0.0
      %2758 = vmatpush1.msra.mxu0 0.0
      %2759 = vmatprep.subr.mxu0 0.0
      %2760 = vmatpush1.msra.mxu0 0.0
      %2761 = vmatprep.subr.mxu0 0.0
      %2762 = vmatpush1.msra.mxu0 0.0
      %2763 = vmatprep.subr.mxu0 0.0
      %2764 = vmatpush1.msra.mxu0 0.0
      %2765 = vmatprep.subr.mxu0 0.0
      %2766 = vmatpush1.msra.mxu0 0.0
      %2767 = vmatprep.subr.mxu0 0.0
      %2768 = vmatpush1.msra.mxu0 0.0
      %2769 = vmatprep.subr.mxu0 0.0
      %2770 = vmatpush1.msra.mxu0 0.0
      %2771 = vmatprep.subr.mxu0 0.0
      %2772 = vmatpush1.msra.mxu0 0.0
      %2773 = vmatprep.subr.mxu0 0.0
      %2774 = vmatpush1.msra.mxu0 0.0
      %2775 = vmatprep.subr.mxu0 0.0
      %2776 = vmatpush1.msra.mxu0 0.0
      %2777 = vmatprep.subr.mxu0 0.0
      %2778 = vmatpush1.msra.mxu0 0.0
      %2779 = vmatprep.subr.mxu0 0.0
      %2780 = vmatpush1.msra.mxu0 0.0
      %2781 = vmatprep.subr.mxu0 0.0
      %2782 = vmatpush1.msra.mxu0 0.0
      %2783 = vmatprep.subr.mxu0 0.0
      %2784 = vmatpush1.msra.mxu0 0.0
      %2785 = vmatprep.subr.mxu0 0.0
      %2786 = vmatpush1.msra.mxu0 0.0
      %2787 = vmatprep.subr.mxu0 0.0
      %2788 = vmatpush1.msra.mxu0 0.0
      %2789 = vmatprep.subr.mxu0 0.0
      %2790 = vmatpush1.msra.mxu0 0.0
      %2791 = vmatprep.subr.mxu0 0.0
      %2792 = vmatpush1.msra.mxu0 0.0
      %2793 = vmatprep.mubr.f32.mxu0 0.0
      %2794 = vmatmul.mubr.f32.gmra.mrb[0].mxu0 %v2706
      %v2795 = vpop.f32.mrb[0].mxu0
      %v2796 = vadd.f32 0.0, %v2795
      %v2797 = vpop.f32.mrb[0].mxu0
      %2798 = vmatprep.mubr.f32.mxu0 0.0
      %2799 = vmatmul.mubr.f32.gmra.mrb[0].mxu0 %v2709
      %v2800 = vpop.f32.mrb[0].mxu0
      %v2801 = vadd.f32 0.0, %v2800
      %v2802 = vpop.f32.mrb[0].mxu0
      %2803 = vmatprep.mubr.f32.mxu0 0.0
      %2804 = vmatmul.mubr.f32.gmra.mrb[0].mxu0 %v2712
      %v2805 = vpop.f32.mrb[0].mxu0
      %v2806 = vadd.f32 0.0, %v2805
      %v2807 = vpop.f32.mrb[0].mxu0
      %2808 = vmatprep.mubr.f32.mxu0 0.0
      %2809 = vmatmul.mubr.f32.gmra.mrb[0].mxu0 %v2715
      %v2810 = vpop.f32.mrb[0].mxu0
      %v2811 = vadd.f32 0.0, %v2810
      %v2812 = vpop.f32.mrb[0].mxu0
      %2813 = vmatprep.mubr.f32.mxu0 0.0
      %2814 = vmatmul.mubr.f32.gmra.mrb[0].mxu0 %v2718
      %v2815 = vpop.f32.mrb[0].mxu0
      %v2816 = vadd.f32 0.0, %v2815
      %v2817 = vpop.f32.mrb[0].mxu0
      %2818 = vmatprep.mubr.f32.mxu0 0.0
      %2819 = vmatmul.mubr.f32.gmra.mrb[0].mxu0 %v2721
      %v2820 = vpop.f32.mrb[0].mxu0
      %v2821 = vadd.f32 0.0, %v2820
      %v2822 = vpop.f32.mrb[0].mxu0
      %2823 = vmatprep.mubr.f32.mxu0 0.0
      %2824 = vmatmul.mubr.f32.gmra.mrb[0].mxu0 %v2724
      %v2825 = vpop.f32.mrb[0].mxu0
      %v2826 = vadd.f32 0.0, %v2825
      %v2827 = vpop.f32.mrb[0].mxu0
      %2828 = vmatprep.mubr.f32.mxu0 0.0
      %2829 = vmatmul.mubr.f32.gmra.mrb[0].mxu0 %v2727
      %v2830 = vpop.f32.mrb[0].mxu0
      %v2831 = vadd.f32 0.0, %v2830
      %v2832 = vpop.f32.mrb[0].mxu0
      %2833 = vdwg.mxu0
      %v2835 = vsel %vm1095, %v1624, 0
      %v2838 = vsel %vm1095, %v1629, 0
      %v2841 = vsel %vm1095, %v1705, 0
      %v2844 = vsel %vm1095, %v1710, 0
      %v2847 = vsel %vm1095, %v1786, 0
      %v2850 = vsel %vm1095, %v1791, 0
      %v2853 = vsel %vm1095, %v1867, 0
      %v2856 = vsel %vm1095, %v1872, 0
      %2858 = vmatprep.subr.mxu0 0.0
      %2859 = vmatpush1.msra.mxu0 %v1875
      %2860 = vmatprep.subr.mxu0 0.0
      %2861 = vmatpush1.msra.mxu0 0.0
      %2862 = vmatprep.subr.mxu0 0.0
      %2863 = vmatpush1.msra.mxu0 0.0
      %2864 = vmatprep.subr.mxu0 0.0
      %2865 = vmatpush1.msra.mxu0 0.0
      %2866 = vmatprep.subr.mxu0 0.0
      %2867 = vmatpush1.msra.mxu0 0.0
      %2868 = vmatprep.subr.mxu0 0.0
      %2869 = vmatpush1.msra.mxu0 0.0
      %2870 = vmatprep.subr.mxu0 0.0
      %2871 = vmatpush1.msra.mxu0 0.0
      %2872 = vmatprep.subr.mxu0 0.0
      %2873 = vmatpush1.msra.mxu0 0.0
      %2874 = vmatprep.subr.mxu0 0.0
      %2875 = vmatpush1.msra.mxu0 0.0
      %2876 = vmatprep.subr.mxu0 0.0
      %2877 = vmatpush1.msra.mxu0 0.0
      %2878 = vmatprep.subr.mxu0 0.0
      %2879 = vmatpush1.msra.mxu0 0.0
      %2880 = vmatprep.subr.mxu0 0.0
      %2881 = vmatpush1.msra.mxu0 0.0
      %2882 = vmatprep.subr.mxu0 0.0
      %2883 = vmatpush1.msra.mxu0 0.0
      %2884 = vmatprep.subr.mxu0 0.0
      %2885 = vmatpush1.msra.mxu0 0.0
      %2886 = vmatprep.subr.mxu0 0.0
      %2887 = vmatpush1.msra.mxu0 0.0
      %2888 = vmatprep.subr.mxu0 0.0
      %2889 = vmatpush1.msra.mxu0 0.0
      %2890 = vmatprep.subr.mxu0 0.0
      %2891 = vmatpush1.msra.mxu0 0.0
      %2892 = vmatprep.subr.mxu0 0.0
      %2893 = vmatpush1.msra.mxu0 0.0
      %2894 = vmatprep.subr.mxu0 0.0
      %2895 = vmatpush1.msra.mxu0 0.0
      %2896 = vmatprep.subr.mxu0 0.0
      %2897 = vmatpush1.msra.mxu0 0.0
      %2898 = vmatprep.subr.mxu0 0.0
      %2899 = vmatpush1.msra.mxu0 0.0
      %2900 = vmatprep.subr.mxu0 0.0
      %2901 = vmatpush1.msra.mxu0 0.0
      %2902 = vmatprep.subr.mxu0 0.0
      %2903 = vmatpush1.msra.mxu0 0.0
      %2904 = vmatprep.subr.mxu0 0.0
      %2905 = vmatpush1.msra.mxu0 0.0
      %2906 = vmatprep.subr.mxu0 0.0
      %2907 = vmatpush1.msra.mxu0 0.0
      %2908 = vmatprep.subr.mxu0 0.0
      %2909 = vmatpush1.msra.mxu0 0.0
      %2910 = vmatprep.subr.mxu0 0.0
      %2911 = vmatpush1.msra.mxu0 0.0
      %2912 = vmatprep.subr.mxu0 0.0
      %2913 = vmatpush1.msra.mxu0 0.0
      %2914 = vmatprep.subr.mxu0 0.0
      %2915 = vmatpush1.msra.mxu0 0.0
      %2916 = vmatprep.subr.mxu0 0.0
      %2917 = vmatpush1.msra.mxu0 0.0
      %2918 = vmatprep.subr.mxu0 0.0
      %2919 = vmatpush1.msra.mxu0 0.0
      %2920 = vmatprep.subr.mxu0 0.0
      %2921 = vmatpush1.msra.mxu0 0.0
      %2922 = vmatprep.mubr.f32.mxu0 0.0
      %2923 = vmatmul.mubr.f32.gmra.mrb[0].mxu0 %v2835
      %v2924 = vpop.f32.mrb[0].mxu0
      %v2925 = vadd.f32 %v2796, %v2924
      %v2926 = vpop.f32.mrb[0].mxu0
      %2927 = vmatprep.mubr.f32.mxu0 0.0
      %2928 = vmatmul.mubr.f32.gmra.mrb[0].mxu0 %v2838
      %v2929 = vpop.f32.mrb[0].mxu0
      %v2930 = vadd.f32 %v2801, %v2929
      %v2931 = vpop.f32.mrb[0].mxu0
      %2932 = vmatprep.mubr.f32.mxu0 0.0
      %2933 = vmatmul.mubr.f32.gmra.mrb[0].mxu0 %v2841
      %v2934 = vpop.f32.mrb[0].mxu0
      %v2935 = vadd.f32 %v2806, %v2934
      %v2936 = vpop.f32.mrb[0].mxu0
      %2937 = vmatprep.mubr.f32.mxu0 0.0
      %2938 = vmatmul.mubr.f32.gmra.mrb[0].mxu0 %v2844
      %v2939 = vpop.f32.mrb[0].mxu0
      %v2940 = vadd.f32 %v2811, %v2939
      %v2941 = vpop.f32.mrb[0].mxu0
      %2942 = vmatprep.mubr.f32.mxu0 0.0
      %2943 = vmatmul.mubr.f32.gmra.mrb[0].mxu0 %v2847
      %v2944 = vpop.f32.mrb[0].mxu0
      %v2945 = vadd.f32 %v2816, %v2944
      %v2946 = vpop.f32.mrb[0].mxu0
      %2947 = vmatprep.mubr.f32.mxu0 0.0
      %2948 = vmatmul.mubr.f32.gmra.mrb[0].mxu0 %v2850
      %v2949 = vpop.f32.mrb[0].mxu0
      %v2950 = vadd.f32 %v2821, %v2949
      %v2951 = vpop.f32.mrb[0].mxu0
      %2952 = vmatprep.mubr.f32.mxu0 0.0
      %2953 = vmatmul.mubr.f32.gmra.mrb[0].mxu0 %v2853
      %v2954 = vpop.f32.mrb[0].mxu0
      %v2955 = vadd.f32 %v2826, %v2954
      %v2956 = vpop.f32.mrb[0].mxu0
      %2957 = vmatprep.mubr.f32.mxu0 0.0
      %2958 = vmatmul.mubr.f32.gmra.mrb[0].mxu0 %v2856
      %v2959 = vpop.f32.mrb[0].mxu0
      %v2960 = vadd.f32 %v2831, %v2959
      %v2961 = vpop.f32.mrb[0].mxu0
      %2962 = vdwg.mxu0
      %2963 = vrot.lane.b32.xlu0 %v825, 112
      %v2964 = vpop.permute.xlu0 %2963
      %2965 = vrot.lane.b32.xlu0 %v830, 112
      %v2966 = vpop.permute.xlu0 %2965
      %2967 = vrot.lane.b32.xlu0 %v941, 112
      %v2968 = vpop.permute.xlu0 %2967
      %2969 = vrot.lane.b32.xlu0 %v946, 112
      %v2970 = vpop.permute.xlu0 %2969
      %v2971 = vsel %vm1095, %v2964, 0
      %v2973 = vsel %vm1095, %v2966, 0
      %v2975 = vsel %vm1095, %v2968, 0
      %v2977 = vsel %vm1095, %v2970, 0
      %2979 = vmatprep.subr.mxu0 0.0
      %2980 = vmatpush1.xpose.msra.mxu0 %v2975
      %2981 = vmatprep.subr.mxu0 0.0
      %2982 = vmatpush1.xpose.msra.mxu0 %v2977
      %2983 = vmatprep.subr.mxu0 0.0
      %2984 = vmatpush1.xpose.msra.mxu0 0.0
      %2985 = vmatprep.subr.mxu0 0.0
      %2986 = vmatpush1.xpose.msra.mxu0 0.0
      %2987 = vmatprep.subr.mxu0 0.0
      %2988 = vmatpush1.xpose.msra.mxu0 0.0
      %2989 = vmatprep.subr.mxu0 0.0
      %2990 = vmatpush1.xpose.msra.mxu0 0.0
      %2991 = vmatprep.subr.mxu0 0.0
      %2992 = vmatpush1.xpose.msra.mxu0 0.0
      %2993 = vmatprep.subr.mxu0 0.0
      %2994 = vmatpush1.xpose.msra.mxu0 0.0
      %2995 = vmatprep.subr.mxu0 0.0
      %2996 = vmatpush1.xpose.msra.mxu0 0.0
      %2997 = vmatprep.subr.mxu0 0.0
      %2998 = vmatpush1.xpose.msra.mxu0 0.0
      %2999 = vmatprep.subr.mxu0 0.0
      %3000 = vmatpush1.xpose.msra.mxu0 0.0
      %3001 = vmatprep.subr.mxu0 0.0
      %3002 = vmatpush1.xpose.msra.mxu0 0.0
      %3003 = vmatprep.subr.mxu0 0.0
      %3004 = vmatpush1.xpose.msra.mxu0 0.0
      %3005 = vmatprep.subr.mxu0 0.0
      %3006 = vmatpush1.xpose.msra.mxu0 0.0
      %3007 = vmatprep.subr.mxu0 0.0
      %3008 = vmatpush1.xpose.msra.mxu0 0.0
      %3009 = vmatprep.subr.mxu0 0.0
      %3010 = vmatpush1.xpose.msra.mxu0 0.0
      %3011 = vmatprep.subr.mxu0 0.0
      %3012 = vmatpush1.xpose.msra.mxu0 0.0
      %3013 = vmatprep.subr.mxu0 0.0
      %3014 = vmatpush1.xpose.msra.mxu0 0.0
      %3015 = vmatprep.subr.mxu0 0.0
      %3016 = vmatpush1.xpose.msra.mxu0 0.0
      %3017 = vmatprep.subr.mxu0 0.0
      %3018 = vmatpush1.xpose.msra.mxu0 0.0
      %3019 = vmatprep.subr.mxu0 0.0
      %3020 = vmatpush1.xpose.msra.mxu0 0.0
      %3021 = vmatprep.subr.mxu0 0.0
      %3022 = vmatpush1.xpose.msra.mxu0 0.0
      %3023 = vmatprep.subr.mxu0 0.0
      %3024 = vmatpush1.xpose.msra.mxu0 0.0
      %3025 = vmatprep.subr.mxu0 0.0
      %3026 = vmatpush1.xpose.msra.mxu0 0.0
      %3027 = vmatprep.subr.mxu0 0.0
      %3028 = vmatpush1.xpose.msra.mxu0 0.0
      %3029 = vmatprep.subr.mxu0 0.0
      %3030 = vmatpush1.xpose.msra.mxu0 0.0
      %3031 = vmatprep.subr.mxu0 0.0
      %3032 = vmatpush1.xpose.msra.mxu0 0.0
      %3033 = vmatprep.subr.mxu0 0.0
      %3034 = vmatpush1.xpose.msra.mxu0 0.0
      %3035 = vmatprep.subr.mxu0 0.0
      %3036 = vmatpush1.xpose.msra.mxu0 0.0
      %3037 = vmatprep.subr.mxu0 0.0
      %3038 = vmatpush1.xpose.msra.mxu0 0.0
      %3039 = vmatprep.subr.mxu0 0.0
      %3040 = vmatpush1.xpose.msra.mxu0 0.0
      %3041 = vmatprep.subr.mxu0 0.0
      %3042 = vmatpush1.xpose.msra.mxu0 0.0
      %3043 = vmatprep.mubr.f32.mxu0 0.0
      %3044 = vmatmul.mubr.f32.gmra.mrb[0].mxu0 %v2971
      %v3045 = vpop.f32.mrb[0].mxu0
      %v3046 = vadd.f32 0.0, %v3045
      %v3047 = vpop.f32.mrb[0].mxu0
      %3048 = vmatprep.mubr.f32.mxu0 0.0
      %3049 = vmatmul.mubr.f32.gmra.mrb[0].mxu0 %v2973
      %v3050 = vpop.f32.mrb[0].mxu0
      %v3051 = vadd.f32 0.0, %v3050
      %v3052 = vpop.f32.mrb[0].mxu0
      %3053 = vdwg.mxu0
      %3054 = vrot.lane.b32.xlu0 %v835, 112
      %v3055 = vpop.permute.xlu0 %3054
      %3056 = vrot.lane.b32.xlu0 %v840, 112
      %v3057 = vpop.permute.xlu0 %3056
      %3058 = vrot.lane.b32.xlu0 %v951, 112
      %v3059 = vpop.permute.xlu0 %3058
      %3060 = vrot.lane.b32.xlu0 %v956, 112
      %v3061 = vpop.permute.xlu0 %3060
      %v3062 = vsel %vm1095, %v3055, 0
      %v3064 = vsel %vm1095, %v3057, 0
      %v3066 = vsel %vm1095, %v3059, 0
      %v3068 = vsel %vm1095, %v3061, 0
      %3070 = vmatprep.subr.mxu0 0.0
      %3071 = vmatpush1.xpose.msra.mxu0 %v3066
      %3072 = vmatprep.subr.mxu0 0.0
      %3073 = vmatpush1.xpose.msra.mxu0 %v3068
      %3074 = vmatprep.subr.mxu0 0.0
      %3075 = vmatpush1.xpose.msra.mxu0 0.0
      %3076 = vmatprep.subr.mxu0 0.0
      %3077 = vmatpush1.xpose.msra.mxu0 0.0
      %3078 = vmatprep.subr.mxu0 0.0
      %3079 = vmatpush1.xpose.msra.mxu0 0.0
      %3080 = vmatprep.subr.mxu0 0.0
      %3081 = vmatpush1.xpose.msra.mxu0 0.0
      %3082 = vmatprep.subr.mxu0 0.0
      %3083 = vmatpush1.xpose.msra.mxu0 0.0
      %3084 = vmatprep.subr.mxu0 0.0
      %3085 = vmatpush1.xpose.msra.mxu0 0.0
      %3086 = vmatprep.subr.mxu0 0.0
      %3087 = vmatpush1.xpose.msra.mxu0 0.0
      %3088 = vmatprep.subr.mxu0 0.0
      %3089 = vmatpush1.xpose.msra.mxu0 0.0
      %3090 = vmatprep.subr.mxu0 0.0
      %3091 = vmatpush1.xpose.msra.mxu0 0.0
      %3092 = vmatprep.subr.mxu0 0.0
      %3093 = vmatpush1.xpose.msra.mxu0 0.0
      %3094 = vmatprep.subr.mxu0 0.0
      %3095 = vmatpush1.xpose.msra.mxu0 0.0
      %3096 = vmatprep.subr.mxu0 0.0
      %3097 = vmatpush1.xpose.msra.mxu0 0.0
      %3098 = vmatprep.subr.mxu0 0.0
      %3099 = vmatpush1.xpose.msra.mxu0 0.0
      %3100 = vmatprep.subr.mxu0 0.0
      %3101 = vmatpush1.xpose.msra.mxu0 0.0
      %3102 = vmatprep.subr.mxu0 0.0
      %3103 = vmatpush1.xpose.msra.mxu0 0.0
      %3104 = vmatprep.subr.mxu0 0.0
      %3105 = vmatpush1.xpose.msra.mxu0 0.0
      %3106 = vmatprep.subr.mxu0 0.0
      %3107 = vmatpush1.xpose.msra.mxu0 0.0
      %3108 = vmatprep.subr.mxu0 0.0
      %3109 = vmatpush1.xpose.msra.mxu0 0.0
      %3110 = vmatprep.subr.mxu0 0.0
      %3111 = vmatpush1.xpose.msra.mxu0 0.0
      %3112 = vmatprep.subr.mxu0 0.0
      %3113 = vmatpush1.xpose.msra.mxu0 0.0
      %3114 = vmatprep.subr.mxu0 0.0
      %3115 = vmatpush1.xpose.msra.mxu0 0.0
      %3116 = vmatprep.subr.mxu0 0.0
      %3117 = vmatpush1.xpose.msra.mxu0 0.0
      %3118 = vmatprep.subr.mxu0 0.0
      %3119 = vmatpush1.xpose.msra.mxu0 0.0
      %3120 = vmatprep.subr.mxu0 0.0
      %3121 = vmatpush1.xpose.msra.mxu0 0.0
      %3122 = vmatprep.subr.mxu0 0.0
      %3123 = vmatpush1.xpose.msra.mxu0 0.0
      %3124 = vmatprep.subr.mxu0 0.0
      %3125 = vmatpush1.xpose.msra.mxu0 0.0
      %3126 = vmatprep.subr.mxu0 0.0
      %3127 = vmatpush1.xpose.msra.mxu0 0.0
      %3128 = vmatprep.subr.mxu0 0.0
      %3129 = vmatpush1.xpose.msra.mxu0 0.0
      %3130 = vmatprep.subr.mxu0 0.0
      %3131 = vmatpush1.xpose.msra.mxu0 0.0
      %3132 = vmatprep.subr.mxu0 0.0
      %3133 = vmatpush1.xpose.msra.mxu0 0.0
      %3134 = vmatprep.mubr.f32.mxu0 0.0
      %3135 = vmatmul.mubr.f32.gmra.mrb[0].mxu0 %v3062
      %v3136 = vpop.f32.mrb[0].mxu0
      %v3137 = vadd.f32 0.0, %v3136
      %v3138 = vpop.f32.mrb[0].mxu0
      %3139 = vmatprep.mubr.f32.mxu0 0.0
      %3140 = vmatmul.mubr.f32.gmra.mrb[0].mxu0 %v3064
      %v3141 = vpop.f32.mrb[0].mxu0
      %v3142 = vadd.f32 0.0, %v3141
      %v3143 = vpop.f32.mrb[0].mxu0
      %3144 = vdwg.mxu0
      %3145 = vrot.lane.b32.xlu0 %v845, 112
      %v3146 = vpop.permute.xlu0 %3145
      %3147 = vrot.lane.b32.xlu0 %v850, 112
      %v3148 = vpop.permute.xlu0 %3147
      %3149 = vrot.lane.b32.xlu0 %v961, 112
      %v3150 = vpop.permute.xlu0 %3149
      %3151 = vrot.lane.b32.xlu0 %v966, 112
      %v3152 = vpop.permute.xlu0 %3151
      %v3153 = vsel %vm1095, %v3146, 0
      %v3155 = vsel %vm1095, %v3148, 0
      %v3157 = vsel %vm1095, %v3150, 0
      %v3159 = vsel %vm1095, %v3152, 0
      %3161 = vmatprep.subr.mxu0 0.0
      %3162 = vmatpush1.xpose.msra.mxu0 %v3157
      %3163 = vmatprep.subr.mxu0 0.0
      %3164 = vmatpush1.xpose.msra.mxu0 %v3159
      %3165 = vmatprep.subr.mxu0 0.0
      %3166 = vmatpush1.xpose.msra.mxu0 0.0
      %3167 = vmatprep.subr.mxu0 0.0
      %3168 = vmatpush1.xpose.msra.mxu0 0.0
      %3169 = vmatprep.subr.mxu0 0.0
      %3170 = vmatpush1.xpose.msra.mxu0 0.0
      %3171 = vmatprep.subr.mxu0 0.0
      %3172 = vmatpush1.xpose.msra.mxu0 0.0
      %3173 = vmatprep.subr.mxu0 0.0
      %3174 = vmatpush1.xpose.msra.mxu0 0.0
      %3175 = vmatprep.subr.mxu0 0.0
      %3176 = vmatpush1.xpose.msra.mxu0 0.0
      %3177 = vmatprep.subr.mxu0 0.0
      %3178 = vmatpush1.xpose.msra.mxu0 0.0
      %3179 = vmatprep.subr.mxu0 0.0
      %3180 = vmatpush1.xpose.msra.mxu0 0.0
      %3181 = vmatprep.subr.mxu0 0.0
      %3182 = vmatpush1.xpose.msra.mxu0 0.0
      %3183 = vmatprep.subr.mxu0 0.0
      %3184 = vmatpush1.xpose.msra.mxu0 0.0
      %3185 = vmatprep.subr.mxu0 0.0
      %3186 = vmatpush1.xpose.msra.mxu0 0.0
      %3187 = vmatprep.subr.mxu0 0.0
      %3188 = vmatpush1.xpose.msra.mxu0 0.0
      %3189 = vmatprep.subr.mxu0 0.0
      %3190 = vmatpush1.xpose.msra.mxu0 0.0
      %3191 = vmatprep.subr.mxu0 0.0
      %3192 = vmatpush1.xpose.msra.mxu0 0.0
      %3193 = vmatprep.subr.mxu0 0.0
      %3194 = vmatpush1.xpose.msra.mxu0 0.0
      %3195 = vmatprep.subr.mxu0 0.0
      %3196 = vmatpush1.xpose.msra.mxu0 0.0
      %3197 = vmatprep.subr.mxu0 0.0
      %3198 = vmatpush1.xpose.msra.mxu0 0.0
      %3199 = vmatprep.subr.mxu0 0.0
      %3200 = vmatpush1.xpose.msra.mxu0 0.0
      %3201 = vmatprep.subr.mxu0 0.0
      %3202 = vmatpush1.xpose.msra.mxu0 0.0
      %3203 = vmatprep.subr.mxu0 0.0
      %3204 = vmatpush1.xpose.msra.mxu0 0.0
      %3205 = vmatprep.subr.mxu0 0.0
      %3206 = vmatpush1.xpose.msra.mxu0 0.0
      %3207 = vmatprep.subr.mxu0 0.0
      %3208 = vmatpush1.xpose.msra.mxu0 0.0
      %3209 = vmatprep.subr.mxu0 0.0
      %3210 = vmatpush1.xpose.msra.mxu0 0.0
      %3211 = vmatprep.subr.mxu0 0.0
      %3212 = vmatpush1.xpose.msra.mxu0 0.0
      %3213 = vmatprep.subr.mxu0 0.0
      %3214 = vmatpush1.xpose.msra.mxu0 0.0
      %3215 = vmatprep.subr.mxu0 0.0
      %3216 = vmatpush1.xpose.msra.mxu0 0.0
      %3217 = vmatprep.subr.mxu0 0.0
      %3218 = vmatpush1.xpose.msra.mxu0 0.0
      %3219 = vmatprep.subr.mxu0 0.0
      %3220 = vmatpush1.xpose.msra.mxu0 0.0
      %3221 = vmatprep.subr.mxu0 0.0
      %3222 = vmatpush1.xpose.msra.mxu0 0.0
      %3223 = vmatprep.subr.mxu0 0.0
      %3224 = vmatpush1.xpose.msra.mxu0 0.0
      %3225 = vmatprep.mubr.f32.mxu0 0.0
      %3226 = vmatmul.mubr.f32.gmra.mrb[0].mxu0 %v3153
      %v3227 = vpop.f32.mrb[0].mxu0
      %v3228 = vadd.f32 0.0, %v3227
      %v3229 = vpop.f32.mrb[0].mxu0
      %3230 = vmatprep.mubr.f32.mxu0 0.0
      %3231 = vmatmul.mubr.f32.gmra.mrb[0].mxu0 %v3155
      %v3232 = vpop.f32.mrb[0].mxu0
      %v3233 = vadd.f32 0.0, %v3232
      %v3234 = vpop.f32.mrb[0].mxu0
      %3235 = vdwg.mxu0
      %3236 = vrot.lane.b32.xlu0 %v855, 112
      %v3237 = vpop.permute.xlu0 %3236
      %3238 = vrot.lane.b32.xlu0 %v860, 112
      %v3239 = vpop.permute.xlu0 %3238
      %3240 = vrot.lane.b32.xlu0 %v971, 112
      %v3241 = vpop.permute.xlu0 %3240
      %3242 = vrot.lane.b32.xlu0 %v976, 112
      %v3243 = vpop.permute.xlu0 %3242
      %v3244 = vsel %vm1095, %v3237, 0
      %v3246 = vsel %vm1095, %v3239, 0
      %v3248 = vsel %vm1095, %v3241, 0
      %v3250 = vsel %vm1095, %v3243, 0
      %3252 = vmatprep.subr.mxu0 0.0
      %3253 = vmatpush1.xpose.msra.mxu0 %v3248
      %3254 = vmatprep.subr.mxu0 0.0
      %3255 = vmatpush1.xpose.msra.mxu0 %v3250
      %3256 = vmatprep.subr.mxu0 0.0
      %3257 = vmatpush1.xpose.msra.mxu0 0.0
      %3258 = vmatprep.subr.mxu0 0.0
      %3259 = vmatpush1.xpose.msra.mxu0 0.0
      %3260 = vmatprep.subr.mxu0 0.0
      %3261 = vmatpush1.xpose.msra.mxu0 0.0
      %3262 = vmatprep.subr.mxu0 0.0
      %3263 = vmatpush1.xpose.msra.mxu0 0.0
      %3264 = vmatprep.subr.mxu0 0.0
      %3265 = vmatpush1.xpose.msra.mxu0 0.0
      %3266 = vmatprep.subr.mxu0 0.0
      %3267 = vmatpush1.xpose.msra.mxu0 0.0
      %3268 = vmatprep.subr.mxu0 0.0
      %3269 = vmatpush1.xpose.msra.mxu0 0.0
      %3270 = vmatprep.subr.mxu0 0.0
      %3271 = vmatpush1.xpose.msra.mxu0 0.0
      %3272 = vmatprep.subr.mxu0 0.0
      %3273 = vmatpush1.xpose.msra.mxu0 0.0
      %3274 = vmatprep.subr.mxu0 0.0
      %3275 = vmatpush1.xpose.msra.mxu0 0.0
      %3276 = vmatprep.subr.mxu0 0.0
      %3277 = vmatpush1.xpose.msra.mxu0 0.0
      %3278 = vmatprep.subr.mxu0 0.0
      %3279 = vmatpush1.xpose.msra.mxu0 0.0
      %3280 = vmatprep.subr.mxu0 0.0
      %3281 = vmatpush1.xpose.msra.mxu0 0.0
      %3282 = vmatprep.subr.mxu0 0.0
      %3283 = vmatpush1.xpose.msra.mxu0 0.0
      %3284 = vmatprep.subr.mxu0 0.0
      %3285 = vmatpush1.xpose.msra.mxu0 0.0
      %3286 = vmatprep.subr.mxu0 0.0
      %3287 = vmatpush1.xpose.msra.mxu0 0.0
      %3288 = vmatprep.subr.mxu0 0.0
      %3289 = vmatpush1.xpose.msra.mxu0 0.0
      %3290 = vmatprep.subr.mxu0 0.0
      %3291 = vmatpush1.xpose.msra.mxu0 0.0
      %3292 = vmatprep.subr.mxu0 0.0
      %3293 = vmatpush1.xpose.msra.mxu0 0.0
      %3294 = vmatprep.subr.mxu0 0.0
      %3295 = vmatpush1.xpose.msra.mxu0 0.0
      %3296 = vmatprep.subr.mxu0 0.0
      %3297 = vmatpush1.xpose.msra.mxu0 0.0
      %3298 = vmatprep.subr.mxu0 0.0
      %3299 = vmatpush1.xpose.msra.mxu0 0.0
      %3300 = vmatprep.subr.mxu0 0.0
      %3301 = vmatpush1.xpose.msra.mxu0 0.0
      %3302 = vmatprep.subr.mxu0 0.0
      %3303 = vmatpush1.xpose.msra.mxu0 0.0
      %3304 = vmatprep.subr.mxu0 0.0
      %3305 = vmatpush1.xpose.msra.mxu0 0.0
      %3306 = vmatprep.subr.mxu0 0.0
      %3307 = vmatpush1.xpose.msra.mxu0 0.0
      %3308 = vmatprep.subr.mxu0 0.0
      %3309 = vmatpush1.xpose.msra.mxu0 0.0
      %3310 = vmatprep.subr.mxu0 0.0
      %3311 = vmatpush1.xpose.msra.mxu0 0.0
      %3312 = vmatprep.subr.mxu0 0.0
      %3313 = vmatpush1.xpose.msra.mxu0 0.0
      %3314 = vmatprep.subr.mxu0 0.0
      %3315 = vmatpush1.xpose.msra.mxu0 0.0
      %3316 = vmatprep.mubr.f32.mxu0 0.0
      %3317 = vmatmul.mubr.f32.gmra.mrb[0].mxu0 %v3244
      %v3318 = vpop.f32.mrb[0].mxu0
      %v3319 = vadd.f32 0.0, %v3318
      %v3320 = vpop.f32.mrb[0].mxu0
      %3321 = vmatprep.mubr.f32.mxu0 0.0
      %3322 = vmatmul.mubr.f32.gmra.mrb[0].mxu0 %v3246
      %v3323 = vpop.f32.mrb[0].mxu0
      %v3324 = vadd.f32 0.0, %v3323
      %v3325 = vpop.f32.mrb[0].mxu0
      %3326 = vdwg.mxu0
      %v3327 = vmul.f32 %v3046, 0.17677669
      %v3328 = vmul.f32 %v3051, 0.17677669
      %v3329 = vmul.f32 %v3137, 0.17677669
      %v3330 = vmul.f32 %v3142, 0.17677669
      %v3331 = vmul.f32 %v3228, 0.17677669
      %v3332 = vmul.f32 %v3233, 0.17677669
      %v3333 = vmul.f32 %v3319, 0.17677669
      %v3334 = vmul.f32 %v3324, 0.17677669
      %s3335 = scalar_lea.vmem %s11, 32
      %v3336 = vld [vmem:[%s3335] sm:$0xff]
      %v3337 = vld [vmem:[%s3335 + $0x8] sm:$0xff]
      %v3338 = vadd.f32 %v3327, %v3336
      %v3339 = vadd.f32 %v3328, %v3337
      %v3340 = vadd.f32 %v3329, %v3336
      %v3341 = vadd.f32 %v3330, %v3337
      %v3342 = vadd.f32 %v3331, %v3336
      %v3343 = vadd.f32 %v3332, %v3337
      %v3344 = vadd.f32 %v3333, %v3336
      %v3345 = vadd.f32 %v3334, %v3337
      %v3346 = vsel %vm1462, %v3338, -inf
      %3347 = vmax.xlane.f32.xlu0 %v3346
      %v3348 = vpop.xlane.xlu0 %3347
      %v3349 = vsel %vm1462, %v3339, -inf
      %3350 = vmax.xlane.f32.xlu0 %v3349
      %v3351 = vpop.xlane.xlu0 %3350
      %v3352 = vsel %vm1462, %v3340, -inf
      %3353 = vmax.xlane.f32.xlu0 %v3352
      %v3354 = vpop.xlane.xlu0 %3353
      %v3355 = vsel %vm1462, %v3341, -inf
      %3356 = vmax.xlane.f32.xlu0 %v3355
      %v3357 = vpop.xlane.xlu0 %3356
      %v3358 = vsel %vm1462, %v3342, -inf
      %3359 = vmax.xlane.f32.xlu0 %v3358
      %v3360 = vpop.xlane.xlu0 %3359
      %v3361 = vsel %vm1462, %v3343, -inf
      %3362 = vmax.xlane.f32.xlu0 %v3361
      %v3363 = vpop.xlane.xlu0 %3362
      %v3364 = vsel %vm1462, %v3344, -inf
      %3365 = vmax.xlane.f32.xlu0 %v3364
      %v3366 = vpop.xlane.xlu0 %3365
      %v3367 = vsel %vm1462, %v3345, -inf
      %3368 = vmax.xlane.f32.xlu0 %v3367
      %v3369 = vpop.xlane.xlu0 %3368
      %v3370 = vsub.f32 %v3338, %v3348
      %v3371 = vsub.f32 %v3339, %v3351
      %v3372 = vsub.f32 %v3340, %v3354
      %v3373 = vsub.f32 %v3341, %v3357
      %v3374 = vsub.f32 %v3342, %v3360
      %v3375 = vsub.f32 %v3343, %v3363
      %v3376 = vsub.f32 %v3344, %v3366
      %v3377 = vsub.f32 %v3345, %v3369
      %v3378 = vmul.f32 %v3370, 1.442695
      %v3379 = vpow.pop %v3378
      %v3380 = vmul.f32 %v3371, 1.442695
      %v3381 = vpow.pop %v3380
      %v3382 = vmul.f32 %v3372, 1.442695
      %v3383 = vpow.pop %v3382
      %v3384 = vmul.f32 %v3373, 1.442695
      %v3385 = vpow.pop %v3384
      %v3386 = vmul.f32 %v3374, 1.442695
      %v3387 = vpow.pop %v3386
      %v3388 = vmul.f32 %v3375, 1.442695
      %v3389 = vpow.pop %v3388
      %v3390 = vmul.f32 %v3376, 1.442695
      %v3391 = vpow.pop %v3390
      %v3392 = vmul.f32 %v3377, 1.442695
      %v3393 = vpow.pop %v3392
      %v3394 = vsel %vm1462, %v3379, 0.0
      %3395 = vadd.xlane.f32.xlu0 %v3394
      %v3396 = vpop.xlane.xlu0 %3395
      %v3397 = vsel %vm1462, %v3381, 0.0
      %3398 = vadd.xlane.f32.xlu0 %v3397
      %v3399 = vpop.xlane.xlu0 %3398
      %v3400 = vsel %vm1462, %v3383, 0.0
      %3401 = vadd.xlane.f32.xlu0 %v3400
      %v3402 = vpop.xlane.xlu0 %3401
      %v3403 = vsel %vm1462, %v3385, 0.0
      %3404 = vadd.xlane.f32.xlu0 %v3403
      %v3405 = vpop.xlane.xlu0 %3404
      %v3406 = vsel %vm1462, %v3387, 0.0
      %3407 = vadd.xlane.f32.xlu0 %v3406
      %v3408 = vpop.xlane.xlu0 %3407
      %v3409 = vsel %vm1462, %v3389, 0.0
      %3410 = vadd.xlane.f32.xlu0 %v3409
      %v3411 = vpop.xlane.xlu0 %3410
      %v3412 = vsel %vm1462, %v3391, 0.0
      %3413 = vadd.xlane.f32.xlu0 %v3412
      %v3414 = vpop.xlane.xlu0 %3413
      %v3415 = vsel %vm1462, %v3393, 0.0
      %3416 = vadd.xlane.f32.xlu0 %v3415
      %v3417 = vpop.xlane.xlu0 %3416
      %v3418 = vrcp.pop %v3396
      %v3419 = vrcp.pop %v3399
      %v3420 = vrcp.pop %v3402
      %v3421 = vrcp.pop %v3405
      %v3422 = vrcp.pop %v3408
      %v3423 = vrcp.pop %v3411
      %v3424 = vrcp.pop %v3414
      %v3425 = vrcp.pop %v3417
      %v3426 = vmul.f32 %v3379, %v3418
      %v3427 = vmul.f32 %v3381, %v3419
      %v3428 = vmul.f32 %v3383, %v3420
      %v3429 = vmul.f32 %v3385, %v3421
      %v3430 = vmul.f32 %v3387, %v3422
      %v3431 = vmul.f32 %v3389, %v3423
      %v3432 = vmul.f32 %v3391, %v3424
      %v3433 = vmul.f32 %v3393, %v3425
      %3434 = vrot.lane.b32.xlu0 %v1057, 112
      %v3435 = vpop.permute.xlu0 %3434
      %3436 = vrot.lane.b32.xlu0 %v1062, 112
      %v3437 = vpop.permute.xlu0 %3436
      %v3441 = vsel %vm1462, %v3426, 0
      %v3444 = vsel %vm1462, %v3427, 0
      %3446 = vmatprep.subr.mxu0 0.0
      %3447 = vmatpush1.msra.mxu0 %v3435
      %3448 = vmatprep.subr.mxu0 0.0
      %3449 = vmatpush1.msra.mxu0 %v3437
      %3450 = vmatprep.subr.mxu0 0.0
      %3451 = vmatpush1.msra.mxu0 0.0
      %3452 = vmatprep.subr.mxu0 0.0
      %3453 = vmatpush1.msra.mxu0 0.0
      %3454 = vmatprep.subr.mxu0 0.0
      %3455 = vmatpush1.msra.mxu0 0.0
      %3456 = vmatprep.subr.mxu0 0.0
      %3457 = vmatpush1.msra.mxu0 0.0
      %3458 = vmatprep.subr.mxu0 0.0
      %3459 = vmatpush1.msra.mxu0 0.0
      %3460 = vmatprep.subr.mxu0 0.0
      %3461 = vmatpush1.msra.mxu0 0.0
      %3462 = vmatprep.subr.mxu0 0.0
      %3463 = vmatpush1.msra.mxu0 0.0
      %3464 = vmatprep.subr.mxu0 0.0
      %3465 = vmatpush1.msra.mxu0 0.0
      %3466 = vmatprep.subr.mxu0 0.0
      %3467 = vmatpush1.msra.mxu0 0.0
      %3468 = vmatprep.subr.mxu0 0.0
      %3469 = vmatpush1.msra.mxu0 0.0
      %3470 = vmatprep.subr.mxu0 0.0
      %3471 = vmatpush1.msra.mxu0 0.0
      %3472 = vmatprep.subr.mxu0 0.0
      %3473 = vmatpush1.msra.mxu0 0.0
      %3474 = vmatprep.subr.mxu0 0.0
      %3475 = vmatpush1.msra.mxu0 0.0
      %3476 = vmatprep.subr.mxu0 0.0
      %3477 = vmatpush1.msra.mxu0 0.0
      %3478 = vmatprep.subr.mxu0 0.0
      %3479 = vmatpush1.msra.mxu0 0.0
      %3480 = vmatprep.subr.mxu0 0.0
      %3481 = vmatpush1.msra.mxu0 0.0
      %3482 = vmatprep.subr.mxu0 0.0
      %3483 = vmatpush1.msra.mxu0 0.0
      %3484 = vmatprep.subr.mxu0 0.0
      %3485 = vmatpush1.msra.mxu0 0.0
      %3486 = vmatprep.subr.mxu0 0.0
      %3487 = vmatpush1.msra.mxu0 0.0
      %3488 = vmatprep.subr.mxu0 0.0
      %3489 = vmatpush1.msra.mxu0 0.0
      %3490 = vmatprep.subr.mxu0 0.0
      %3491 = vmatpush1.msra.mxu0 0.0
      %3492 = vmatprep.subr.mxu0 0.0
      %3493 = vmatpush1.msra.mxu0 0.0
      %3494 = vmatprep.subr.mxu0 0.0
      %3495 = vmatpush1.msra.mxu0 0.0
      %3496 = vmatprep.subr.mxu0 0.0
      %3497 = vmatpush1.msra.mxu0 0.0
      %3498 = vmatprep.subr.mxu0 0.0
      %3499 = vmatpush1.msra.mxu0 0.0
      %3500 = vmatprep.subr.mxu0 0.0
      %3501 = vmatpush1.msra.mxu0 0.0
      %3502 = vmatprep.subr.mxu0 0.0
      %3503 = vmatpush1.msra.mxu0 0.0
      %3504 = vmatprep.subr.mxu0 0.0
      %3505 = vmatpush1.msra.mxu0 0.0
      %3506 = vmatprep.subr.mxu0 0.0
      %3507 = vmatpush1.msra.mxu0 0.0
      %3508 = vmatprep.subr.mxu0 0.0
      %3509 = vmatpush1.msra.mxu0 0.0
      %3510 = vmatprep.mubr.f32.mxu0 0.0
      %3511 = vmatmul.mubr.f32.gmra.mrb[0].mxu0 %v3441
      %v3512 = vpop.f32.mrb[0].mxu0
      %v3513 = vadd.f32 0.0, %v3512
      %v3514 = vpop.f32.mrb[0].mxu0
      %3515 = vmatprep.mubr.f32.mxu0 0.0
      %3516 = vmatmul.mubr.f32.gmra.mrb[0].mxu0 %v3444
      %v3517 = vpop.f32.mrb[0].mxu0
      %v3518 = vadd.f32 0.0, %v3517
      %v3519 = vpop.f32.mrb[0].mxu0
      %3520 = vdwg.mxu0
      %3521 = vrot.lane.b32.xlu0 %v1067, 112
      %v3522 = vpop.permute.xlu0 %3521
      %3523 = vrot.lane.b32.xlu0 %v1072, 112
      %v3524 = vpop.permute.xlu0 %3523
      %v3528 = vsel %vm1462, %v3428, 0
      %v3531 = vsel %vm1462, %v3429, 0
      %3533 = vmatprep.subr.mxu0 0.0
      %3534 = vmatpush1.msra.mxu0 %v3522
      %3535 = vmatprep.subr.mxu0 0.0
      %3536 = vmatpush1.msra.mxu0 %v3524
      %3537 = vmatprep.subr.mxu0 0.0
      %3538 = vmatpush1.msra.mxu0 0.0
      %3539 = vmatprep.subr.mxu0 0.0
      %3540 = vmatpush1.msra.mxu0 0.0
      %3541 = vmatprep.subr.mxu0 0.0
      %3542 = vmatpush1.msra.mxu0 0.0
      %3543 = vmatprep.subr.mxu0 0.0
      %3544 = vmatpush1.msra.mxu0 0.0
      %3545 = vmatprep.subr.mxu0 0.0
      %3546 = vmatpush1.msra.mxu0 0.0
      %3547 = vmatprep.subr.mxu0 0.0
      %3548 = vmatpush1.msra.mxu0 0.0
      %3549 = vmatprep.subr.mxu0 0.0
      %3550 = vmatpush1.msra.mxu0 0.0
      %3551 = vmatprep.subr.mxu0 0.0
      %3552 = vmatpush1.msra.mxu0 0.0
      %3553 = vmatprep.subr.mxu0 0.0
      %3554 = vmatpush1.msra.mxu0 0.0
      %3555 = vmatprep.subr.mxu0 0.0
      %3556 = vmatpush1.msra.mxu0 0.0
      %3557 = vmatprep.subr.mxu0 0.0
      %3558 = vmatpush1.msra.mxu0 0.0
      %3559 = vmatprep.subr.mxu0 0.0
      %3560 = vmatpush1.msra.mxu0 0.0
      %3561 = vmatprep.subr.mxu0 0.0
      %3562 = vmatpush1.msra.mxu0 0.0
      %3563 = vmatprep.subr.mxu0 0.0
      %3564 = vmatpush1.msra.mxu0 0.0
      %3565 = vmatprep.subr.mxu0 0.0
      %3566 = vmatpush1.msra.mxu0 0.0
      %3567 = vmatprep.subr.mxu0 0.0
      %3568 = vmatpush1.msra.mxu0 0.0
      %3569 = vmatprep.subr.mxu0 0.0
      %3570 = vmatpush1.msra.mxu0 0.0
      %3571 = vmatprep.subr.mxu0 0.0
      %3572 = vmatpush1.msra.mxu0 0.0
      %3573 = vmatprep.subr.mxu0 0.0
      %3574 = vmatpush1.msra.mxu0 0.0
      %3575 = vmatprep.subr.mxu0 0.0
      %3576 = vmatpush1.msra.mxu0 0.0
      %3577 = vmatprep.subr.mxu0 0.0
      %3578 = vmatpush1.msra.mxu0 0.0
      %3579 = vmatprep.subr.mxu0 0.0
      %3580 = vmatpush1.msra.mxu0 0.0
      %3581 = vmatprep.subr.mxu0 0.0
      %3582 = vmatpush1.msra.mxu0 0.0
      %3583 = vmatprep.subr.mxu0 0.0
      %3584 = vmatpush1.msra.mxu0 0.0
      %3585 = vmatprep.subr.mxu0 0.0
      %3586 = vmatpush1.msra.mxu0 0.0
      %3587 = vmatprep.subr.mxu0 0.0
      %3588 = vmatpush1.msra.mxu0 0.0
      %3589 = vmatprep.subr.mxu0 0.0
      %3590 = vmatpush1.msra.mxu0 0.0
      %3591 = vmatprep.subr.mxu0 0.0
      %3592 = vmatpush1.msra.mxu0 0.0
      %3593 = vmatprep.subr.mxu0 0.0
      %3594 = vmatpush1.msra.mxu0 0.0
      %3595 = vmatprep.subr.mxu0 0.0
      %3596 = vmatpush1.msra.mxu0 0.0
      %3597 = vmatprep.mubr.f32.mxu0 0.0
      %3598 = vmatmul.mubr.f32.gmra.mrb[0].mxu0 %v3528
      %v3599 = vpop.f32.mrb[0].mxu0
      %v3600 = vadd.f32 0.0, %v3599
      %v3601 = vpop.f32.mrb[0].mxu0
      %3602 = vmatprep.mubr.f32.mxu0 0.0
      %3603 = vmatmul.mubr.f32.gmra.mrb[0].mxu0 %v3531
      %v3604 = vpop.f32.mrb[0].mxu0
      %v3605 = vadd.f32 0.0, %v3604
      %v3606 = vpop.f32.mrb[0].mxu0
      %3607 = vdwg.mxu0
      %3608 = vrot.lane.b32.xlu0 %v1077, 112
      %v3609 = vpop.permute.xlu0 %3608
      %3610 = vrot.lane.b32.xlu0 %v1082, 112
      %v3611 = vpop.permute.xlu0 %3610
      %v3615 = vsel %vm1462, %v3430, 0
      %v3618 = vsel %vm1462, %v3431, 0
      %3620 = vmatprep.subr.mxu0 0.0
      %3621 = vmatpush1.msra.mxu0 %v3609
      %3622 = vmatprep.subr.mxu0 0.0
      %3623 = vmatpush1.msra.mxu0 %v3611
      %3624 = vmatprep.subr.mxu0 0.0
      %3625 = vmatpush1.msra.mxu0 0.0
      %3626 = vmatprep.subr.mxu0 0.0
      %3627 = vmatpush1.msra.mxu0 0.0
      %3628 = vmatprep.subr.mxu0 0.0
      %3629 = vmatpush1.msra.mxu0 0.0
      %3630 = vmatprep.subr.mxu0 0.0
      %3631 = vmatpush1.msra.mxu0 0.0
      %3632 = vmatprep.subr.mxu0 0.0
      %3633 = vmatpush1.msra.mxu0 0.0
      %3634 = vmatprep.subr.mxu0 0.0
      %3635 = vmatpush1.msra.mxu0 0.0
      %3636 = vmatprep.subr.mxu0 0.0
      %3637 = vmatpush1.msra.mxu0 0.0
      %3638 = vmatprep.subr.mxu0 0.0
      %3639 = vmatpush1.msra.mxu0 0.0
      %3640 = vmatprep.subr.mxu0 0.0
      %3641 = vmatpush1.msra.mxu0 0.0
      %3642 = vmatprep.subr.mxu0 0.0
      %3643 = vmatpush1.msra.mxu0 0.0
      %3644 = vmatprep.subr.mxu0 0.0
      %3645 = vmatpush1.msra.mxu0 0.0
      %3646 = vmatprep.subr.mxu0 0.0
      %3647 = vmatpush1.msra.mxu0 0.0
      %3648 = vmatprep.subr.mxu0 0.0
      %3649 = vmatpush1.msra.mxu0 0.0
      %3650 = vmatprep.subr.mxu0 0.0
      %3651 = vmatpush1.msra.mxu0 0.0
      %3652 = vmatprep.subr.mxu0 0.0
      %3653 = vmatpush1.msra.mxu0 0.0
      %3654 = vmatprep.subr.mxu0 0.0
      %3655 = vmatpush1.msra.mxu0 0.0
      %3656 = vmatprep.subr.mxu0 0.0
      %3657 = vmatpush1.msra.mxu0 0.0
      %3658 = vmatprep.subr.mxu0 0.0
      %3659 = vmatpush1.msra.mxu0 0.0
      %3660 = vmatprep.subr.mxu0 0.0
      %3661 = vmatpush1.msra.mxu0 0.0
      %3662 = vmatprep.subr.mxu0 0.0
      %3663 = vmatpush1.msra.mxu0 0.0
      %3664 = vmatprep.subr.mxu0 0.0
      %3665 = vmatpush1.msra.mxu0 0.0
      %3666 = vmatprep.subr.mxu0 0.0
      %3667 = vmatpush1.msra.mxu0 0.0
      %3668 = vmatprep.subr.mxu0 0.0
      %3669 = vmatpush1.msra.mxu0 0.0
      %3670 = vmatprep.subr.mxu0 0.0
      %3671 = vmatpush1.msra.mxu0 0.0
      %3672 = vmatprep.subr.mxu0 0.0
      %3673 = vmatpush1.msra.mxu0 0.0
      %3674 = vmatprep.subr.mxu0 0.0
      %3675 = vmatpush1.msra.mxu0 0.0
      %3676 = vmatprep.subr.mxu0 0.0
      %3677 = vmatpush1.msra.mxu0 0.0
      %3678 = vmatprep.subr.mxu0 0.0
      %3679 = vmatpush1.msra.mxu0 0.0
      %3680 = vmatprep.subr.mxu0 0.0
      %3681 = vmatpush1.msra.mxu0 0.0
      %3682 = vmatprep.subr.mxu0 0.0
      %3683 = vmatpush1.msra.mxu0 0.0
      %3684 = vmatprep.mubr.f32.mxu0 0.0
      %3685 = vmatmul.mubr.f32.gmra.mrb[0].mxu0 %v3615
      %v3686 = vpop.f32.mrb[0].mxu0
      %v3687 = vadd.f32 0.0, %v3686
      %v3688 = vpop.f32.mrb[0].mxu0
      %3689 = vmatprep.mubr.f32.mxu0 0.0
      %3690 = vmatmul.mubr.f32.gmra.mrb[0].mxu0 %v3618
      %v3691 = vpop.f32.mrb[0].mxu0
      %v3692 = vadd.f32 0.0, %v3691
      %v3693 = vpop.f32.mrb[0].mxu0
      %3694 = vdwg.mxu0
      %3695 = vrot.lane.b32.xlu0 %v1087, 112
      %v3696 = vpop.permute.xlu0 %3695
      %3697 = vrot.lane.b32.xlu0 %v1092, 112
      %v3698 = vpop.permute.xlu0 %3697
      %v3702 = vsel %vm1462, %v3432, 0
      %v3705 = vsel %vm1462, %v3433, 0
      %3707 = vmatprep.subr.mxu0 0.0
      %3708 = vmatpush1.msra.mxu0 %v3696
      %3709 = vmatprep.subr.mxu0 0.0
      %3710 = vmatpush1.msra.mxu0 %v3698
      %3711 = vmatprep.subr.mxu0 0.0
      %3712 = vmatpush1.msra.mxu0 0.0
      %3713 = vmatprep.subr.mxu0 0.0
      %3714 = vmatpush1.msra.mxu0 0.0
      %3715 = vmatprep.subr.mxu0 0.0
      %3716 = vmatpush1.msra.mxu0 0.0
      %3717 = vmatprep.subr.mxu0 0.0
      %3718 = vmatpush1.msra.mxu0 0.0
      %3719 = vmatprep.subr.mxu0 0.0
      %3720 = vmatpush1.msra.mxu0 0.0
      %3721 = vmatprep.subr.mxu0 0.0
      %3722 = vmatpush1.msra.mxu0 0.0
      %3723 = vmatprep.subr.mxu0 0.0
      %3724 = vmatpush1.msra.mxu0 0.0
      %3725 = vmatprep.subr.mxu0 0.0
      %3726 = vmatpush1.msra.mxu0 0.0
      %3727 = vmatprep.subr.mxu0 0.0
      %3728 = vmatpush1.msra.mxu0 0.0
      %3729 = vmatprep.subr.mxu0 0.0
      %3730 = vmatpush1.msra.mxu0 0.0
      %3731 = vmatprep.subr.mxu0 0.0
      %3732 = vmatpush1.msra.mxu0 0.0
      %3733 = vmatprep.subr.mxu0 0.0
      %3734 = vmatpush1.msra.mxu0 0.0
      %3735 = vmatprep.subr.mxu0 0.0
      %3736 = vmatpush1.msra.mxu0 0.0
      %3737 = vmatprep.subr.mxu0 0.0
      %3738 = vmatpush1.msra.mxu0 0.0
      %3739 = vmatprep.subr.mxu0 0.0
      %3740 = vmatpush1.msra.mxu0 0.0
      %3741 = vmatprep.subr.mxu0 0.0
      %3742 = vmatpush1.msra.mxu0 0.0
      %3743 = vmatprep.subr.mxu0 0.0
      %3744 = vmatpush1.msra.mxu0 0.0
      %3745 = vmatprep.subr.mxu0 0.0
      %3746 = vmatpush1.msra.mxu0 0.0
      %3747 = vmatprep.subr.mxu0 0.0
      %3748 = vmatpush1.msra.mxu0 0.0
      %3749 = vmatprep.subr.mxu0 0.0
      %3750 = vmatpush1.msra.mxu0 0.0
      %3751 = vmatprep.subr.mxu0 0.0
      %3752 = vmatpush1.msra.mxu0 0.0
      %3753 = vmatprep.subr.mxu0 0.0
      %3754 = vmatpush1.msra.mxu0 0.0
      %3755 = vmatprep.subr.mxu0 0.0
      %3756 = vmatpush1.msra.mxu0 0.0
      %3757 = vmatprep.subr.mxu0 0.0
      %3758 = vmatpush1.msra.mxu0 0.0
      %3759 = vmatprep.subr.mxu0 0.0
      %3760 = vmatpush1.msra.mxu0 0.0
      %3761 = vmatprep.subr.mxu0 0.0
      %3762 = vmatpush1.msra.mxu0 0.0
      %3763 = vmatprep.subr.mxu0 0.0
      %3764 = vmatpush1.msra.mxu0 0.0
      %3765 = vmatprep.subr.mxu0 0.0
      %3766 = vmatpush1.msra.mxu0 0.0
      %3767 = vmatprep.subr.mxu0 0.0
      %3768 = vmatpush1.msra.mxu0 0.0
      %3769 = vmatprep.subr.mxu0 0.0
      %3770 = vmatpush1.msra.mxu0 0.0
      %3771 = vmatprep.mubr.f32.mxu0 0.0
      %3772 = vmatmul.mubr.f32.gmra.mrb[0].mxu0 %v3702
      %v3773 = vpop.f32.mrb[0].mxu0
      %v3774 = vadd.f32 0.0, %v3773
      %v3775 = vpop.f32.mrb[0].mxu0
      %3776 = vmatprep.mubr.f32.mxu0 0.0
      %3777 = vmatmul.mubr.f32.gmra.mrb[0].mxu0 %v3705
      %v3778 = vpop.f32.mrb[0].mxu0
      %v3779 = vadd.f32 0.0, %v3778
      %v3780 = vpop.f32.mrb[0].mxu0
      %3781 = vdwg.mxu0
      %s3782 = scalar_lea.vmem %s9, 16
      %v3783 = vld [vmem:[%s3782] sm:$0xff]
      %v3785 = vsel %vm1095, %v3513, 0
      %v3788 = vsel %vm1095, %v3518, 0
      %v3791 = vsel %vm1095, %v3600, 0
      %v3794 = vsel %vm1095, %v3605, 0
      %v3797 = vsel %vm1095, %v3687, 0
      %v3800 = vsel %vm1095, %v3692, 0
      %v3803 = vsel %vm1095, %v3774, 0
      %v3806 = vsel %vm1095, %v3779, 0
      %3808 = vmatprep.subr.mxu0 0.0
      %3809 = vmatpush1.msra.mxu0 %v3783
      %3810 = vmatprep.subr.mxu0 0.0
      %3811 = vmatpush1.msra.mxu0 0.0
      %3812 = vmatprep.subr.mxu0 0.0
      %3813 = vmatpush1.msra.mxu0 0.0
      %3814 = vmatprep.subr.mxu0 0.0
      %3815 = vmatpush1.msra.mxu0 0.0
      %3816 = vmatprep.subr.mxu0 0.0
      %3817 = vmatpush1.msra.mxu0 0.0
      %3818 = vmatprep.subr.mxu0 0.0
      %3819 = vmatpush1.msra.mxu0 0.0
      %3820 = vmatprep.subr.mxu0 0.0
      %3821 = vmatpush1.msra.mxu0 0.0
      %3822 = vmatprep.subr.mxu0 0.0
      %3823 = vmatpush1.msra.mxu0 0.0
      %3824 = vmatprep.subr.mxu0 0.0
      %3825 = vmatpush1.msra.mxu0 0.0
      %3826 = vmatprep.subr.mxu0 0.0
      %3827 = vmatpush1.msra.mxu0 0.0
      %3828 = vmatprep.subr.mxu0 0.0
      %3829 = vmatpush1.msra.mxu0 0.0
      %3830 = vmatprep.subr.mxu0 0.0
      %3831 = vmatpush1.msra.mxu0 0.0
      %3832 = vmatprep.subr.mxu0 0.0
      %3833 = vmatpush1.msra.mxu0 0.0
      %3834 = vmatprep.subr.mxu0 0.0
      %3835 = vmatpush1.msra.mxu0 0.0
      %3836 = vmatprep.subr.mxu0 0.0
      %3837 = vmatpush1.msra.mxu0 0.0
      %3838 = vmatprep.subr.mxu0 0.0
      %3839 = vmatpush1.msra.mxu0 0.0
      %3840 = vmatprep.subr.mxu0 0.0
      %3841 = vmatpush1.msra.mxu0 0.0
      %3842 = vmatprep.subr.mxu0 0.0
      %3843 = vmatpush1.msra.mxu0 0.0
      %3844 = vmatprep.subr.mxu0 0.0
      %3845 = vmatpush1.msra.mxu0 0.0
      %3846 = vmatprep.subr.mxu0 0.0
      %3847 = vmatpush1.msra.mxu0 0.0
      %3848 = vmatprep.subr.mxu0 0.0
      %3849 = vmatpush1.msra.mxu0 0.0
      %3850 = vmatprep.subr.mxu0 0.0
      %3851 = vmatpush1.msra.mxu0 0.0
      %3852 = vmatprep.subr.mxu0 0.0
      %3853 = vmatpush1.msra.mxu0 0.0
      %3854 = vmatprep.subr.mxu0 0.0
      %3855 = vmatpush1.msra.mxu0 0.0
      %3856 = vmatprep.subr.mxu0 0.0
      %3857 = vmatpush1.msra.mxu0 0.0
      %3858 = vmatprep.subr.mxu0 0.0
      %3859 = vmatpush1.msra.mxu0 0.0
      %3860 = vmatprep.subr.mxu0 0.0
      %3861 = vmatpush1.msra.mxu0 0.0
      %3862 = vmatprep.subr.mxu0 0.0
      %3863 = vmatpush1.msra.mxu0 0.0
      %3864 = vmatprep.subr.mxu0 0.0
      %3865 = vmatpush1.msra.mxu0 0.0
      %3866 = vmatprep.subr.mxu0 0.0
      %3867 = vmatpush1.msra.mxu0 0.0
      %3868 = vmatprep.subr.mxu0 0.0
      %3869 = vmatpush1.msra.mxu0 0.0
      %3870 = vmatprep.subr.mxu0 0.0
      %3871 = vmatpush1.msra.mxu0 0.0
      %3872 = vmatprep.mubr.f32.mxu0 0.0
      %3873 = vmatmul.mubr.f32.gmra.mrb[0].mxu0 %v3785
      %v3874 = vpop.f32.mrb[0].mxu0
      %v3875 = vadd.f32 0.0, %v3874
      %v3876 = vpop.f32.mrb[0].mxu0
      %3877 = vmatprep.mubr.f32.mxu0 0.0
      %3878 = vmatmul.mubr.f32.gmra.mrb[0].mxu0 %v3788
      %v3879 = vpop.f32.mrb[0].mxu0
      %v3880 = vadd.f32 0.0, %v3879
      %v3881 = vpop.f32.mrb[0].mxu0
      %3882 = vmatprep.mubr.f32.mxu0 0.0
      %3883 = vmatmul.mubr.f32.gmra.mrb[0].mxu0 %v3791
      %v3884 = vpop.f32.mrb[0].mxu0
      %v3885 = vadd.f32 0.0, %v3884
      %v3886 = vpop.f32.mrb[0].mxu0
      %3887 = vmatprep.mubr.f32.mxu0 0.0
      %3888 = vmatmul.mubr.f32.gmra.mrb[0].mxu0 %v3794
      %v3889 = vpop.f32.mrb[0].mxu0
      %v3890 = vadd.f32 0.0, %v3889
      %v3891 = vpop.f32.mrb[0].mxu0
      %3892 = vmatprep.mubr.f32.mxu0 0.0
      %3893 = vmatmul.mubr.f32.gmra.mrb[0].mxu0 %v3797
      %v3894 = vpop.f32.mrb[0].mxu0
      %v3895 = vadd.f32 0.0, %v3894
      %v3896 = vpop.f32.mrb[0].mxu0
      %3897 = vmatprep.mubr.f32.mxu0 0.0
      %3898 = vmatmul.mubr.f32.gmra.mrb[0].mxu0 %v3800
      %v3899 = vpop.f32.mrb[0].mxu0
      %v3900 = vadd.f32 0.0, %v3899
      %v3901 = vpop.f32.mrb[0].mxu0
      %3902 = vmatprep.mubr.f32.mxu0 0.0
      %3903 = vmatmul.mubr.f32.gmra.mrb[0].mxu0 %v3803
      %v3904 = vpop.f32.mrb[0].mxu0
      %v3905 = vadd.f32 0.0, %v3904
      %v3906 = vpop.f32.mrb[0].mxu0
      %3907 = vmatprep.mubr.f32.mxu0 0.0
      %3908 = vmatmul.mubr.f32.gmra.mrb[0].mxu0 %v3806
      %v3909 = vpop.f32.mrb[0].mxu0
      %v3910 = vadd.f32 0.0, %v3909
      %v3911 = vpop.f32.mrb[0].mxu0
      %3912 = vdwg.mxu0
      %v3913 = vadd.f32 %v2925, %v3875
      %v3914 = vadd.f32 %v2930, %v3880
      %v3915 = vadd.f32 %v2935, %v3885
      %v3916 = vadd.f32 %v2940, %v3890
      %v3917 = vadd.f32 %v2945, %v3895
      %v3918 = vadd.f32 %v2950, %v3900
      %v3919 = vadd.f32 %v2955, %v3905
      %v3920 = vadd.f32 %v2960, %v3910
      %3921 = vrot.lane.b32.xlu0 %v825, 104
      %v3922 = vpop.permute.xlu0 %3921
      %3923 = vrot.lane.b32.xlu0 %v830, 104
      %v3924 = vpop.permute.xlu0 %3923
      %3925 = vrot.lane.b32.xlu0 %v941, 104
      %v3926 = vpop.permute.xlu0 %3925
      %3927 = vrot.lane.b32.xlu0 %v946, 104
      %v3928 = vpop.permute.xlu0 %3927
      %v3929 = vsel %vm1095, %v3922, 0
      %v3931 = vsel %vm1095, %v3924, 0
      %v3933 = vsel %vm1095, %v3926, 0
      %v3935 = vsel %vm1095, %v3928, 0
      %3937 = vmatprep.subr.mxu0 0.0
      %3938 = vmatpush1.xpose.msra.mxu0 %v3933
      %3939 = vmatprep.subr.mxu0 0.0
      %3940 = vmatpush1.xpose.msra.mxu0 %v3935
      %3941 = vmatprep.subr.mxu0 0.0
      %3942 = vmatpush1.xpose.msra.mxu0 0.0
      %3943 = vmatprep.subr.mxu0 0.0
      %3944 = vmatpush1.xpose.msra.mxu0 0.0
      %3945 = vmatprep.subr.mxu0 0.0
      %3946 = vmatpush1.xpose.msra.mxu0 0.0
      %3947 = vmatprep.subr.mxu0 0.0
      %3948 = vmatpush1.xpose.msra.mxu0 0.0
      %3949 = vmatprep.subr.mxu0 0.0
      %3950 = vmatpush1.xpose.msra.mxu0 0.0
      %3951 = vmatprep.subr.mxu0 0.0
      %3952 = vmatpush1.xpose.msra.mxu0 0.0
      %3953 = vmatprep.subr.mxu0 0.0
      %3954 = vmatpush1.xpose.msra.mxu0 0.0
      %3955 = vmatprep.subr.mxu0 0.0
      %3956 = vmatpush1.xpose.msra.mxu0 0.0
      %3957 = vmatprep.subr.mxu0 0.0
      %3958 = vmatpush1.xpose.msra.mxu0 0.0
      %3959 = vmatprep.subr.mxu0 0.0
      %3960 = vmatpush1.xpose.msra.mxu0 0.0
      %3961 = vmatprep.subr.mxu0 0.0
      %3962 = vmatpush1.xpose.msra.mxu0 0.0
      %3963 = vmatprep.subr.mxu0 0.0
      %3964 = vmatpush1.xpose.msra.mxu0 0.0
      %3965 = vmatprep.subr.mxu0 0.0
      %3966 = vmatpush1.xpose.msra.mxu0 0.0
      %3967 = vmatprep.subr.mxu0 0.0
      %3968 = vmatpush1.xpose.msra.mxu0 0.0
      %3969 = vmatprep.subr.mxu0 0.0
      %3970 = vmatpush1.xpose.msra.mxu0 0.0
      %3971 = vmatprep.subr.mxu0 0.0
      %3972 = vmatpush1.xpose.msra.mxu0 0.0
      %3973 = vmatprep.subr.mxu0 0.0
      %3974 = vmatpush1.xpose.msra.mxu0 0.0
      %3975 = vmatprep.subr.mxu0 0.0
      %3976 = vmatpush1.xpose.msra.mxu0 0.0
      %3977 = vmatprep.subr.mxu0 0.0
      %3978 = vmatpush1.xpose.msra.mxu0 0.0
      %3979 = vmatprep.subr.mxu0 0.0
      %3980 = vmatpush1.xpose.msra.mxu0 0.0
      %3981 = vmatprep.subr.mxu0 0.0
      %3982 = vmatpush1.xpose.msra.mxu0 0.0
      %3983 = vmatprep.subr.mxu0 0.0
      %3984 = vmatpush1.xpose.msra.mxu0 0.0
      %3985 = vmatprep.subr.mxu0 0.0
      %3986 = vmatpush1.xpose.msra.mxu0 0.0
      %3987 = vmatprep.subr.mxu0 0.0
      %3988 = vmatpush1.xpose.msra.mxu0 0.0
      %3989 = vmatprep.subr.mxu0 0.0
      %3990 = vmatpush1.xpose.msra.mxu0 0.0
      %3991 = vmatprep.subr.mxu0 0.0
      %3992 = vmatpush1.xpose.msra.mxu0 0.0
      %3993 = vmatprep.subr.mxu0 0.0
      %3994 = vmatpush1.xpose.msra.mxu0 0.0
      %3995 = vmatprep.subr.mxu0 0.0
      %3996 = vmatpush1.xpose.msra.mxu0 0.0
      %3997 = vmatprep.subr.mxu0 0.0
      %3998 = vmatpush1.xpose.msra.mxu0 0.0
      %3999 = vmatprep.subr.mxu0 0.0
      %4000 = vmatpush1.xpose.msra.mxu0 0.0
      %4001 = vmatprep.mubr.f32.mxu0 0.0
      %4002 = vmatmul.mubr.f32.gmra.mrb[0].mxu0 %v3929
      %v4003 = vpop.f32.mrb[0].mxu0
      %v4004 = vadd.f32 0.0, %v4003
      %v4005 = vpop.f32.mrb[0].mxu0
      %4006 = vmatprep.mubr.f32.mxu0 0.0
      %4007 = vmatmul.mubr.f32.gmra.mrb[0].mxu0 %v3931
      %v4008 = vpop.f32.mrb[0].mxu0
      %v4009 = vadd.f32 0.0, %v4008
      %v4010 = vpop.f32.mrb[0].mxu0
      %4011 = vdwg.mxu0
      %4012 = vrot.lane.b32.xlu0 %v835, 104
      %v4013 = vpop.permute.xlu0 %4012
      %4014 = vrot.lane.b32.xlu0 %v840, 104
      %v4015 = vpop.permute.xlu0 %4014
      %4016 = vrot.lane.b32.xlu0 %v951, 104
      %v4017 = vpop.permute.xlu0 %4016
      %4018 = vrot.lane.b32.xlu0 %v956, 104
      %v4019 = vpop.permute.xlu0 %4018
      %v4020 = vsel %vm1095, %v4013, 0
      %v4022 = vsel %vm1095, %v4015, 0
      %v4024 = vsel %vm1095, %v4017, 0
      %v4026 = vsel %vm1095, %v4019, 0
      %4028 = vmatprep.subr.mxu0 0.0
      %4029 = vmatpush1.xpose.msra.mxu0 %v4024
      %4030 = vmatprep.subr.mxu0 0.0
      %4031 = vmatpush1.xpose.msra.mxu0 %v4026
      %4032 = vmatprep.subr.mxu0 0.0
      %4033 = vmatpush1.xpose.msra.mxu0 0.0
      %4034 = vmatprep.subr.mxu0 0.0
      %4035 = vmatpush1.xpose.msra.mxu0 0.0
      %4036 = vmatprep.subr.mxu0 0.0
      %4037 = vmatpush1.xpose.msra.mxu0 0.0
      %4038 = vmatprep.subr.mxu0 0.0
      %4039 = vmatpush1.xpose.msra.mxu0 0.0
      %4040 = vmatprep.subr.mxu0 0.0
      %4041 = vmatpush1.xpose.msra.mxu0 0.0
      %4042 = vmatprep.subr.mxu0 0.0
      %4043 = vmatpush1.xpose.msra.mxu0 0.0
      %4044 = vmatprep.subr.mxu0 0.0
      %4045 = vmatpush1.xpose.msra.mxu0 0.0
      %4046 = vmatprep.subr.mxu0 0.0
      %4047 = vmatpush1.xpose.msra.mxu0 0.0
      %4048 = vmatprep.subr.mxu0 0.0
      %4049 = vmatpush1.xpose.msra.mxu0 0.0
      %4050 = vmatprep.subr.mxu0 0.0
      %4051 = vmatpush1.xpose.msra.mxu0 0.0
      %4052 = vmatprep.subr.mxu0 0.0
      %4053 = vmatpush1.xpose.msra.mxu0 0.0
      %4054 = vmatprep.subr.mxu0 0.0
      %4055 = vmatpush1.xpose.msra.mxu0 0.0
      %4056 = vmatprep.subr.mxu0 0.0
      %4057 = vmatpush1.xpose.msra.mxu0 0.0
      %4058 = vmatprep.subr.mxu0 0.0
      %4059 = vmatpush1.xpose.msra.mxu0 0.0
      %4060 = vmatprep.subr.mxu0 0.0
      %4061 = vmatpush1.xpose.msra.mxu0 0.0
      %4062 = vmatprep.subr.mxu0 0.0
      %4063 = vmatpush1.xpose.msra.mxu0 0.0
      %4064 = vmatprep.subr.mxu0 0.0
      %4065 = vmatpush1.xpose.msra.mxu0 0.0
      %4066 = vmatprep.subr.mxu0 0.0
      %4067 = vmatpush1.xpose.msra.mxu0 0.0
      %4068 = vmatprep.subr.mxu0 0.0
      %4069 = vmatpush1.xpose.msra.mxu0 0.0
      %4070 = vmatprep.subr.mxu0 0.0
      %4071 = vmatpush1.xpose.msra.mxu0 0.0
      %4072 = vmatprep.subr.mxu0 0.0
      %4073 = vmatpush1.xpose.msra.mxu0 0.0
      %4074 = vmatprep.subr.mxu0 0.0
      %4075 = vmatpush1.xpose.msra.mxu0 0.0
      %4076 = vmatprep.subr.mxu0 0.0
      %4077 = vmatpush1.xpose.msra.mxu0 0.0
      %4078 = vmatprep.subr.mxu0 0.0
      %4079 = vmatpush1.xpose.msra.mxu0 0.0
      %4080 = vmatprep.subr.mxu0 0.0
      %4081 = vmatpush1.xpose.msra.mxu0 0.0
      %4082 = vmatprep.subr.mxu0 0.0
      %4083 = vmatpush1.xpose.msra.mxu0 0.0
      %4084 = vmatprep.subr.mxu0 0.0
      %4085 = vmatpush1.xpose.msra.mxu0 0.0
      %4086 = vmatprep.subr.mxu0 0.0
      %4087 = vmatpush1.xpose.msra.mxu0 0.0
      %4088 = vmatprep.subr.mxu0 0.0
      %4089 = vmatpush1.xpose.msra.mxu0 0.0
      %4090 = vmatprep.subr.mxu0 0.0
      %4091 = vmatpush1.xpose.msra.mxu0 0.0
      %4092 = vmatprep.mubr.f32.mxu0 0.0
      %4093 = vmatmul.mubr.f32.gmra.mrb[0].mxu0 %v4020
      %v4094 = vpop.f32.mrb[0].mxu0
      %v4095 = vadd.f32 0.0, %v4094
      %v4096 = vpop.f32.mrb[0].mxu0
      %4097 = vmatprep.mubr.f32.mxu0 0.0
      %4098 = vmatmul.mubr.f32.gmra.mrb[0].mxu0 %v4022
      %v4099 = vpop.f32.mrb[0].mxu0
      %v4100 = vadd.f32 0.0, %v4099
      %v4101 = vpop.f32.mrb[0].mxu0
      %4102 = vdwg.mxu0
      %4103 = vrot.lane.b32.xlu0 %v845, 104
      %v4104 = vpop.permute.xlu0 %4103
      %4105 = vrot.lane.b32.xlu0 %v850, 104
      %v4106 = vpop.permute.xlu0 %4105
      %4107 = vrot.lane.b32.xlu0 %v961, 104
      %v4108 = vpop.permute.xlu0 %4107
      %4109 = vrot.lane.b32.xlu0 %v966, 104
      %v4110 = vpop.permute.xlu0 %4109
      %v4111 = vsel %vm1095, %v4104, 0
      %v4113 = vsel %vm1095, %v4106, 0
      %v4115 = vsel %vm1095, %v4108, 0
      %v4117 = vsel %vm1095, %v4110, 0
      %4119 = vmatprep.subr.mxu0 0.0
      %4120 = vmatpush1.xpose.msra.mxu0 %v4115
      %4121 = vmatprep.subr.mxu0 0.0
      %4122 = vmatpush1.xpose.msra.mxu0 %v4117
      %4123 = vmatprep.subr.mxu0 0.0
      %4124 = vmatpush1.xpose.msra.mxu0 0.0
      %4125 = vmatprep.subr.mxu0 0.0
      %4126 = vmatpush1.xpose.msra.mxu0 0.0
      %4127 = vmatprep.subr.mxu0 0.0
      %4128 = vmatpush1.xpose.msra.mxu0 0.0
      %4129 = vmatprep.subr.mxu0 0.0
      %4130 = vmatpush1.xpose.msra.mxu0 0.0
      %4131 = vmatprep.subr.mxu0 0.0
      %4132 = vmatpush1.xpose.msra.mxu0 0.0
      %4133 = vmatprep.subr.mxu0 0.0
      %4134 = vmatpush1.xpose.msra.mxu0 0.0
      %4135 = vmatprep.subr.mxu0 0.0
      %4136 = vmatpush1.xpose.msra.mxu0 0.0
      %4137 = vmatprep.subr.mxu0 0.0
      %4138 = vmatpush1.xpose.msra.mxu0 0.0
      %4139 = vmatprep.subr.mxu0 0.0
      %4140 = vmatpush1.xpose.msra.mxu0 0.0
      %4141 = vmatprep.subr.mxu0 0.0
      %4142 = vmatpush1.xpose.msra.mxu0 0.0
      %4143 = vmatprep.subr.mxu0 0.0
      %4144 = vmatpush1.xpose.msra.mxu0 0.0
      %4145 = vmatprep.subr.mxu0 0.0
      %4146 = vmatpush1.xpose.msra.mxu0 0.0
      %4147 = vmatprep.subr.mxu0 0.0
      %4148 = vmatpush1.xpose.msra.mxu0 0.0
      %4149 = vmatprep.subr.mxu0 0.0
      %4150 = vmatpush1.xpose.msra.mxu0 0.0
      %4151 = vmatprep.subr.mxu0 0.0
      %4152 = vmatpush1.xpose.msra.mxu0 0.0
      %4153 = vmatprep.subr.mxu0 0.0
      %4154 = vmatpush1.xpose.msra.mxu0 0.0
      %4155 = vmatprep.subr.mxu0 0.0
      %4156 = vmatpush1.xpose.msra.mxu0 0.0
      %4157 = vmatprep.subr.mxu0 0.0
      %4158 = vmatpush1.xpose.msra.mxu0 0.0
      %4159 = vmatprep.subr.mxu0 0.0
      %4160 = vmatpush1.xpose.msra.mxu0 0.0
      %4161 = vmatprep.subr.mxu0 0.0
      %4162 = vmatpush1.xpose.msra.mxu0 0.0
      %4163 = vmatprep.subr.mxu0 0.0
      %4164 = vmatpush1.xpose.msra.mxu0 0.0
      %4165 = vmatprep.subr.mxu0 0.0
      %4166 = vmatpush1.xpose.msra.mxu0 0.0
      %4167 = vmatprep.subr.mxu0 0.0
      %4168 = vmatpush1.xpose.msra.mxu0 0.0
      %4169 = vmatprep.subr.mxu0 0.0
      %4170 = vmatpush1.xpose.msra.mxu0 0.0
      %4171 = vmatprep.subr.mxu0 0.0
      %4172 = vmatpush1.xpose.msra.mxu0 0.0
      %4173 = vmatprep.subr.mxu0 0.0
      %4174 = vmatpush1.xpose.msra.mxu0 0.0
      %4175 = vmatprep.subr.mxu0 0.0
      %4176 = vmatpush1.xpose.msra.mxu0 0.0
      %4177 = vmatprep.subr.mxu0 0.0
      %4178 = vmatpush1.xpose.msra.mxu0 0.0
      %4179 = vmatprep.subr.mxu0 0.0
      %4180 = vmatpush1.xpose.msra.mxu0 0.0
      %4181 = vmatprep.subr.mxu0 0.0
      %4182 = vmatpush1.xpose.msra.mxu0 0.0
      %4183 = vmatprep.mubr.f32.mxu0 0.0
      %4184 = vmatmul.mubr.f32.gmra.mrb[0].mxu0 %v4111
      %v4185 = vpop.f32.mrb[0].mxu0
      %v4186 = vadd.f32 0.0, %v4185
      %v4187 = vpop.f32.mrb[0].mxu0
      %4188 = vmatprep.mubr.f32.mxu0 0.0
      %4189 = vmatmul.mubr.f32.gmra.mrb[0].mxu0 %v4113
      %v4190 = vpop.f32.mrb[0].mxu0
      %v4191 = vadd.f32 0.0, %v4190
      %v4192 = vpop.f32.mrb[0].mxu0
      %4193 = vdwg.mxu0
      %4194 = vrot.lane.b32.xlu0 %v855, 104
      %v4195 = vpop.permute.xlu0 %4194
      %4196 = vrot.lane.b32.xlu0 %v860, 104
      %v4197 = vpop.permute.xlu0 %4196
      %4198 = vrot.lane.b32.xlu0 %v971, 104
      %v4199 = vpop.permute.xlu0 %4198
      %4200 = vrot.lane.b32.xlu0 %v976, 104
      %v4201 = vpop.permute.xlu0 %4200
      %v4202 = vsel %vm1095, %v4195, 0
      %v4204 = vsel %vm1095, %v4197, 0
      %v4206 = vsel %vm1095, %v4199, 0
      %v4208 = vsel %vm1095, %v4201, 0
      %4210 = vmatprep.subr.mxu0 0.0
      %4211 = vmatpush1.xpose.msra.mxu0 %v4206
      %4212 = vmatprep.subr.mxu0 0.0
      %4213 = vmatpush1.xpose.msra.mxu0 %v4208
      %4214 = vmatprep.subr.mxu0 0.0
      %4215 = vmatpush1.xpose.msra.mxu0 0.0
      %4216 = vmatprep.subr.mxu0 0.0
      %4217 = vmatpush1.xpose.msra.mxu0 0.0
      %4218 = vmatprep.subr.mxu0 0.0
      %4219 = vmatpush1.xpose.msra.mxu0 0.0
      %4220 = vmatprep.subr.mxu0 0.0
      %4221 = vmatpush1.xpose.msra.mxu0 0.0
      %4222 = vmatprep.subr.mxu0 0.0
      %4223 = vmatpush1.xpose.msra.mxu0 0.0
      %4224 = vmatprep.subr.mxu0 0.0
      %4225 = vmatpush1.xpose.msra.mxu0 0.0
      %4226 = vmatprep.subr.mxu0 0.0
      %4227 = vmatpush1.xpose.msra.mxu0 0.0
      %4228 = vmatprep.subr.mxu0 0.0
      %4229 = vmatpush1.xpose.msra.mxu0 0.0
      %4230 = vmatprep.subr.mxu0 0.0
      %4231 = vmatpush1.xpose.msra.mxu0 0.0
      %4232 = vmatprep.subr.mxu0 0.0
      %4233 = vmatpush1.xpose.msra.mxu0 0.0
      %4234 = vmatprep.subr.mxu0 0.0
      %4235 = vmatpush1.xpose.msra.mxu0 0.0
      %4236 = vmatprep.subr.mxu0 0.0
      %4237 = vmatpush1.xpose.msra.mxu0 0.0
      %4238 = vmatprep.subr.mxu0 0.0
      %4239 = vmatpush1.xpose.msra.mxu0 0.0
      %4240 = vmatprep.subr.mxu0 0.0
      %4241 = vmatpush1.xpose.msra.mxu0 0.0
      %4242 = vmatprep.subr.mxu0 0.0
      %4243 = vmatpush1.xpose.msra.mxu0 0.0
      %4244 = vmatprep.subr.mxu0 0.0
      %4245 = vmatpush1.xpose.msra.mxu0 0.0
      %4246 = vmatprep.subr.mxu0 0.0
      %4247 = vmatpush1.xpose.msra.mxu0 0.0
      %4248 = vmatprep.subr.mxu0 0.0
      %4249 = vmatpush1.xpose.msra.mxu0 0.0
      %4250 = vmatprep.subr.mxu0 0.0
      %4251 = vmatpush1.xpose.msra.mxu0 0.0
      %4252 = vmatprep.subr.mxu0 0.0
      %4253 = vmatpush1.xpose.msra.mxu0 0.0
      %4254 = vmatprep.subr.mxu0 0.0
      %4255 = vmatpush1.xpose.msra.mxu0 0.0
      %4256 = vmatprep.subr.mxu0 0.0
      %4257 = vmatpush1.xpose.msra.mxu0 0.0
      %4258 = vmatprep.subr.mxu0 0.0
      %4259 = vmatpush1.xpose.msra.mxu0 0.0
      %4260 = vmatprep.subr.mxu0 0.0
      %4261 = vmatpush1.xpose.msra.mxu0 0.0
      %4262 = vmatprep.subr.mxu0 0.0
      %4263 = vmatpush1.xpose.msra.mxu0 0.0
      %4264 = vmatprep.subr.mxu0 0.0
      %4265 = vmatpush1.xpose.msra.mxu0 0.0
      %4266 = vmatprep.subr.mxu0 0.0
      %4267 = vmatpush1.xpose.msra.mxu0 0.0
      %4268 = vmatprep.subr.mxu0 0.0
      %4269 = vmatpush1.xpose.msra.mxu0 0.0
      %4270 = vmatprep.subr.mxu0 0.0
      %4271 = vmatpush1.xpose.msra.mxu0 0.0
      %4272 = vmatprep.subr.mxu0 0.0
      %4273 = vmatpush1.xpose.msra.mxu0 0.0
      %4274 = vmatprep.mubr.f32.mxu0 0.0
      %4275 = vmatmul.mubr.f32.gmra.mrb[0].mxu0 %v4202
      %v4276 = vpop.f32.mrb[0].mxu0
      %v4277 = vadd.f32 0.0, %v4276
      %v4278 = vpop.f32.mrb[0].mxu0
      %4279 = vmatprep.mubr.f32.mxu0 0.0
      %4280 = vmatmul.mubr.f32.gmra.mrb[0].mxu0 %v4204
      %v4281 = vpop.f32.mrb[0].mxu0
      %v4282 = vadd.f32 0.0, %v4281
      %v4283 = vpop.f32.mrb[0].mxu0
      %4284 = vdwg.mxu0
      %v4285 = vmul.f32 %v4004, 0.17677669
      %v4286 = vmul.f32 %v4009, 0.17677669
      %v4287 = vmul.f32 %v4095, 0.17677669
      %v4288 = vmul.f32 %v4100, 0.17677669
      %v4289 = vmul.f32 %v4186, 0.17677669
      %v4290 = vmul.f32 %v4191, 0.17677669
      %v4291 = vmul.f32 %v4277, 0.17677669
      %v4292 = vmul.f32 %v4282, 0.17677669
      %s4293 = scalar_lea.vmem %s11, 48
      %v4294 = vld [vmem:[%s4293] sm:$0xff]
      %v4295 = vld [vmem:[%s4293 + $0x8] sm:$0xff]
      %v4296 = vadd.f32 %v4285, %v4294
      %v4297 = vadd.f32 %v4286, %v4295
      %v4298 = vadd.f32 %v4287, %v4294
      %v4299 = vadd.f32 %v4288, %v4295
      %v4300 = vadd.f32 %v4289, %v4294
      %v4301 = vadd.f32 %v4290, %v4295
      %v4302 = vadd.f32 %v4291, %v4294
      %v4303 = vadd.f32 %v4292, %v4295
      %v4304 = vsel %vm1462, %v4296, -inf
      %4305 = vmax.xlane.f32.xlu0 %v4304
      %v4306 = vpop.xlane.xlu0 %4305
      %v4307 = vsel %vm1462, %v4297, -inf
      %4308 = vmax.xlane.f32.xlu0 %v4307
      %v4309 = vpop.xlane.xlu0 %4308
      %v4310 = vsel %vm1462, %v4298, -inf
      %4311 = vmax.xlane.f32.xlu0 %v4310
      %v4312 = vpop.xlane.xlu0 %4311
      %v4313 = vsel %vm1462, %v4299, -inf
      %4314 = vmax.xlane.f32.xlu0 %v4313
      %v4315 = vpop.xlane.xlu0 %4314
      %v4316 = vsel %vm1462, %v4300, -inf
      %4317 = vmax.xlane.f32.xlu0 %v4316
      %v4318 = vpop.xlane.xlu0 %4317
      %v4319 = vsel %vm1462, %v4301, -inf
      %4320 = vmax.xlane.f32.xlu0 %v4319
      %v4321 = vpop.xlane.xlu0 %4320
      %v4322 = vsel %vm1462, %v4302, -inf
      %4323 = vmax.xlane.f32.xlu0 %v4322
      %v4324 = vpop.xlane.xlu0 %4323
      %v4325 = vsel %vm1462, %v4303, -inf
      %4326 = vmax.xlane.f32.xlu0 %v4325
      %v4327 = vpop.xlane.xlu0 %4326
      %v4328 = vsub.f32 %v4296, %v4306
      %v4329 = vsub.f32 %v4297, %v4309
      %v4330 = vsub.f32 %v4298, %v4312
      %v4331 = vsub.f32 %v4299, %v4315
      %v4332 = vsub.f32 %v4300, %v4318
      %v4333 = vsub.f32 %v4301, %v4321
      %v4334 = vsub.f32 %v4302, %v4324
      %v4335 = vsub.f32 %v4303, %v4327
      %v4336 = vmul.f32 %v4328, 1.442695
      %v4337 = vpow.pop %v4336
      %v4338 = vmul.f32 %v4329, 1.442695
      %v4339 = vpow.pop %v4338
      %v4340 = vmul.f32 %v4330, 1.442695
      %v4341 = vpow.pop %v4340
      %v4342 = vmul.f32 %v4331, 1.442695
      %v4343 = vpow.pop %v4342
      %v4344 = vmul.f32 %v4332, 1.442695
      %v4345 = vpow.pop %v4344
      %v4346 = vmul.f32 %v4333, 1.442695
      %v4347 = vpow.pop %v4346
      %v4348 = vmul.f32 %v4334, 1.442695
      %v4349 = vpow.pop %v4348
      %v4350 = vmul.f32 %v4335, 1.442695
      %v4351 = vpow.pop %v4350
      %v4352 = vsel %vm1462, %v4337, 0.0
      %4353 = vadd.xlane.f32.xlu0 %v4352
      %v4354 = vpop.xlane.xlu0 %4353
      %v4355 = vsel %vm1462, %v4339, 0.0
      %4356 = vadd.xlane.f32.xlu0 %v4355
      %v4357 = vpop.xlane.xlu0 %4356
      %v4358 = vsel %vm1462, %v4341, 0.0
      %4359 = vadd.xlane.f32.xlu0 %v4358
      %v4360 = vpop.xlane.xlu0 %4359
      %v4361 = vsel %vm1462, %v4343, 0.0
      %4362 = vadd.xlane.f32.xlu0 %v4361
      %v4363 = vpop.xlane.xlu0 %4362
      %v4364 = vsel %vm1462, %v4345, 0.0
      %4365 = vadd.xlane.f32.xlu0 %v4364
      %v4366 = vpop.xlane.xlu0 %4365
      %v4367 = vsel %vm1462, %v4347, 0.0
      %4368 = vadd.xlane.f32.xlu0 %v4367
      %v4369 = vpop.xlane.xlu0 %4368
      %v4370 = vsel %vm1462, %v4349, 0.0
      %4371 = vadd.xlane.f32.xlu0 %v4370
      %v4372 = vpop.xlane.xlu0 %4371
      %v4373 = vsel %vm1462, %v4351, 0.0
      %4374 = vadd.xlane.f32.xlu0 %v4373
      %v4375 = vpop.xlane.xlu0 %4374
      %v4376 = vrcp.pop %v4354
      %v4377 = vrcp.pop %v4357
      %v4378 = vrcp.pop %v4360
      %v4379 = vrcp.pop %v4363
      %v4380 = vrcp.pop %v4366
      %v4381 = vrcp.pop %v4369
      %v4382 = vrcp.pop %v4372
      %v4383 = vrcp.pop %v4375
      %v4384 = vmul.f32 %v4337, %v4376
      %v4385 = vmul.f32 %v4339, %v4377
      %v4386 = vmul.f32 %v4341, %v4378
      %v4387 = vmul.f32 %v4343, %v4379
      %v4388 = vmul.f32 %v4345, %v4380
      %v4389 = vmul.f32 %v4347, %v4381
      %v4390 = vmul.f32 %v4349, %v4382
      %v4391 = vmul.f32 %v4351, %v4383
      %4392 = vrot.lane.b32.xlu0 %v1057, 104
      %v4393 = vpop.permute.xlu0 %4392
      %4394 = vrot.lane.b32.xlu0 %v1062, 104
      %v4395 = vpop.permute.xlu0 %4394
      %v4399 = vsel %vm1462, %v4384, 0
      %v4402 = vsel %vm1462, %v4385, 0
      %4404 = vmatprep.subr.mxu0 0.0
      %4405 = vmatpush1.msra.mxu0 %v4393
      %4406 = vmatprep.subr.mxu0 0.0
      %4407 = vmatpush1.msra.mxu0 %v4395
      %4408 = vmatprep.subr.mxu0 0.0
      %4409 = vmatpush1.msra.mxu0 0.0
      %4410 = vmatprep.subr.mxu0 0.0
      %4411 = vmatpush1.msra.mxu0 0.0
      %4412 = vmatprep.subr.mxu0 0.0
      %4413 = vmatpush1.msra.mxu0 0.0
      %4414 = vmatprep.subr.mxu0 0.0
      %4415 = vmatpush1.msra.mxu0 0.0
      %4416 = vmatprep.subr.mxu0 0.0
      %4417 = vmatpush1.msra.mxu0 0.0
      %4418 = vmatprep.subr.mxu0 0.0
      %4419 = vmatpush1.msra.mxu0 0.0
      %4420 = vmatprep.subr.mxu0 0.0
      %4421 = vmatpush1.msra.mxu0 0.0
      %4422 = vmatprep.subr.mxu0 0.0
      %4423 = vmatpush1.msra.mxu0 0.0
      %4424 = vmatprep.subr.mxu0 0.0
      %4425 = vmatpush1.msra.mxu0 0.0
      %4426 = vmatprep.subr.mxu0 0.0
      %4427 = vmatpush1.msra.mxu0 0.0
      %4428 = vmatprep.subr.mxu0 0.0
      %4429 = vmatpush1.msra.mxu0 0.0
      %4430 = vmatprep.subr.mxu0 0.0
      %4431 = vmatpush1.msra.mxu0 0.0
      %4432 = vmatprep.subr.mxu0 0.0
      %4433 = vmatpush1.msra.mxu0 0.0
      %4434 = vmatprep.subr.mxu0 0.0
      %4435 = vmatpush1.msra.mxu0 0.0
      %4436 = vmatprep.subr.mxu0 0.0
      %4437 = vmatpush1.msra.mxu0 0.0
      %4438 = vmatprep.subr.mxu0 0.0
      %4439 = vmatpush1.msra.mxu0 0.0
      %4440 = vmatprep.subr.mxu0 0.0
      %4441 = vmatpush1.msra.mxu0 0.0
      %4442 = vmatprep.subr.mxu0 0.0
      %4443 = vmatpush1.msra.mxu0 0.0
      %4444 = vmatprep.subr.mxu0 0.0
      %4445 = vmatpush1.msra.mxu0 0.0
      %4446 = vmatprep.subr.mxu0 0.0
      %4447 = vmatpush1.msra.mxu0 0.0
      %4448 = vmatprep.subr.mxu0 0.0
      %4449 = vmatpush1.msra.mxu0 0.0
      %4450 = vmatprep.subr.mxu0 0.0
      %4451 = vmatpush1.msra.mxu0 0.0
      %4452 = vmatprep.subr.mxu0 0.0
      %4453 = vmatpush1.msra.mxu0 0.0
      %4454 = vmatprep.subr.mxu0 0.0
      %4455 = vmatpush1.msra.mxu0 0.0
      %4456 = vmatprep.subr.mxu0 0.0
      %4457 = vmatpush1.msra.mxu0 0.0
      %4458 = vmatprep.subr.mxu0 0.0
      %4459 = vmatpush1.msra.mxu0 0.0
      %4460 = vmatprep.subr.mxu0 0.0
      %4461 = vmatpush1.msra.mxu0 0.0
      %4462 = vmatprep.subr.mxu0 0.0
      %4463 = vmatpush1.msra.mxu0 0.0
      %4464 = vmatprep.subr.mxu0 0.0
      %4465 = vmatpush1.msra.mxu0 0.0
      %4466 = vmatprep.subr.mxu0 0.0
      %4467 = vmatpush1.msra.mxu0 0.0
      %4468 = vmatprep.mubr.f32.mxu0 0.0
      %4469 = vmatmul.mubr.f32.gmra.mrb[0].mxu0 %v4399
      %v4470 = vpop.f32.mrb[0].mxu0
      %v4471 = vadd.f32 0.0, %v4470
      %v4472 = vpop.f32.mrb[0].mxu0
      %4473 = vmatprep.mubr.f32.mxu0 0.0
      %4474 = vmatmul.mubr.f32.gmra.mrb[0].mxu0 %v4402
      %v4475 = vpop.f32.mrb[0].mxu0
      %v4476 = vadd.f32 0.0, %v4475
      %v4477 = vpop.f32.mrb[0].mxu0
      %4478 = vdwg.mxu0
      %4479 = vrot.lane.b32.xlu0 %v1067, 104
      %v4480 = vpop.permute.xlu0 %4479
      %4481 = vrot.lane.b32.xlu0 %v1072, 104
      %v4482 = vpop.permute.xlu0 %4481
      %v4486 = vsel %vm1462, %v4386, 0
      %v4489 = vsel %vm1462, %v4387, 0
      %4491 = vmatprep.subr.mxu0 0.0
      %4492 = vmatpush1.msra.mxu0 %v4480
      %4493 = vmatprep.subr.mxu0 0.0
      %4494 = vmatpush1.msra.mxu0 %v4482
      %4495 = vmatprep.subr.mxu0 0.0
      %4496 = vmatpush1.msra.mxu0 0.0
      %4497 = vmatprep.subr.mxu0 0.0
      %4498 = vmatpush1.msra.mxu0 0.0
      %4499 = vmatprep.subr.mxu0 0.0
      %4500 = vmatpush1.msra.mxu0 0.0
      %4501 = vmatprep.subr.mxu0 0.0
      %4502 = vmatpush1.msra.mxu0 0.0
      %4503 = vmatprep.subr.mxu0 0.0
      %4504 = vmatpush1.msra.mxu0 0.0
      %4505 = vmatprep.subr.mxu0 0.0
      %4506 = vmatpush1.msra.mxu0 0.0
      %4507 = vmatprep.subr.mxu0 0.0
      %4508 = vmatpush1.msra.mxu0 0.0
      %4509 = vmatprep.subr.mxu0 0.0
      %4510 = vmatpush1.msra.mxu0 0.0
      %4511 = vmatprep.subr.mxu0 0.0
      %4512 = vmatpush1.msra.mxu0 0.0
      %4513 = vmatprep.subr.mxu0 0.0
      %4514 = vmatpush1.msra.mxu0 0.0
      %4515 = vmatprep.subr.mxu0 0.0
      %4516 = vmatpush1.msra.mxu0 0.0
      %4517 = vmatprep.subr.mxu0 0.0
      %4518 = vmatpush1.msra.mxu0 0.0
      %4519 = vmatprep.subr.mxu0 0.0
      %4520 = vmatpush1.msra.mxu0 0.0
      %4521 = vmatprep.subr.mxu0 0.0
      %4522 = vmatpush1.msra.mxu0 0.0
      %4523 = vmatprep.subr.mxu0 0.0
      %4524 = vmatpush1.msra.mxu0 0.0
      %4525 = vmatprep.subr.mxu0 0.0
      %4526 = vmatpush1.msra.mxu0 0.0
      %4527 = vmatprep.subr.mxu0 0.0
      %4528 = vmatpush1.msra.mxu0 0.0
      %4529 = vmatprep.subr.mxu0 0.0
      %4530 = vmatpush1.msra.mxu0 0.0
      %4531 = vmatprep.subr.mxu0 0.0
      %4532 = vmatpush1.msra.mxu0 0.0
      %4533 = vmatprep.subr.mxu0 0.0
      %4534 = vmatpush1.msra.mxu0 0.0
      %4535 = vmatprep.subr.mxu0 0.0
      %4536 = vmatpush1.msra.mxu0 0.0
      %4537 = vmatprep.subr.mxu0 0.0
      %4538 = vmatpush1.msra.mxu0 0.0
      %4539 = vmatprep.subr.mxu0 0.0
      %4540 = vmatpush1.msra.mxu0 0.0
      %4541 = vmatprep.subr.mxu0 0.0
      %4542 = vmatpush1.msra.mxu0 0.0
      %4543 = vmatprep.subr.mxu0 0.0
      %4544 = vmatpush1.msra.mxu0 0.0
      %4545 = vmatprep.subr.mxu0 0.0
      %4546 = vmatpush1.msra.mxu0 0.0
      %4547 = vmatprep.subr.mxu0 0.0
      %4548 = vmatpush1.msra.mxu0 0.0
      %4549 = vmatprep.subr.mxu0 0.0
      %4550 = vmatpush1.msra.mxu0 0.0
      %4551 = vmatprep.subr.mxu0 0.0
      %4552 = vmatpush1.msra.mxu0 0.0
      %4553 = vmatprep.subr.mxu0 0.0
      %4554 = vmatpush1.msra.mxu0 0.0
      %4555 = vmatprep.mubr.f32.mxu0 0.0
      %4556 = vmatmul.mubr.f32.gmra.mrb[0].mxu0 %v4486
      %v4557 = vpop.f32.mrb[0].mxu0
      %v4558 = vadd.f32 0.0, %v4557
      %v4559 = vpop.f32.mrb[0].mxu0
      %4560 = vmatprep.mubr.f32.mxu0 0.0
      %4561 = vmatmul.mubr.f32.gmra.mrb[0].mxu0 %v4489
      %v4562 = vpop.f32.mrb[0].mxu0
      %v4563 = vadd.f32 0.0, %v4562
      %v4564 = vpop.f32.mrb[0].mxu0
      %4565 = vdwg.mxu0
      %4566 = vrot.lane.b32.xlu0 %v1077, 104
      %v4567 = vpop.permute.xlu0 %4566
      %4568 = vrot.lane.b32.xlu0 %v1082, 104
      %v4569 = vpop.permute.xlu0 %4568
      %v4573 = vsel %vm1462, %v4388, 0
      %v4576 = vsel %vm1462, %v4389, 0
      %4578 = vmatprep.subr.mxu0 0.0
      %4579 = vmatpush1.msra.mxu0 %v4567
      %4580 = vmatprep.subr.mxu0 0.0
      %4581 = vmatpush1.msra.mxu0 %v4569
      %4582 = vmatprep.subr.mxu0 0.0
      %4583 = vmatpush1.msra.mxu0 0.0
      %4584 = vmatprep.subr.mxu0 0.0
      %4585 = vmatpush1.msra.mxu0 0.0
      %4586 = vmatprep.subr.mxu0 0.0
      %4587 = vmatpush1.msra.mxu0 0.0
      %4588 = vmatprep.subr.mxu0 0.0
      %4589 = vmatpush1.msra.mxu0 0.0
      %4590 = vmatprep.subr.mxu0 0.0
      %4591 = vmatpush1.msra.mxu0 0.0
      %4592 = vmatprep.subr.mxu0 0.0
      %4593 = vmatpush1.msra.mxu0 0.0
      %4594 = vmatprep.subr.mxu0 0.0
      %4595 = vmatpush1.msra.mxu0 0.0
      %4596 = vmatprep.subr.mxu0 0.0
      %4597 = vmatpush1.msra.mxu0 0.0
      %4598 = vmatprep.subr.mxu0 0.0
      %4599 = vmatpush1.msra.mxu0 0.0
      %4600 = vmatprep.subr.mxu0 0.0
      %4601 = vmatpush1.msra.mxu0 0.0
      %4602 = vmatprep.subr.mxu0 0.0
      %4603 = vmatpush1.msra.mxu0 0.0
      %4604 = vmatprep.subr.mxu0 0.0
      %4605 = vmatpush1.msra.mxu0 0.0
      %4606 = vmatprep.subr.mxu0 0.0
      %4607 = vmatpush1.msra.mxu0 0.0
      %4608 = vmatprep.subr.mxu0 0.0
      %4609 = vmatpush1.msra.mxu0 0.0
      %4610 = vmatprep.subr.mxu0 0.0
      %4611 = vmatpush1.msra.mxu0 0.0
      %4612 = vmatprep.subr.mxu0 0.0
      %4613 = vmatpush1.msra.mxu0 0.0
      %4614 = vmatprep.subr.mxu0 0.0
      %4615 = vmatpush1.msra.mxu0 0.0
      %4616 = vmatprep.subr.mxu0 0.0
      %4617 = vmatpush1.msra.mxu0 0.0
      %4618 = vmatprep.subr.mxu0 0.0
      %4619 = vmatpush1.msra.mxu0 0.0
      %4620 = vmatprep.subr.mxu0 0.0
      %4621 = vmatpush1.msra.mxu0 0.0
      %4622 = vmatprep.subr.mxu0 0.0
      %4623 = vmatpush1.msra.mxu0 0.0
      %4624 = vmatprep.subr.mxu0 0.0
      %4625 = vmatpush1.msra.mxu0 0.0
      %4626 = vmatprep.subr.mxu0 0.0
      %4627 = vmatpush1.msra.mxu0 0.0
      %4628 = vmatprep.subr.mxu0 0.0
      %4629 = vmatpush1.msra.mxu0 0.0
      %4630 = vmatprep.subr.mxu0 0.0
      %4631 = vmatpush1.msra.mxu0 0.0
      %4632 = vmatprep.subr.mxu0 0.0
      %4633 = vmatpush1.msra.mxu0 0.0
      %4634 = vmatprep.subr.mxu0 0.0
      %4635 = vmatpush1.msra.mxu0 0.0
      %4636 = vmatprep.subr.mxu0 0.0
      %4637 = vmatpush1.msra.mxu0 0.0
      %4638 = vmatprep.subr.mxu0 0.0
      %4639 = vmatpush1.msra.mxu0 0.0
      %4640 = vmatprep.subr.mxu0 0.0
      %4641 = vmatpush1.msra.mxu0 0.0
      %4642 = vmatprep.mubr.f32.mxu0 0.0
      %4643 = vmatmul.mubr.f32.gmra.mrb[0].mxu0 %v4573
      %v4644 = vpop.f32.mrb[0].mxu0
      %v4645 = vadd.f32 0.0, %v4644
      %v4646 = vpop.f32.mrb[0].mxu0
      %4647 = vmatprep.mubr.f32.mxu0 0.0
      %4648 = vmatmul.mubr.f32.gmra.mrb[0].mxu0 %v4576
      %v4649 = vpop.f32.mrb[0].mxu0
      %v4650 = vadd.f32 0.0, %v4649
      %v4651 = vpop.f32.mrb[0].mxu0
      %4652 = vdwg.mxu0
      %4653 = vrot.lane.b32.xlu0 %v1087, 104
      %v4654 = vpop.permute.xlu0 %4653
      %4655 = vrot.lane.b32.xlu0 %v1092, 104
      %v4656 = vpop.permute.xlu0 %4655
      %v4660 = vsel %vm1462, %v4390, 0
      %v4663 = vsel %vm1462, %v4391, 0
      %4665 = vmatprep.subr.mxu0 0.0
      %4666 = vmatpush1.msra.mxu0 %v4654
      %4667 = vmatprep.subr.mxu0 0.0
      %4668 = vmatpush1.msra.mxu0 %v4656
      %4669 = vmatprep.subr.mxu0 0.0
      %4670 = vmatpush1.msra.mxu0 0.0
      %4671 = vmatprep.subr.mxu0 0.0
      %4672 = vmatpush1.msra.mxu0 0.0
      %4673 = vmatprep.subr.mxu0 0.0
      %4674 = vmatpush1.msra.mxu0 0.0
      %4675 = vmatprep.subr.mxu0 0.0
      %4676 = vmatpush1.msra.mxu0 0.0
      %4677 = vmatprep.subr.mxu0 0.0
      %4678 = vmatpush1.msra.mxu0 0.0
      %4679 = vmatprep.subr.mxu0 0.0
      %4680 = vmatpush1.msra.mxu0 0.0
      %4681 = vmatprep.subr.mxu0 0.0
      %4682 = vmatpush1.msra.mxu0 0.0
      %4683 = vmatprep.subr.mxu0 0.0
      %4684 = vmatpush1.msra.mxu0 0.0
      %4685 = vmatprep.subr.mxu0 0.0
      %4686 = vmatpush1.msra.mxu0 0.0
      %4687 = vmatprep.subr.mxu0 0.0
      %4688 = vmatpush1.msra.mxu0 0.0
      %4689 = vmatprep.subr.mxu0 0.0
      %4690 = vmatpush1.msra.mxu0 0.0
      %4691 = vmatprep.subr.mxu0 0.0
      %4692 = vmatpush1.msra.mxu0 0.0
      %4693 = vmatprep.subr.mxu0 0.0
      %4694 = vmatpush1.msra.mxu0 0.0
      %4695 = vmatprep.subr.mxu0 0.0
      %4696 = vmatpush1.msra.mxu0 0.0
      %4697 = vmatprep.subr.mxu0 0.0
      %4698 = vmatpush1.msra.mxu0 0.0
      %4699 = vmatprep.subr.mxu0 0.0
      %4700 = vmatpush1.msra.mxu0 0.0
      %4701 = vmatprep.subr.mxu0 0.0
      %4702 = vmatpush1.msra.mxu0 0.0
      %4703 = vmatprep.subr.mxu0 0.0
      %4704 = vmatpush1.msra.mxu0 0.0
      %4705 = vmatprep.subr.mxu0 0.0
      %4706 = vmatpush1.msra.mxu0 0.0
      %4707 = vmatprep.subr.mxu0 0.0
      %4708 = vmatpush1.msra.mxu0 0.0
      %4709 = vmatprep.subr.mxu0 0.0
      %4710 = vmatpush1.msra.mxu0 0.0
      %4711 = vmatprep.subr.mxu0 0.0
      %4712 = vmatpush1.msra.mxu0 0.0
      %4713 = vmatprep.subr.mxu0 0.0
      %4714 = vmatpush1.msra.mxu0 0.0
      %4715 = vmatprep.subr.mxu0 0.0
      %4716 = vmatpush1.msra.mxu0 0.0
      %4717 = vmatprep.subr.mxu0 0.0
      %4718 = vmatpush1.msra.mxu0 0.0
      %4719 = vmatprep.subr.mxu0 0.0
      %4720 = vmatpush1.msra.mxu0 0.0
      %4721 = vmatprep.subr.mxu0 0.0
      %4722 = vmatpush1.msra.mxu0 0.0
      %4723 = vmatprep.subr.mxu0 0.0
      %4724 = vmatpush1.msra.mxu0 0.0
      %4725 = vmatprep.subr.mxu0 0.0
      %4726 = vmatpush1.msra.mxu0 0.0
      %4727 = vmatprep.subr.mxu0 0.0
      %4728 = vmatpush1.msra.mxu0 0.0
      %4729 = vmatprep.mubr.f32.mxu0 0.0
      %4730 = vmatmul.mubr.f32.gmra.mrb[0].mxu0 %v4660
      %v4731 = vpop.f32.mrb[0].mxu0
      %v4732 = vadd.f32 0.0, %v4731
      %v4733 = vpop.f32.mrb[0].mxu0
      %4734 = vmatprep.mubr.f32.mxu0 0.0
      %4735 = vmatmul.mubr.f32.gmra.mrb[0].mxu0 %v4663
      %v4736 = vpop.f32.mrb[0].mxu0
      %v4737 = vadd.f32 0.0, %v4736
      %v4738 = vpop.f32.mrb[0].mxu0
      %4739 = vdwg.mxu0
      %s4740 = scalar_lea.vmem %s9, 24
      %v4741 = vld [vmem:[%s4740] sm:$0xff]
      %v4743 = vsel %vm1095, %v4471, 0
      %v4746 = vsel %vm1095, %v4476, 0
      %v4749 = vsel %vm1095, %v4558, 0
      %v4752 = vsel %vm1095, %v4563, 0
      %v4755 = vsel %vm1095, %v4645, 0
      %v4758 = vsel %vm1095, %v4650, 0
      %v4761 = vsel %vm1095, %v4732, 0
      %v4764 = vsel %vm1095, %v4737, 0
      %4766 = vmatprep.subr.mxu0 0.0
      %4767 = vmatpush1.msra.mxu0 %v4741
      %4768 = vmatprep.subr.mxu0 0.0
      %4769 = vmatpush1.msra.mxu0 0.0
      %4770 = vmatprep.subr.mxu0 0.0
      %4771 = vmatpush1.msra.mxu0 0.0
      %4772 = vmatprep.subr.mxu0 0.0
      %4773 = vmatpush1.msra.mxu0 0.0
      %4774 = vmatprep.subr.mxu0 0.0
      %4775 = vmatpush1.msra.mxu0 0.0
      %4776 = vmatprep.subr.mxu0 0.0
      %4777 = vmatpush1.msra.mxu0 0.0
      %4778 = vmatprep.subr.mxu0 0.0
      %4779 = vmatpush1.msra.mxu0 0.0
      %4780 = vmatprep.subr.mxu0 0.0
      %4781 = vmatpush1.msra.mxu0 0.0
      %4782 = vmatprep.subr.mxu0 0.0
      %4783 = vmatpush1.msra.mxu0 0.0
      %4784 = vmatprep.subr.mxu0 0.0
      %4785 = vmatpush1.msra.mxu0 0.0
      %4786 = vmatprep.subr.mxu0 0.0
      %4787 = vmatpush1.msra.mxu0 0.0
      %4788 = vmatprep.subr.mxu0 0.0
      %4789 = vmatpush1.msra.mxu0 0.0
      %4790 = vmatprep.subr.mxu0 0.0
      %4791 = vmatpush1.msra.mxu0 0.0
      %4792 = vmatprep.subr.mxu0 0.0
      %4793 = vmatpush1.msra.mxu0 0.0
      %4794 = vmatprep.subr.mxu0 0.0
      %4795 = vmatpush1.msra.mxu0 0.0
      %4796 = vmatprep.subr.mxu0 0.0
      %4797 = vmatpush1.msra.mxu0 0.0
      %4798 = vmatprep.subr.mxu0 0.0
      %4799 = vmatpush1.msra.mxu0 0.0
      %4800 = vmatprep.subr.mxu0 0.0
      %4801 = vmatpush1.msra.mxu0 0.0
      %4802 = vmatprep.subr.mxu0 0.0
      %4803 = vmatpush1.msra.mxu0 0.0
      %4804 = vmatprep.subr.mxu0 0.0
      %4805 = vmatpush1.msra.mxu0 0.0
      %4806 = vmatprep.subr.mxu0 0.0
      %4807 = vmatpush1.msra.mxu0 0.0
      %4808 = vmatprep.subr.mxu0 0.0
      %4809 = vmatpush1.msra.mxu0 0.0
      %4810 = vmatprep.subr.mxu0 0.0
      %4811 = vmatpush1.msra.mxu0 0.0
      %4812 = vmatprep.subr.mxu0 0.0
      %4813 = vmatpush1.msra.mxu0 0.0
      %4814 = vmatprep.subr.mxu0 0.0
      %4815 = vmatpush1.msra.mxu0 0.0
      %4816 = vmatprep.subr.mxu0 0.0
      %4817 = vmatpush1.msra.mxu0 0.0
      %4818 = vmatprep.subr.mxu0 0.0
      %4819 = vmatpush1.msra.mxu0 0.0
      %4820 = vmatprep.subr.mxu0 0.0
      %4821 = vmatpush1.msra.mxu0 0.0
      %4822 = vmatprep.subr.mxu0 0.0
      %4823 = vmatpush1.msra.mxu0 0.0
      %4824 = vmatprep.subr.mxu0 0.0
      %4825 = vmatpush1.msra.mxu0 0.0
      %4826 = vmatprep.subr.mxu0 0.0
      %4827 = vmatpush1.msra.mxu0 0.0
      %4828 = vmatprep.subr.mxu0 0.0
      %4829 = vmatpush1.msra.mxu0 0.0
      %4830 = vmatprep.mubr.f32.mxu0 0.0
      %4831 = vmatmul.mubr.f32.gmra.mrb[0].mxu0 %v4743
      %v4832 = vpop.f32.mrb[0].mxu0
      %v4833 = vadd.f32 0.0, %v4832
      %v4834 = vpop.f32.mrb[0].mxu0
      %4835 = vmatprep.mubr.f32.mxu0 0.0
      %4836 = vmatmul.mubr.f32.gmra.mrb[0].mxu0 %v4746
      %v4837 = vpop.f32.mrb[0].mxu0
      %v4838 = vadd.f32 0.0, %v4837
      %v4839 = vpop.f32.mrb[0].mxu0
      %4840 = vmatprep.mubr.f32.mxu0 0.0
      %4841 = vmatmul.mubr.f32.gmra.mrb[0].mxu0 %v4749
      %v4842 = vpop.f32.mrb[0].mxu0
      %v4843 = vadd.f32 0.0, %v4842
      %v4844 = vpop.f32.mrb[0].mxu0
      %4845 = vmatprep.mubr.f32.mxu0 0.0
      %4846 = vmatmul.mubr.f32.gmra.mrb[0].mxu0 %v4752
      %v4847 = vpop.f32.mrb[0].mxu0
      %v4848 = vadd.f32 0.0, %v4847
      %v4849 = vpop.f32.mrb[0].mxu0
      %4850 = vmatprep.mubr.f32.mxu0 0.0
      %4851 = vmatmul.mubr.f32.gmra.mrb[0].mxu0 %v4755
      %v4852 = vpop.f32.mrb[0].mxu0
      %v4853 = vadd.f32 0.0, %v4852
      %v4854 = vpop.f32.mrb[0].mxu0
      %4855 = vmatprep.mubr.f32.mxu0 0.0
      %4856 = vmatmul.mubr.f32.gmra.mrb[0].mxu0 %v4758
      %v4857 = vpop.f32.mrb[0].mxu0
      %v4858 = vadd.f32 0.0, %v4857
      %v4859 = vpop.f32.mrb[0].mxu0
      %4860 = vmatprep.mubr.f32.mxu0 0.0
      %4861 = vmatmul.mubr.f32.gmra.mrb[0].mxu0 %v4761
      %v4862 = vpop.f32.mrb[0].mxu0
      %v4863 = vadd.f32 0.0, %v4862
      %v4864 = vpop.f32.mrb[0].mxu0
      %4865 = vmatprep.mubr.f32.mxu0 0.0
      %4866 = vmatmul.mubr.f32.gmra.mrb[0].mxu0 %v4764
      %v4867 = vpop.f32.mrb[0].mxu0
      %v4868 = vadd.f32 0.0, %v4867
      %v4869 = vpop.f32.mrb[0].mxu0
      %4870 = vdwg.mxu0
      %v4871 = vadd.f32 %v3913, %v4833
      %v4872 = vadd.f32 %v3914, %v4838
      %v4873 = vadd.f32 %v3915, %v4843
      %v4874 = vadd.f32 %v3916, %v4848
      %v4875 = vadd.f32 %v3917, %v4853
      %v4876 = vadd.f32 %v3918, %v4858
      %v4877 = vadd.f32 %v3919, %v4863
      %v4878 = vadd.f32 %v3920, %v4868
      %v4879 = vld [vmem:[%s10] sm:$0x1]
      %v4881 = vlaneseq
      %v4882 = vshrl.u32 %v4881, 7
      %v4883 = vsub.s32 0, %v4882
      %v4884 = vrot.slane %v4879, %v4883
      %v4886 = vadd.f32 %v4871, %v4884
      %v4887 = vadd.f32 %v4872, %v4884
      %v4888 = vadd.f32 %v4873, %v4884
      %v4889 = vadd.f32 %v4874, %v4884
      %v4890 = vadd.f32 %v4875, %v4884
      %v4891 = vadd.f32 %v4876, %v4884
      %v4892 = vadd.f32 %v4877, %v4884
      %v4893 = vadd.f32 %v4878, %v4884
      %v4894 = vadd.f32 %v4886, %v579
      %v4895 = vadd.f32 %v4887, %v580
      %v4896 = vadd.f32 %v4888, %v581
      %v4897 = vadd.f32 %v4889, %v582
      %v4898 = vadd.f32 %v4890, %v583
      %v4899 = vadd.f32 %v4891, %v584
      %v4900 = vadd.f32 %v4892, %v585
      %v4901 = vadd.f32 %v4893, %v586
      %v4902 = vld [vmem:[%s12] sm:$0x1]
      %v4903 = vld [vmem:[%s13] sm:$0x1]
      %v4904 = vsel %vm589, %v4894, 0.0
      %4905 = vadd.xlane.f32.xlu0 %v4904
      %v4906 = vpop.xlane.xlu0 %4905
      %v4907 = vsel %vm589, %v4895, 0.0
      %4908 = vadd.xlane.f32.xlu0 %v4907
      %v4909 = vpop.xlane.xlu0 %4908
      %v4910 = vsel %vm589, %v4896, 0.0
      %4911 = vadd.xlane.f32.xlu0 %v4910
      %v4912 = vpop.xlane.xlu0 %4911
      %v4913 = vsel %vm589, %v4897, 0.0
      %4914 = vadd.xlane.f32.xlu0 %v4913
      %v4915 = vpop.xlane.xlu0 %4914
      %v4916 = vsel %vm589, %v4898, 0.0
      %4917 = vadd.xlane.f32.xlu0 %v4916
      %v4918 = vpop.xlane.xlu0 %4917
      %v4919 = vsel %vm589, %v4899, 0.0
      %4920 = vadd.xlane.f32.xlu0 %v4919
      %v4921 = vpop.xlane.xlu0 %4920
      %v4922 = vsel %vm589, %v4900, 0.0
      %4923 = vadd.xlane.f32.xlu0 %v4922
      %v4924 = vpop.xlane.xlu0 %4923
      %v4925 = vsel %vm589, %v4901, 0.0
      %4926 = vadd.xlane.f32.xlu0 %v4925
      %v4927 = vpop.xlane.xlu0 %4926
      %v4928 = vmul.f32 %v4906, %v614
      %v4929 = vmul.f32 %v4909, %v614
      %v4930 = vmul.f32 %v4912, %v614
      %v4931 = vmul.f32 %v4915, %v614
      %v4932 = vmul.f32 %v4918, %v614
      %v4933 = vmul.f32 %v4921, %v614
      %v4934 = vmul.f32 %v4924, %v614
      %v4935 = vmul.f32 %v4927, %v614
      %v4936 = vsub.f32 %v4894, %v4928
      %v4937 = vsub.f32 %v4895, %v4929
      %v4938 = vsub.f32 %v4896, %v4930
      %v4939 = vsub.f32 %v4897, %v4931
      %v4940 = vsub.f32 %v4898, %v4932
      %v4941 = vsub.f32 %v4899, %v4933
      %v4942 = vsub.f32 %v4900, %v4934
      %v4943 = vsub.f32 %v4901, %v4935
      %v4944 = vmul.f32 %v4936, %v4936
      %v4945 = vmul.f32 %v4937, %v4937
      %v4946 = vmul.f32 %v4938, %v4938
      %v4947 = vmul.f32 %v4939, %v4939
      %v4948 = vmul.f32 %v4940, %v4940
      %v4949 = vmul.f32 %v4941, %v4941
      %v4950 = vmul.f32 %v4942, %v4942
      %v4951 = vmul.f32 %v4943, %v4943
      %v4952 = vsel %vm589, %v4944, 0.0
      %4953 = vadd.xlane.f32.xlu0 %v4952
      %v4954 = vpop.xlane.xlu0 %4953
      %v4955 = vsel %vm589, %v4945, 0.0
      %4956 = vadd.xlane.f32.xlu0 %v4955
      %v4957 = vpop.xlane.xlu0 %4956
      %v4958 = vsel %vm589, %v4946, 0.0
      %4959 = vadd.xlane.f32.xlu0 %v4958
      %v4960 = vpop.xlane.xlu0 %4959
      %v4961 = vsel %vm589, %v4947, 0.0
      %4962 = vadd.xlane.f32.xlu0 %v4961
      %v4963 = vpop.xlane.xlu0 %4962
      %v4964 = vsel %vm589, %v4948, 0.0
      %4965 = vadd.xlane.f32.xlu0 %v4964
      %v4966 = vpop.xlane.xlu0 %4965
      %v4967 = vsel %vm589, %v4949, 0.0
      %4968 = vadd.xlane.f32.xlu0 %v4967
      %v4969 = vpop.xlane.xlu0 %4968
      %v4970 = vsel %vm589, %v4950, 0.0
      %4971 = vadd.xlane.f32.xlu0 %v4970
      %v4972 = vpop.xlane.xlu0 %4971
      %v4973 = vsel %vm589, %v4951, 0.0
      %4974 = vadd.xlane.f32.xlu0 %v4973
      %v4975 = vpop.xlane.xlu0 %4974
      %v4976 = vmul.f32 %v4954, %v614
      %v4977 = vmul.f32 %v4957, %v614
      %v4978 = vmul.f32 %v4960, %v614
      %v4979 = vmul.f32 %v4963, %v614
      %v4980 = vmul.f32 %v4966, %v614
      %v4981 = vmul.f32 %v4969, %v614
      %v4982 = vmul.f32 %v4972, %v614
      %v4983 = vmul.f32 %v4975, %v614
      %v4984 = vadd.f32 %v4976, 1e-05
      %v4985 = vadd.f32 %v4977, 1e-05
      %v4986 = vadd.f32 %v4978, 1e-05
      %v4987 = vadd.f32 %v4979, 1e-05
      %v4988 = vadd.f32 %v4980, 1e-05
      %v4989 = vadd.f32 %v4981, 1e-05
      %v4990 = vadd.f32 %v4982, 1e-05
      %v4991 = vadd.f32 %v4983, 1e-05
      %v4992 = vrsqrt.pop %v4984
      %v4993 = vrsqrt.pop %v4985
      %v4994 = vrsqrt.pop %v4986
      %v4995 = vrsqrt.pop %v4987
      %v4996 = vrsqrt.pop %v4988
      %v4997 = vrsqrt.pop %v4989
      %v4998 = vrsqrt.pop %v4990
      %v4999 = vrsqrt.pop %v4991
      %v5000 = vmul.f32 %v4936, %v4992
      %v5001 = vmul.f32 %v4937, %v4993
      %v5002 = vmul.f32 %v4938, %v4994
      %v5003 = vmul.f32 %v4939, %v4995
      %v5004 = vmul.f32 %v4940, %v4996
      %v5005 = vmul.f32 %v4941, %v4997
      %v5006 = vmul.f32 %v4942, %v4998
      %v5007 = vmul.f32 %v4943, %v4999
      %v5009 = vlaneseq
      %v5010 = vshrl.u32 %v5009, 7
      %v5011 = vsub.s32 0, %v5010
      %v5012 = vrot.slane %v4902, %v5011
      %v5014 = vmul.f32 %v5000, %v5012
      %v5015 = vmul.f32 %v5001, %v5012
      %v5016 = vmul.f32 %v5002, %v5012
      %v5017 = vmul.f32 %v5003, %v5012
      %v5018 = vmul.f32 %v5004, %v5012
      %v5019 = vmul.f32 %v5005, %v5012
      %v5020 = vmul.f32 %v5006, %v5012
      %v5021 = vmul.f32 %v5007, %v5012
      %v5023 = vlaneseq
      %v5024 = vshrl.u32 %v5023, 7
      %v5025 = vsub.s32 0, %v5024
      %v5026 = vrot.slane %v4903, %v5025
      %v5028 = vadd.f32 %v5014, %v5026
      %v5029 = vadd.f32 %v5015, %v5026
      %v5030 = vadd.f32 %v5016, %v5026
      %v5031 = vadd.f32 %v5017, %v5026
      %v5032 = vadd.f32 %v5018, %v5026
      %v5033 = vadd.f32 %v5019, %v5026
      %v5034 = vadd.f32 %v5020, %v5026
      %v5035 = vadd.f32 %v5021, %v5026
      %v5036 = vld [vmem:[%s14] sm:$0xff]
      %v5037 = vld [vmem:[%s14 + $0x8] sm:$0xff]
      %v5038 = vld [vmem:[%s14 + $0x10] sm:$0xff]
      %v5039 = vld [vmem:[%s14 + $0x18] sm:$0xff]
      %v5040 = vld [vmem:[%s15] sm:$0x1]
      %v5042 = vlaneseq
      %v5043 = vshrl.u32 %v5042, 7
      %v5044 = vsub.s32 0, %v5043
      %v5045 = vrot.slane %v5040, %v5044
      %v5048 = vsel %vm589, %v5028, 0
      %v5051 = vsel %vm589, %v5029, 0
      %v5054 = vsel %vm589, %v5030, 0
      %v5057 = vsel %vm589, %v5031, 0
      %v5060 = vsel %vm589, %v5032, 0
      %v5063 = vsel %vm589, %v5033, 0
      %v5066 = vsel %vm589, %v5034, 0
      %v5069 = vsel %vm589, %v5035, 0
      %5071 = vmatprep.subr.mxu0 0.0
      %5072 = vmatpush1.msra.mxu0 %v5036
      %5073 = vmatprep.subr.mxu0 0.0
      %5074 = vmatpush1.msra.mxu0 %v5037
      %5075 = vmatprep.subr.mxu0 0.0
      %5076 = vmatpush1.msra.mxu0 %v5038
      %5077 = vmatprep.subr.mxu0 0.0
      %5078 = vmatpush1.msra.mxu0 %v5039
      %5079 = vmatprep.subr.mxu0 0.0
      %5080 = vmatpush1.msra.mxu0 0.0
      %5081 = vmatprep.subr.mxu0 0.0
      %5082 = vmatpush1.msra.mxu0 0.0
      %5083 = vmatprep.subr.mxu0 0.0
      %5084 = vmatpush1.msra.mxu0 0.0
      %5085 = vmatprep.subr.mxu0 0.0
      %5086 = vmatpush1.msra.mxu0 0.0
      %5087 = vmatprep.subr.mxu0 0.0
      %5088 = vmatpush1.msra.mxu0 0.0
      %5089 = vmatprep.subr.mxu0 0.0
      %5090 = vmatpush1.msra.mxu0 0.0
      %5091 = vmatprep.subr.mxu0 0.0
      %5092 = vmatpush1.msra.mxu0 0.0
      %5093 = vmatprep.subr.mxu0 0.0
      %5094 = vmatpush1.msra.mxu0 0.0
      %5095 = vmatprep.subr.mxu0 0.0
      %5096 = vmatpush1.msra.mxu0 0.0
      %5097 = vmatprep.subr.mxu0 0.0
      %5098 = vmatpush1.msra.mxu0 0.0
      %5099 = vmatprep.subr.mxu0 0.0
      %5100 = vmatpush1.msra.mxu0 0.0
      %5101 = vmatprep.subr.mxu0 0.0
      %5102 = vmatpush1.msra.mxu0 0.0
      %5103 = vmatprep.subr.mxu0 0.0
      %5104 = vmatpush1.msra.mxu0 0.0
      %5105 = vmatprep.subr.mxu0 0.0
      %5106 = vmatpush1.msra.mxu0 0.0
      %5107 = vmatprep.subr.mxu0 0.0
      %5108 = vmatpush1.msra.mxu0 0.0
      %5109 = vmatprep.subr.mxu0 0.0
      %5110 = vmatpush1.msra.mxu0 0.0
      %5111 = vmatprep.subr.mxu0 0.0
      %5112 = vmatpush1.msra.mxu0 0.0
      %5113 = vmatprep.subr.mxu0 0.0
      %5114 = vmatpush1.msra.mxu0 0.0
      %5115 = vmatprep.subr.mxu0 0.0
      %5116 = vmatpush1.msra.mxu0 0.0
      %5117 = vmatprep.subr.mxu0 0.0
      %5118 = vmatpush1.msra.mxu0 0.0
      %5119 = vmatprep.subr.mxu0 0.0
      %5120 = vmatpush1.msra.mxu0 0.0
      %5121 = vmatprep.subr.mxu0 0.0
      %5122 = vmatpush1.msra.mxu0 0.0
      %5123 = vmatprep.subr.mxu0 0.0
      %5124 = vmatpush1.msra.mxu0 0.0
      %5125 = vmatprep.subr.mxu0 0.0
      %5126 = vmatpush1.msra.mxu0 0.0
      %5127 = vmatprep.subr.mxu0 0.0
      %5128 = vmatpush1.msra.mxu0 0.0
      %5129 = vmatprep.subr.mxu0 0.0
      %5130 = vmatpush1.msra.mxu0 0.0
      %5131 = vmatprep.subr.mxu0 0.0
      %5132 = vmatpush1.msra.mxu0 0.0
      %5133 = vmatprep.subr.mxu0 0.0
      %5134 = vmatpush1.msra.mxu0 0.0
      %5135 = vmatprep.mubr.f32.mxu0 0.0
      %5136 = vmatmul.mubr.f32.gmra.mrb[0].mxu0 %v5048
      %v5137 = vpop.f32.mrb[0].mxu0
      %v5138 = vadd.f32 %v5045, %v5137
      %v5139 = vpop.f32.mrb[0].mxu0
      %5140 = vmatprep.mubr.f32.mxu0 0.0
      %5141 = vmatmul.mubr.f32.gmra.mrb[0].mxu0 %v5051
      %v5142 = vpop.f32.mrb[0].mxu0
      %v5143 = vadd.f32 %v5045, %v5142
      %v5144 = vpop.f32.mrb[0].mxu0
      %5145 = vmatprep.mubr.f32.mxu0 0.0
      %5146 = vmatmul.mubr.f32.gmra.mrb[0].mxu0 %v5054
      %v5147 = vpop.f32.mrb[0].mxu0
      %v5148 = vadd.f32 %v5045, %v5147
      %v5149 = vpop.f32.mrb[0].mxu0
      %5150 = vmatprep.mubr.f32.mxu0 0.0
      %5151 = vmatmul.mubr.f32.gmra.mrb[0].mxu0 %v5057
      %v5152 = vpop.f32.mrb[0].mxu0
      %v5153 = vadd.f32 %v5045, %v5152
      %v5154 = vpop.f32.mrb[0].mxu0
      %5155 = vmatprep.mubr.f32.mxu0 0.0
      %5156 = vmatmul.mubr.f32.gmra.mrb[0].mxu0 %v5060
      %v5157 = vpop.f32.mrb[0].mxu0
      %v5158 = vadd.f32 %v5045, %v5157
      %v5159 = vpop.f32.mrb[0].mxu0
      %5160 = vmatprep.mubr.f32.mxu0 0.0
      %5161 = vmatmul.mubr.f32.gmra.mrb[0].mxu0 %v5063
      %v5162 = vpop.f32.mrb[0].mxu0
      %v5163 = vadd.f32 %v5045, %v5162
      %v5164 = vpop.f32.mrb[0].mxu0
      %5165 = vmatprep.mubr.f32.mxu0 0.0
      %5166 = vmatmul.mubr.f32.gmra.mrb[0].mxu0 %v5066
      %v5167 = vpop.f32.mrb[0].mxu0
      %v5168 = vadd.f32 %v5045, %v5167
      %v5169 = vpop.f32.mrb[0].mxu0
      %5170 = vmatprep.mubr.f32.mxu0 0.0
      %5171 = vmatmul.mubr.f32.gmra.mrb[0].mxu0 %v5069
      %v5172 = vpop.f32.mrb[0].mxu0
      %v5173 = vadd.f32 %v5045, %v5172
      %v5174 = vpop.f32.mrb[0].mxu0
      %5175 = vdwg.mxu0
      %v5176 = vmul.f32 %v5138, 0.5
      %v5177 = vmul.f32 %v5143, 0.5
      %v5178 = vmul.f32 %v5148, 0.5
      %v5179 = vmul.f32 %v5153, 0.5
      %v5180 = vmul.f32 %v5158, 0.5
      %v5181 = vmul.f32 %v5163, 0.5
      %v5182 = vmul.f32 %v5168, 0.5
      %v5183 = vmul.f32 %v5173, 0.5
      %v5184 = vmul.f32 %v5138, 0.70710677
      %v5185 = vmul.f32 %v5143, 0.70710677
      %v5186 = vmul.f32 %v5148, 0.70710677
      %v5187 = vmul.f32 %v5153, 0.70710677
      %v5188 = vmul.f32 %v5158, 0.70710677
      %v5189 = vmul.f32 %v5163, 0.70710677
      %v5190 = vmul.f32 %v5168, 0.70710677
      %v5191 = vmul.f32 %v5173, 0.70710677
      %v5192 = vand.u32 2147483647, %v5184
      %v5193 = vand.u32 2147483647, %v5185
      %v5194 = vand.u32 2147483647, %v5186
      %v5195 = vand.u32 2147483647, %v5187
      %v5196 = vand.u32 2147483647, %v5188
      %v5197 = vand.u32 2147483647, %v5189
      %v5198 = vand.u32 2147483647, %v5190
      %v5199 = vand.u32 2147483647, %v5191
      %v5200 = vmul.f32 %v5192, 0.3275911
      %v5201 = vmul.f32 %v5193, 0.3275911
      %v5202 = vmul.f32 %v5194, 0.3275911
      %v5203 = vmul.f32 %v5195, 0.3275911
      %v5204 = vmul.f32 %v5196, 0.3275911
      %v5205 = vmul.f32 %v5197, 0.3275911
      %v5206 = vmul.f32 %v5198, 0.3275911
      %v5207 = vmul.f32 %v5199, 0.3275911
      %v5208 = vadd.f32 %v5200, 1.0
      %v5209 = vadd.f32 %v5201, 1.0
      %v5210 = vadd.f32 %v5202, 1.0
      %v5211 = vadd.f32 %v5203, 1.0
      %v5212 = vadd.f32 %v5204, 1.0
      %v5213 = vadd.f32 %v5205, 1.0
      %v5214 = vadd.f32 %v5206, 1.0
      %v5215 = vadd.f32 %v5207, 1.0
      %v5216 = vrcp.pop %v5208
      %v5217 = vmul.f32 1.0, %v5216
      %v5218 = vrcp.pop %v5209
      %v5219 = vmul.f32 1.0, %v5218
      %v5220 = vrcp.pop %v5210
      %v5221 = vmul.f32 1.0, %v5220
      %v5222 = vrcp.pop %v5211
      %v5223 = vmul.f32 1.0, %v5222
      %v5224 = vrcp.pop %v5212
      %v5225 = vmul.f32 1.0, %v5224
      %v5226 = vrcp.pop %v5213
      %v5227 = vmul.f32 1.0, %v5226
      %v5228 = vrcp.pop %v5214
      %v5229 = vmul.f32 1.0, %v5228
      %v5230 = vrcp.pop %v5215
      %v5231 = vmul.f32 1.0, %v5230
      %v5232 = vmul.f32 %v5217, 1.0614054
      %v5233 = vmul.f32 %v5219, 1.0614054
      %v5234 = vmul.f32 %v5221, 1.0614054
      %v5235 = vmul.f32 %v5223, 1.0614054
      %v5236 = vmul.f32 %v5225, 1.0614054
      %v5237 = vmul.f32 %v5227, 1.0614054
      %v5238 = vmul.f32 %v5229, 1.0614054
      %v5239 = vmul.f32 %v5231, 1.0614054
      %v5240 = vadd.f32 %v5232, -1.4531521
      %v5241 = vadd.f32 %v5233, -1.4531521
      %v5242 = vadd.f32 %v5234, -1.4531521
      %v5243 = vadd.f32 %v5235, -1.4531521
      %v5244 = vadd.f32 %v5236, -1.4531521
      %v5245 = vadd.f32 %v5237, -1.4531521
      %v5246 = vadd.f32 %v5238, -1.4531521
      %v5247 = vadd.f32 %v5239, -1.4531521
      %v5248 = vmul.f32 %v5240, %v5217
      %v5249 = vmul.f32 %v5241, %v5219
      %v5250 = vmul.f32 %v5242, %v5221
      %v5251 = vmul.f32 %v5243, %v5223
      %v5252 = vmul.f32 %v5244, %v5225
      %v5253 = vmul.f32 %v5245, %v5227
      %v5254 = vmul.f32 %v5246, %v5229
      %v5255 = vmul.f32 %v5247, %v5231
      %v5256 = vadd.f32 %v5248, 1.4214138
      %v5257 = vadd.f32 %v5249, 1.4214138
      %v5258 = vadd.f32 %v5250, 1.4214138
      %v5259 = vadd.f32 %v5251, 1.4214138
      %v5260 = vadd.f32 %v5252, 1.4214138
      %v5261 = vadd.f32 %v5253, 1.4214138
      %v5262 = vadd.f32 %v5254, 1.4214138
      %v5263 = vadd.f32 %v5255, 1.4214138
      %v5264 = vmul.f32 %v5256, %v5217
      %v5265 = vmul.f32 %v5257, %v5219
      %v5266 = vmul.f32 %v5258, %v5221
      %v5267 = vmul.f32 %v5259, %v5223
      %v5268 = vmul.f32 %v5260, %v5225
      %v5269 = vmul.f32 %v5261, %v5227
      %v5270 = vmul.f32 %v5262, %v5229
      %v5271 = vmul.f32 %v5263, %v5231
      %v5272 = vadd.f32 %v5264, -0.28449672
      %v5273 = vadd.f32 %v5265, -0.28449672
      %v5274 = vadd.f32 %v5266, -0.28449672
      %v5275 = vadd.f32 %v5267, -0.28449672
      %v5276 = vadd.f32 %v5268, -0.28449672
      %v5277 = vadd.f32 %v5269, -0.28449672
      %v5278 = vadd.f32 %v5270, -0.28449672
      %v5279 = vadd.f32 %v5271, -0.28449672
      %v5280 = vmul.f32 %v5272, %v5217
      %v5281 = vmul.f32 %v5273, %v5219
      %v5282 = vmul.f32 %v5274, %v5221
      %v5283 = vmul.f32 %v5275, %v5223
      %v5284 = vmul.f32 %v5276, %v5225
      %v5285 = vmul.f32 %v5277, %v5227
      %v5286 = vmul.f32 %v5278, %v5229
      %v5287 = vmul.f32 %v5279, %v5231
      %v5288 = vadd.f32 %v5280, 0.2548296
      %v5289 = vadd.f32 %v5281, 0.2548296
      %v5290 = vadd.f32 %v5282, 0.2548296
      %v5291 = vadd.f32 %v5283, 0.2548296
      %v5292 = vadd.f32 %v5284, 0.2548296
      %v5293 = vadd.f32 %v5285, 0.2548296
      %v5294 = vadd.f32 %v5286, 0.2548296
      %v5295 = vadd.f32 %v5287, 0.2548296
      %v5296 = vmul.f32 %v5288, %v5217
      %v5297 = vmul.f32 %v5289, %v5219
      %v5298 = vmul.f32 %v5290, %v5221
      %v5299 = vmul.f32 %v5291, %v5223
      %v5300 = vmul.f32 %v5292, %v5225
      %v5301 = vmul.f32 %v5293, %v5227
      %v5302 = vmul.f32 %v5294, %v5229
      %v5303 = vmul.f32 %v5295, %v5231
      %v5304 = vsub.f32 0.0, %v5192
      %v5305 = vsub.f32 0.0, %v5193
      %v5306 = vsub.f32 0.0, %v5194
      %v5307 = vsub.f32 0.0, %v5195
      %v5308 = vsub.f32 0.0, %v5196
      %v5309 = vsub.f32 0.0, %v5197
      %v5310 = vsub.f32 0.0, %v5198
      %v5311 = vsub.f32 0.0, %v5199
      %v5312 = vmul.f32 %v5304, %v5192
      %v5313 = vmul.f32 %v5305, %v5193
      %v5314 = vmul.f32 %v5306, %v5194
      %v5315 = vmul.f32 %v5307, %v5195
      %v5316 = vmul.f32 %v5308, %v5196
      %v5317 = vmul.f32 %v5309, %v5197
      %v5318 = vmul.f32 %v5310, %v5198
      %v5319 = vmul.f32 %v5311, %v5199
      %v5320 = vmul.f32 %v5312, 1.442695
      %v5321 = vpow.pop %v5320
      %v5322 = vmul.f32 %v5313, 1.442695
      %v5323 = vpow.pop %v5322
      %v5324 = vmul.f32 %v5314, 1.442695
      %v5325 = vpow.pop %v5324
      %v5326 = vmul.f32 %v5315, 1.442695
      %v5327 = vpow.pop %v5326
      %v5328 = vmul.f32 %v5316, 1.442695
      %v5329 = vpow.pop %v5328
      %v5330 = vmul.f32 %v5317, 1.442695
      %v5331 = vpow.pop %v5330
      %v5332 = vmul.f32 %v5318, 1.442695
      %v5333 = vpow.pop %v5332
      %v5334 = vmul.f32 %v5319, 1.442695
      %v5335 = vpow.pop %v5334
      %v5336 = vmul.f32 %v5296, %v5321
      %v5337 = vmul.f32 %v5297, %v5323
      %v5338 = vmul.f32 %v5298, %v5325
      %v5339 = vmul.f32 %v5299, %v5327
      %v5340 = vmul.f32 %v5300, %v5329
      %v5341 = vmul.f32 %v5301, %v5331
      %v5342 = vmul.f32 %v5302, %v5333
      %v5343 = vmul.f32 %v5303, %v5335
      %v5344 = vsub.f32 1.0, %v5336
      %v5345 = vsub.f32 1.0, %v5337
      %v5346 = vsub.f32 1.0, %v5338
      %v5347 = vsub.f32 1.0, %v5339
      %v5348 = vsub.f32 1.0, %v5340
      %v5349 = vsub.f32 1.0, %v5341
      %v5350 = vsub.f32 1.0, %v5342
      %v5351 = vsub.f32 1.0, %v5343
      %vm5352 = vcmp.ge.f32.partialorder %v5184, 0.0
      %vm5353 = vcmp.ge.f32.partialorder %v5185, 0.0
      %vm5354 = vcmp.ge.f32.partialorder %v5186, 0.0
      %vm5355 = vcmp.ge.f32.partialorder %v5187, 0.0
      %vm5356 = vcmp.ge.f32.partialorder %v5188, 0.0
      %vm5357 = vcmp.ge.f32.partialorder %v5189, 0.0
      %vm5358 = vcmp.ge.f32.partialorder %v5190, 0.0
      %vm5359 = vcmp.ge.f32.partialorder %v5191, 0.0
      %v5360 = vsub.f32 0.0, %v5344
      %v5361 = vsub.f32 0.0, %v5345
      %v5362 = vsub.f32 0.0, %v5346
      %v5363 = vsub.f32 0.0, %v5347
      %v5364 = vsub.f32 0.0, %v5348
      %v5365 = vsub.f32 0.0, %v5349
      %v5366 = vsub.f32 0.0, %v5350
      %v5367 = vsub.f32 0.0, %v5351
      %v5368 = vsel %vm5352, %v5344, %v5360
      %v5369 = vsel %vm5353, %v5345, %v5361
      %v5370 = vsel %vm5354, %v5346, %v5362
      %v5371 = vsel %vm5355, %v5347, %v5363
      %v5372 = vsel %vm5356, %v5348, %v5364
      %v5373 = vsel %vm5357, %v5349, %v5365
      %v5374 = vsel %vm5358, %v5350, %v5366
      %v5375 = vsel %vm5359, %v5351, %v5367
      %v5376 = vadd.f32 %v5368, 1.0
      %v5377 = vadd.f32 %v5369, 1.0
      %v5378 = vadd.f32 %v5370, 1.0
      %v5379 = vadd.f32 %v5371, 1.0
      %v5380 = vadd.f32 %v5372, 1.0
      %v5381 = vadd.f32 %v5373, 1.0
      %v5382 = vadd.f32 %v5374, 1.0
      %v5383 = vadd.f32 %v5375, 1.0
      %v5384 = vmul.f32 %v5176, %v5376
      %v5385 = vmul.f32 %v5177, %v5377
      %v5386 = vmul.f32 %v5178, %v5378
      %v5387 = vmul.f32 %v5179, %v5379
      %v5388 = vmul.f32 %v5180, %v5380
      %v5389 = vmul.f32 %v5181, %v5381
      %v5390 = vmul.f32 %v5182, %v5382
      %v5391 = vmul.f32 %v5183, %v5383
      %v5392 = vld [vmem:[%s16] sm:$0xff]
      %v5393 = vld [vmem:[%s16 + $0x8] sm:$0xff]
      %v5394 = vld [vmem:[%s16 + $0x10] sm:$0xff]
      %v5395 = vld [vmem:[%s16 + $0x18] sm:$0xff]
      %v5396 = vld [vmem:[%s16 + $0x20] sm:$0xff]
      %v5397 = vld [vmem:[%s16 + $0x28] sm:$0xff]
      %v5398 = vld [vmem:[%s16 + $0x30] sm:$0xff]
      %v5399 = vld [vmem:[%s16 + $0x38] sm:$0xff]
      %v5400 = vld [vmem:[%s16 + $0x40] sm:$0xff]
      %v5401 = vld [vmem:[%s16 + $0x48] sm:$0xff]
      %v5402 = vld [vmem:[%s16 + $0x50] sm:$0xff]
      %v5403 = vld [vmem:[%s16 + $0x58] sm:$0xff]
      %v5404 = vld [vmem:[%s16 + $0x60] sm:$0xff]
      %v5405 = vld [vmem:[%s16 + $0x68] sm:$0xff]
      %v5406 = vld [vmem:[%s16 + $0x70] sm:$0xff]
      %v5407 = vld [vmem:[%s16 + $0x78] sm:$0xff]
      %v5408 = vld [vmem:[%s17] sm:$0x1]
      %v5410 = vlaneseq
      %v5411 = vshrl.u32 %v5410, 7
      %v5412 = vsub.s32 0, %v5411
      %v5413 = vrot.slane %v5408, %v5412
      %5415 = vmatprep.subr.mxu0 0.0
      %5416 = vmatpush1.msra.mxu0 %v5392
      %5417 = vmatprep.subr.mxu0 0.0
      %5418 = vmatpush1.msra.mxu0 %v5393
      %5419 = vmatprep.subr.mxu0 0.0
      %5420 = vmatpush1.msra.mxu0 %v5394
      %5421 = vmatprep.subr.mxu0 0.0
      %5422 = vmatpush1.msra.mxu0 %v5395
      %5423 = vmatprep.subr.mxu0 0.0
      %5424 = vmatpush1.msra.mxu0 %v5396
      %5425 = vmatprep.subr.mxu0 0.0
      %5426 = vmatpush1.msra.mxu0 %v5397
      %5427 = vmatprep.subr.mxu0 0.0
      %5428 = vmatpush1.msra.mxu0 %v5398
      %5429 = vmatprep.subr.mxu0 0.0
      %5430 = vmatpush1.msra.mxu0 %v5399
      %5431 = vmatprep.subr.mxu0 0.0
      %5432 = vmatpush1.msra.mxu0 %v5400
      %5433 = vmatprep.subr.mxu0 0.0
      %5434 = vmatpush1.msra.mxu0 %v5401
      %5435 = vmatprep.subr.mxu0 0.0
      %5436 = vmatpush1.msra.mxu0 %v5402
      %5437 = vmatprep.subr.mxu0 0.0
      %5438 = vmatpush1.msra.mxu0 %v5403
      %5439 = vmatprep.subr.mxu0 0.0
      %5440 = vmatpush1.msra.mxu0 %v5404
      %5441 = vmatprep.subr.mxu0 0.0
      %5442 = vmatpush1.msra.mxu0 %v5405
      %5443 = vmatprep.subr.mxu0 0.0
      %5444 = vmatpush1.msra.mxu0 %v5406
      %5445 = vmatprep.subr.mxu0 0.0
      %5446 = vmatpush1.msra.mxu0 %v5407
      %5447 = vmatprep.subr.mxu0 0.0
      %5448 = vmatpush1.msra.mxu0 0.0
      %5449 = vmatprep.subr.mxu0 0.0
      %5450 = vmatpush1.msra.mxu0 0.0
      %5451 = vmatprep.subr.mxu0 0.0
      %5452 = vmatpush1.msra.mxu0 0.0
      %5453 = vmatprep.subr.mxu0 0.0
      %5454 = vmatpush1.msra.mxu0 0.0
      %5455 = vmatprep.subr.mxu0 0.0
      %5456 = vmatpush1.msra.mxu0 0.0
      %5457 = vmatprep.subr.mxu0 0.0
      %5458 = vmatpush1.msra.mxu0 0.0
      %5459 = vmatprep.subr.mxu0 0.0
      %5460 = vmatpush1.msra.mxu0 0.0
      %5461 = vmatprep.subr.mxu0 0.0
      %5462 = vmatpush1.msra.mxu0 0.0
      %5463 = vmatprep.subr.mxu0 0.0
      %5464 = vmatpush1.msra.mxu0 0.0
      %5465 = vmatprep.subr.mxu0 0.0
      %5466 = vmatpush1.msra.mxu0 0.0
      %5467 = vmatprep.subr.mxu0 0.0
      %5468 = vmatpush1.msra.mxu0 0.0
      %5469 = vmatprep.subr.mxu0 0.0
      %5470 = vmatpush1.msra.mxu0 0.0
      %5471 = vmatprep.subr.mxu0 0.0
      %5472 = vmatpush1.msra.mxu0 0.0
      %5473 = vmatprep.subr.mxu0 0.0
      %5474 = vmatpush1.msra.mxu0 0.0
      %5475 = vmatprep.subr.mxu0 0.0
      %5476 = vmatpush1.msra.mxu0 0.0
      %5477 = vmatprep.subr.mxu0 0.0
      %5478 = vmatpush1.msra.mxu0 0.0
      %5479 = vmatprep.mubr.f32.mxu0 0.0
      %5480 = vmatmul.mubr.f32.gmra.mrb[0].mxu0 %v5384
      %v5481 = vpop.f32.mrb[0].mxu0
      %v5482 = vadd.f32 %v5413, %v5481
      %v5483 = vpop.f32.mrb[0].mxu0
      %5484 = vmatprep.mubr.f32.mxu0 0.0
      %5485 = vmatmul.mubr.f32.gmra.mrb[0].mxu0 %v5385
      %v5486 = vpop.f32.mrb[0].mxu0
      %v5487 = vadd.f32 %v5413, %v5486
      %v5488 = vpop.f32.mrb[0].mxu0
      %5489 = vmatprep.mubr.f32.mxu0 0.0
      %5490 = vmatmul.mubr.f32.gmra.mrb[0].mxu0 %v5386
      %v5491 = vpop.f32.mrb[0].mxu0
      %v5492 = vadd.f32 %v5413, %v5491
      %v5493 = vpop.f32.mrb[0].mxu0
      %5494 = vmatprep.mubr.f32.mxu0 0.0
      %5495 = vmatmul.mubr.f32.gmra.mrb[0].mxu0 %v5387
      %v5496 = vpop.f32.mrb[0].mxu0
      %v5497 = vadd.f32 %v5413, %v5496
      %v5498 = vpop.f32.mrb[0].mxu0
      %5499 = vmatprep.mubr.f32.mxu0 0.0
      %5500 = vmatmul.mubr.f32.gmra.mrb[0].mxu0 %v5388
      %v5501 = vpop.f32.mrb[0].mxu0
      %v5502 = vadd.f32 %v5413, %v5501
      %v5503 = vpop.f32.mrb[0].mxu0
      %5504 = vmatprep.mubr.f32.mxu0 0.0
      %5505 = vmatmul.mubr.f32.gmra.mrb[0].mxu0 %v5389
      %v5506 = vpop.f32.mrb[0].mxu0
      %v5507 = vadd.f32 %v5413, %v5506
      %v5508 = vpop.f32.mrb[0].mxu0
      %5509 = vmatprep.mubr.f32.mxu0 0.0
      %5510 = vmatmul.mubr.f32.gmra.mrb[0].mxu0 %v5390
      %v5511 = vpop.f32.mrb[0].mxu0
      %v5512 = vadd.f32 %v5413, %v5511
      %v5513 = vpop.f32.mrb[0].mxu0
      %5514 = vmatprep.mubr.f32.mxu0 0.0
      %5515 = vmatmul.mubr.f32.gmra.mrb[0].mxu0 %v5391
      %v5516 = vpop.f32.mrb[0].mxu0
      %v5517 = vadd.f32 %v5413, %v5516
      %v5518 = vpop.f32.mrb[0].mxu0
      %5519 = vdwg.mxu0
      %v5520 = vadd.f32 %v5482, %v4894
      %v5521 = vadd.f32 %v5487, %v4895
      %v5522 = vadd.f32 %v5492, %v4896
      %v5523 = vadd.f32 %v5497, %v4897
      %v5524 = vadd.f32 %v5502, %v4898
      %v5525 = vadd.f32 %v5507, %v4899
      %v5526 = vadd.f32 %v5512, %v4900
      %v5527 = vadd.f32 %v5517, %v4901
      %5528 = vst.msk [vmem:[%s577] sm:$0xff] %vm589, %v5520
      %5529 = vst.msk [vmem:[%s577 + $0x8] sm:$0xff] %vm589, %v5521
      %5530 = vst.msk [vmem:[%s577 + $0x10] sm:$0xff] %vm589, %v5522
      %5531 = vst.msk [vmem:[%s577 + $0x18] sm:$0xff] %vm589, %v5523
      %5532 = vst.msk [vmem:[%s577 + $0x20] sm:$0xff] %vm589, %v5524
      %5533 = vst.msk [vmem:[%s577 + $0x28] sm:$0xff] %vm589, %v5525
      %5534 = vst.msk [vmem:[%s577 + $0x30] sm:$0xff] %vm589, %v5526
      %5535 = vst.msk [vmem:[%s577 + $0x38] sm:$0xff] %vm589, %v5527
      %s5536 = smul.u32 8, %s29
      %p5537 = scmp.lt.s32.totalorder %s5536, 15
      %s5538 = scalar_select %p5537, %s5536, 15
      %s5539 = smul.addr %s5538, 8
      %s5540 = scalar_lea.vmem %s18, %s5539
      // Predicated region
      $region93: #{tpu_custom_call.1} parent=91 // pred_check
        %p5541 = pneg %p430
      $region94: #{tpu_custom_call.1} parent=91 // pred_check_branch
        %5543 = sbr.rel (%p5541) target = $region96
      $region95: #{tpu_custom_call.1} parent=91 // pred_region
        %s5544 = smul.u32 8, %s29
      $region96: #{tpu_custom_call.1} parent=91 // pred_fallthru
        _
    $region92: #{tpu_custom_call.1} parent=5 // pred_fallthru
      _
    %p5545 = scmp.le.s32.totalorder 2, %s24
    // Predicated region
    $region97: #{tpu_custom_call.1} parent=5 // pred_check
      %p5546 = pneg %p5545
    $region98: #{tpu_custom_call.1} parent=5 // pred_check_branch
      %5548 = sbr.rel (%p5546) target = $region100
    $region99: #{tpu_custom_call.1} parent=5 // pred_region
      %s5549 = ssub.s32 %s24, 2
      // Predicated region
      $region101: #{tpu_custom_call.1} parent=99 // pred_check
        %p5550 = pneg %p436
      $region102: #{tpu_custom_call.1} parent=99 // pred_check_branch
        %5552 = sbr.rel (%p5550) target = $region104
      $region103: #{tpu_custom_call.1} parent=99 // pred_region
        %s5553 = smul.u32 8, %s30
        %p5554 = scmp.lt.s32.totalorder %s5553, 15
        %s5555 = scalar_select %p5554, %s5553, 15
        %s5556 = smul.addr %s5555, 8
        %s5557 = scalar_lea.vmem %s18, %s5556
      $region104: #{tpu_custom_call.1} parent=99 // pred_fallthru
        _
    $region100: #{tpu_custom_call.1} parent=5 // pred_fallthru
      _
  $region6: #{tpu_custom_call.1} parent=0 // loop_footer
    %s28 = sadd.s32 1, %s24
  $region7: #{tpu_custom_call.1} parent=0 // loop_footer_branch
    %23 = sbr.rel target = $region3
  $region8: #{tpu_custom_call.1} parent=0 // loop_exit
    _

</llo_original>
